<compile_context>
chip_gen: v5e
topology: v5e:2x2
jax: 0.10.0
libtpu: 0.0.40
codegen_flags: <defaults>
</compile_context>

<pallas_src>
import functools

import numpy as np
import jax
import jax.numpy as jnp
from jax import lax
from jax.experimental import pallas as pl
from jax.experimental.pallas import tpu as pltpu

# ------------------------- configuration (small shapes) -------------------------
B = 2            # batch
CIN = 3          # image channels
H = W = 32       # network input spatial size
STRIDE = 8       # single detection level
HF, WF = H // STRIDE, W // STRIDE
P = HF * WF                      # center priors per image (16)
BP = B * P                       # all points of the batch (32)
F = CIN * STRIDE * STRIDE        # patch feature size (192)
HID = 32                         # hidden width of synthetic head
NUM_CLASSES = 4
REG_MAX = 7
REG_BINS = REG_MAX + 1
OUT = NUM_CLASSES + 4 * REG_BINS  # 36

CONF_THRESH = 0.35
IOU_THRESH = 0.6
NMS_MAX_NUM = 100

N_CAND = BP * NUM_CLASSES        # 128 candidates (all images, class-major)
OUT_STRIDE = 128                 # per-image row stride of the output dets slab

# power-of-two sizes -> cheap shifts/masks instead of div/mod
assert (P & (P - 1)) == 0 and (WF & (WF - 1)) == 0 and (BP & (BP - 1)) == 0
assert (REG_BINS & (REG_BINS - 1)) == 0
assert NMS_MAX_NUM <= OUT_STRIDE and P * NUM_CLASSES <= OUT_STRIDE
WF_SHIFT = WF.bit_length() - 1
P_SHIFT = P.bit_length() - 1
BP_SHIFT = BP.bit_length() - 1
REG_SHIFT = REG_BINS.bit_length() - 1

# ---- trace-time constant: fused GFL decode matrix (32, 8) = [group-sum | stride*bin] ----
_bins = np.arange(4 * REG_BINS)
_side = _bins >> REG_SHIFT
_sum_mat = (_side[:, None] == np.arange(4)[None, :]).astype(np.float32)          # (32, 4)
_w_mat = _sum_mat * (_bins & (REG_BINS - 1))[:, None].astype(np.float32) * float(STRIDE)
DECODE_MAT_NP = np.concatenate([_sum_mat, _w_mat], axis=1).astype(np.float32)    # (32, 8)


# ------------------------- the fused kernel -------------------------
def fused_kernel(x_ref, w1_ref, b1_ref, w2_ref, b2_ref, dm_ref, tbl_ref,
                 out_ref, sup_ref, *, height, width):
    f32 = jnp.float32

    # ---------------- synthetic jit_model head (bf16 MXU inputs, f32 accumulate) ----------------
    x = x_ref[...]                                                        # (BP, F) bf16
    h = jnp.dot(x, w1_ref[...], preferred_element_type=f32) + b1_ref[...]
    h = jnp.maximum(h, 0.0).astype(jnp.bfloat16)
    preds = jnp.dot(h, w2_ref[...], preferred_element_type=f32) + b2_ref[...]    # (BP, OUT) f32
    # columns were permuted in the wrapper: [0:32) dist logits, [32:36) class logits

    scores = jax.nn.sigmoid(preds[:, 4 * REG_BINS:])                      # (BP, C)

    # ---------------- GFL integral decode: one exp pass + ONE fused constant matmul ----------------
    dist = preds[:, :4 * REG_BINS]                                        # lane-0 aligned (BP, 32)
    dist = dist - jnp.max(dist, axis=-1, keepdims=True)                   # global-row max stabilization
    e = jnp.exp(dist)
    gs = jnp.dot(e, dm_ref[...], preferred_element_type=f32)              # (BP, 8)
    gsum = gs[:, 0:4]
    gwsum = gs[:, 4:8]                                                    # already scaled by STRIDE
    d = gwsum * pl.reciprocal(jnp.maximum(gsum, 1e-30), approx=True)      # distances (l,t,r,b)
    dl, dt, dr, db = d[:, 0:1], d[:, 1:2], d[:, 2:3], d[:, 3:4]

    # ---------------- center priors generated in-kernel ----------------
    row_i = lax.broadcasted_iota(jnp.int32, (BP, 1), 0)
    pt = row_i & (P - 1)
    cx = (pt & (WF - 1)).astype(f32) * float(STRIDE)
    cy = (pt >> WF_SHIFT).astype(f32) * float(STRIDE)

    x1 = cx - dl
    y1 = cy - dt
    x2 = cx + dr
    y2 = cy + db

    # ---------------- inverse warp from per-row VMEM parameter table (no select chains) ----------------
    tbl = tbl_ref[...]                                                    # (BP, 16) f32
    m00, m01, m02 = tbl[:, 0:1], tbl[:, 1:2], tbl[:, 2:3]
    m10, m11, m12 = tbl[:, 3:4], tbl[:, 4:5], tbl[:, 5:6]
    m20, m21, m22 = tbl[:, 6:7], tbl[:, 7:8], tbl[:, 8:9]

    def warp(px, py):
        den = m20 * px + m21 * py + m22
        den = jnp.where(jnp.abs(den) < 1e-8, 1e-8, den)   # projective-degeneracy guard
        inv = pl.reciprocal(den, approx=True)             # EUP slot, effectively free
        return (m00 * px + m01 * py + m02) * inv, (m10 * px + m11 * py + m12) * inv

    wx0, wy0 = warp(x1, y1)
    wx1, wy1 = warp(x2, y1)
    wx2, wy2 = warp(x1, y2)
    wx3, wy3 = warp(x2, y2)
    nx1 = jnp.minimum(jnp.minimum(wx0, wx1), jnp.minimum(wx2, wx3))
    nx2 = jnp.maximum(jnp.maximum(wx0, wx1), jnp.maximum(wx2, wx3))
    ny1 = jnp.minimum(jnp.minimum(wy0, wy1), jnp.minimum(wy2, wy3))
    ny2 = jnp.maximum(jnp.maximum(wy0, wy1), jnp.maximum(wy2, wy3))

    wf, hf = float(width), float(height)
    nx1 = jnp.clip(nx1, 0.0, wf)
    nx2 = jnp.clip(nx2, 0.0, wf)
    ny1 = jnp.clip(ny1, 0.0, hf)
    ny2 = jnp.clip(ny2, 0.0, hf)
    boxes = jnp.concatenate([nx1, ny1, nx2, ny2], axis=1)                 # (BP, 4)

    # ================= fused multiclass greedy NMS + per-image top-k compaction =================
    coord_scale = float(max(height, width)) + 1.0

    # --- candidate expansion, class-major layout: idx = class*BP + point ---
    cand_box = jnp.concatenate([boxes] * NUM_CLASSES, axis=0)             # (N, 4)
    cand_s = jnp.concatenate(
        [scores[:, c:c + 1] for c in range(NUM_CLASSES)], axis=0)         # (N, 1)
    cand_s = jnp.where(cand_s > CONF_THRESH, cand_s, 0.0)                 # confidence threshold

    cidx = lax.broadcasted_iota(jnp.int32, (N_CAND, 1), 0)
    label_c = (cidx >> BP_SHIFT).astype(f32)                              # class id
    img_c = ((cidx & (BP - 1)) >> P_SHIFT).astype(f32)                    # image id
    offs_c = (img_c * NUM_CLASSES + label_c) * coord_scale                # class+image separation offset

    payload = jnp.concatenate([cand_box, cand_s, label_c, img_c, offs_c], axis=1)   # (N, 8)

    # --- global descending-score rank (stable) -> permutation matmul sort on the MXU ---
    sub_i = lax.broadcasted_iota(jnp.int32, (N_CAND, N_CAND), 0)
    lane_i = lax.broadcasted_iota(jnp.int32, (N_CAND, N_CAND), 1)
    s_row = jnp.transpose(payload)[4:5, :]                                # (1, N)
    before = (cand_s > s_row) | ((cand_s == s_row) & (sub_i < lane_i))    # [j, i]: j precedes i
    rank_row = jnp.sum(before.astype(f32), axis=0, keepdims=True)         # (1, N) exact ints
    perm = (sub_i.astype(f32) == rank_row).astype(f32)                    # perm[r, i] = (rank[i] == r)
    srt = jnp.dot(perm, payload, preferred_element_type=f32)              # (N, 8) sorted, score desc
    srtT = jnp.transpose(srt)                                             # (8, N)

    # --- pairwise IoU on offset boxes; fold (j > i) and threshold; divide-free test ---
    ob_c = srt[:, 0:4] + srt[:, 7:8]
    ob_r = srtT[0:4, :] + srtT[7:8, :]
    x1c, y1c, x2c, y2c = ob_c[:, 0:1], ob_c[:, 1:2], ob_c[:, 2:3], ob_c[:, 3:4]
    x1r, y1r, x2r, y2r = ob_r[0:1, :], ob_r[1:2, :], ob_r[2:3, :], ob_r[3:4, :]
    iw = jnp.maximum(jnp.minimum(x2c, x2r) - jnp.maximum(x1c, x1r), 0.0)
    ih = jnp.maximum(jnp.minimum(y2c, y2r) - jnp.maximum(y1c, y1r), 0.0)
    inter = iw * ih
    area_c = jnp.maximum(x2c - x1c, 0.0) * jnp.maximum(y2c - y1c, 0.0)
    area_r = jnp.maximum(x2r - x1r, 0.0) * jnp.maximum(y2r - y1r, 0.0)
    union = area_c + area_r - inter
    sup_ref[...] = ((inter > IOU_THRESH * union) & (lane_i > sub_i)).astype(f32)

    # --- sequential greedy sweep over the VMEM suppression matrix ---
    score_row = srtT[4:5, :]
    keep0 = (score_row > 0.0).astype(f32)                                 # validity after threshold
    lane_1n = lax.broadcasted_iota(jnp.int32, (1, N_CAND), 1)

    def sweep(i, keep):
        row = sup_ref[pl.ds(i, 1), :]                                     # (1, N): who i suppresses
        keep_i = jnp.sum(jnp.where(lane_1n == i, keep, 0.0), axis=1, keepdims=True)
        return keep * (1.0 - row * keep_i)

    keep_row = lax.fori_loop(0, N_CAND, sweep, keep0)                     # (1, N)
    # column-oriented keep via select+lane-reduce (layout move, no narrow transpose)
    keep_col = jnp.sum(jnp.where(sub_i == lane_i, keep_row, 0.0), axis=1, keepdims=True)  # (N, 1)

    # --- per-image compaction rank (kept dets first, score desc) + output permutation matmul ---
    fs_col = srt[:, 4:5] * keep_col
    fs_row = score_row * keep_row
    img_col = srt[:, 6:7]
    img_row = srtT[6:7, :]
    same_img = jnp.abs(img_col - img_row) < 0.5
    before2 = same_img & ((fs_col > fs_row) | ((fs_col == fs_row) & (sub_i < lane_i)))
    outrank_row = jnp.sum(before2.astype(f32), axis=0, keepdims=True)     # (1, N) exact ints
    outpos_row = jnp.floor(img_row + 0.5) * float(OUT_STRIDE) + outrank_row

    sub_o = lax.broadcasted_iota(jnp.int32, (B * OUT_STRIDE, N_CAND), 0).astype(f32)
    perm2 = (jnp.abs(sub_o - outpos_row) < 0.5).astype(f32)               # (B*128, N)

    label_enc = jnp.where(fs_col > 0.0, srt[:, 5:6] + 1.0, 0.0)           # +1 so pad rows decode to -1
    out_payload = jnp.concatenate(
        [srt[:, 0:4], fs_col, label_enc, jnp.zeros((N_CAND, 2), f32)], axis=1)    # (N, 8)
    dets = jnp.dot(perm2, out_payload, preferred_element_type=f32)        # (B*128, 8)

    out_ref[...] = dets
    out_ref[:, 5:6] = jnp.floor(dets[:, 5:6] + 0.5) - 1.0                 # decode label (pad -> -1)


def run_fused(patches, w1, b1, w2, b2, dm, warp_tbl, height, width):
    kernel = functools.partial(fused_kernel, height=height, width=width)
    cost = pl.CostEstimate(flops=1_800_000, transcendentals=1_500, bytes_accessed=60_000)
    return pl.pallas_call(
        kernel,
        out_shape=jax.ShapeDtypeStruct((B * OUT_STRIDE, 8), jnp.float32),
        in_specs=[
            pl.BlockSpec(memory_space=pltpu.MemorySpace.VMEM),   # patches (BP, F) bf16
            pl.BlockSpec(memory_space=pltpu.MemorySpace.VMEM),   # w1 (F, HID) bf16
            pl.BlockSpec(memory_space=pltpu.MemorySpace.VMEM),   # b1 (1, HID) f32
            pl.BlockSpec(memory_space=pltpu.MemorySpace.VMEM),   # w2 (HID, OUT) bf16 (permuted)
            pl.BlockSpec(memory_space=pltpu.MemorySpace.VMEM),   # b2 (1, OUT) f32 (permuted)
            pl.BlockSpec(memory_space=pltpu.MemorySpace.VMEM),   # decode matrix (32, 8) f32
            pl.BlockSpec(memory_space=pltpu.MemorySpace.VMEM),   # warp row table (BP, 16) f32
        ],
        out_specs=pl.BlockSpec(memory_space=pltpu.MemorySpace.VMEM),
        scratch_shapes=[pltpu.VMEM((N_CAND, N_CAND), jnp.float32)],       # suppression matrix
        cost_estimate=cost,
    )(patches, w1, b1, w2, b2, dm, warp_tbl)


# ------------------------- full ScriptedPredictor.forward -------------------------
@functools.partial(jax.jit, static_argnames=("height", "width"))
def scripted_predictor_forward(x, height, width, warp_matrix, w1, b1, w2, b2):
    bsz = x.shape[0]
    assert bsz == B

    # patch extraction (stride-8 non-overlapping windows), flattened to (B*P, F);
    # cast to bf16 for the MXU (accumulation stays f32 in-kernel).
    patches = (x.reshape(bsz, CIN, HF, STRIDE, WF, STRIDE)
                 .transpose(0, 2, 4, 1, 3, 5)
                 .reshape(bsz * P, F)).astype(jnp.bfloat16)

    # permute head output columns: dist logits -> lanes 0..31, class logits -> 32..35
    w2p = jnp.concatenate([w2[:, NUM_CLASSES:], w2[:, :NUM_CLASSES]], axis=1).astype(jnp.bfloat16)
    b2p = jnp.concatenate([b2[:, NUM_CLASSES:], b2[:, :NUM_CLASSES]], axis=1)
    w1b = w1.astype(jnp.bfloat16)

    # per-row inverse-warp parameter table (BP, 16): cols 0..8 = m00..m22, rest zero
    invw = jnp.linalg.inv(warp_matrix).astype(jnp.float32).reshape(bsz, 9)
    warp_tbl = jnp.pad(jnp.repeat(invw, P, axis=0), ((0, 0), (0, 16 - 9)))

    dm = jnp.asarray(DECODE_MAT_NP)                                       # trace-time constant

    # fused jit_model + post_process (decode + warp + multiclass NMS + top-k) in ONE kernel
    out = run_fused(patches, w1b, b1, w2p, b2p, dm, warp_tbl, height, width)   # (B*128, 8)
    dets = out.reshape(bsz, OUT_STRIDE, 8)[:, :NMS_MAX_NUM, :6]
    return dets


# ------------------------- main -------------------------
if __name__ == "__main__":
    key = jax.random.PRNGKey(0)
    k_img, k_w1, k_w2 = jax.random.split(key, 3)

    x = jax.random.normal(k_img, (B, CIN, H, W), jnp.float32)       # NCHW like PyTorch
    w1 = jax.random.normal(k_w1, (F, HID), jnp.float32) * 0.05
    b1 = jnp.zeros((1, HID), jnp.float32)
    w2 = jax.random.normal(k_w2, (HID, OUT), jnp.float32) * 0.05
    b2 = jnp.zeros((1, OUT), jnp.float32)

    # original image size and its (scaling) warp matrix to the 32x32 network input
    height, width = 64, 64
    warp_single = jnp.array([[0.5, 0.0, 0.0],
                             [0.0, 0.5, 0.0],
                             [0.0, 0.0, 1.0]], jnp.float32)
    warp_matrix = jnp.tile(warp_single[None], (B, 1, 1))

    dets = scripted_predictor_forward(x, height, width, warp_matrix, w1, b1, w2, b2)
    jax.block_until_ready(dets)
    assert dets.shape == (B, NMS_MAX_NUM, 6)
    print("KERNEL_OK")
</pallas_src>

<mosaic_0001>
module attributes {stable_mosaic.version = 11 : i64} {
  func.func @fused_kernel(%arg0: memref<32x192xbf16, #tpu.memory_space<vmem>>, %arg1: memref<192x32xbf16, #tpu.memory_space<vmem>>, %arg2: memref<1x32xf32, #tpu.memory_space<vmem>>, %arg3: memref<32x36xbf16, #tpu.memory_space<vmem>>, %arg4: memref<1x36xf32, #tpu.memory_space<vmem>>, %arg5: memref<32x8xf32, #tpu.memory_space<vmem>>, %arg6: memref<32x16xf32, #tpu.memory_space<vmem>>, %arg7: memref<256x8xf32, #tpu.memory_space<vmem>>, %arg8: memref<128x128xf32, #tpu.memory_space<vmem>>) attributes {dimension_semantics = [], scalar_prefetch = 0 : i64, scratch_operands = 1 : i64, tpu.core_type = #tpu.core_type<tc>} {
    %c0 = arith.constant 0 : index
    %c0_0 = arith.constant 0 : index
    %0 = vector.load %arg0[%c0, %c0_0] : memref<32x192xbf16, #tpu.memory_space<vmem>>, vector<32x192xbf16>
    %c0_1 = arith.constant 0 : index
    %c0_2 = arith.constant 0 : index
    %1 = vector.load %arg1[%c0_1, %c0_2] : memref<192x32xbf16, #tpu.memory_space<vmem>>, vector<192x32xbf16>
    %cst = arith.constant dense<0.000000e+00> : vector<32x32xf32>
    %2 = tpu.matmul %0, %1, %cst {dimension_numbers = #tpu.dot_dimension_numbers<[1], [0], [0], [1], [0, 0, 1, 1], [], []>} : vector<32x192xbf16>, vector<192x32xbf16>, vector<32x32xf32> -> vector<32x32xf32>
    %c0_3 = arith.constant 0 : index
    %c0_4 = arith.constant 0 : index
    %3 = vector.load %arg2[%c0_3, %c0_4] : memref<1x32xf32, #tpu.memory_space<vmem>>, vector<1x32xf32>
    %4 = vector.broadcast %3 : vector<1x32xf32> to vector<32x32xf32>
    %5 = arith.addf %2, %4 : vector<32x32xf32>
    %cst_5 = arith.constant 0.000000e+00 : f32
    %6 = vector.broadcast %cst_5 : f32 to vector<32x32xf32>
    %7 = arith.maximumf %5, %6 : vector<32x32xf32>
    %8 = arith.truncf %7 : vector<32x32xf32> to vector<32x32xbf16>
    %c0_6 = arith.constant 0 : index
    %c0_7 = arith.constant 0 : index
    %9 = vector.load %arg3[%c0_6, %c0_7] : memref<32x36xbf16, #tpu.memory_space<vmem>>, vector<32x36xbf16>
    %cst_8 = arith.constant dense<0.000000e+00> : vector<32x36xf32>
    %10 = tpu.matmul %8, %9, %cst_8 {dimension_numbers = #tpu.dot_dimension_numbers<[1], [0], [0], [1], [0, 0, 1, 1], [], []>} : vector<32x32xbf16>, vector<32x36xbf16>, vector<32x36xf32> -> vector<32x36xf32>
    %c0_9 = arith.constant 0 : index
    %c0_10 = arith.constant 0 : index
    %11 = vector.load %arg4[%c0_9, %c0_10] : memref<1x36xf32, #tpu.memory_space<vmem>>, vector<1x36xf32>
    %12 = vector.broadcast %11 : vector<1x36xf32> to vector<32x36xf32>
    %13 = arith.addf %10, %12 : vector<32x36xf32>
    %14 = vector.extract_strided_slice %13 {offsets = [0, 32], sizes = [32, 4], strides = [1, 1]} : vector<32x36xf32> to vector<32x4xf32>
    %15 = arith.negf %14 : vector<32x4xf32>
    %16 = math.exp %15 : vector<32x4xf32>
    %cst_11 = arith.constant 1.000000e+00 : f32
    %17 = vector.broadcast %cst_11 : f32 to vector<32x4xf32>
    %18 = arith.addf %17, %16 : vector<32x4xf32>
    %19 = arith.divf %17, %18 : vector<32x4xf32>
    %20 = vector.extract_strided_slice %13 {offsets = [0, 0], sizes = [32, 32], strides = [1, 1]} : vector<32x36xf32> to vector<32x32xf32>
    %cst_12 = arith.constant dense<0xFF800000> : vector<32xf32>
    %21 = vector.multi_reduction <maximumf>, %20, %cst_12 [1] : vector<32x32xf32> to vector<32xf32>
    %22 = vector.shape_cast %21 : vector<32xf32> to vector<32x1xf32>
    %23 = vector.broadcast %22 : vector<32x1xf32> to vector<32x32xf32>
    %24 = arith.subf %20, %23 : vector<32x32xf32>
    %25 = math.exp %24 : vector<32x32xf32>
    %c0_13 = arith.constant 0 : index
    %c0_14 = arith.constant 0 : index
    %26 = vector.load %arg5[%c0_13, %c0_14] : memref<32x8xf32, #tpu.memory_space<vmem>>, vector<32x8xf32>
    %cst_15 = arith.constant dense<0.000000e+00> : vector<32x8xf32>
    %27 = tpu.matmul %25, %26, %cst_15 {dimension_numbers = #tpu.dot_dimension_numbers<[1], [0], [0], [1], [0, 0, 1, 1], [], []>} : vector<32x32xf32>, vector<32x8xf32>, vector<32x8xf32> -> vector<32x8xf32>
    %28 = vector.extract_strided_slice %27 {offsets = [0, 0], sizes = [32, 4], strides = [1, 1]} : vector<32x8xf32> to vector<32x4xf32>
    %29 = vector.extract_strided_slice %27 {offsets = [0, 4], sizes = [32, 4], strides = [1, 1]} : vector<32x8xf32> to vector<32x4xf32>
    %cst_16 = arith.constant 1.000000e-30 : f32
    %30 = vector.broadcast %cst_16 : f32 to vector<32x4xf32>
    %31 = arith.maximumf %28, %30 : vector<32x4xf32>
    %32 = tpu.reciprocal %31 {approx = true} : vector<32x4xf32> -> vector<32x4xf32>
    %33 = arith.mulf %29, %32 : vector<32x4xf32>
    %34 = vector.extract_strided_slice %33 {offsets = [0, 0], sizes = [32, 1], strides = [1, 1]} : vector<32x4xf32> to vector<32x1xf32>
    %35 = vector.extract_strided_slice %33 {offsets = [0, 1], sizes = [32, 1], strides = [1, 1]} : vector<32x4xf32> to vector<32x1xf32>
    %36 = vector.extract_strided_slice %33 {offsets = [0, 2], sizes = [32, 1], strides = [1, 1]} : vector<32x4xf32> to vector<32x1xf32>
    %37 = vector.extract_strided_slice %33 {offsets = [0, 3], sizes = [32, 1], strides = [1, 1]} : vector<32x4xf32> to vector<32x1xf32>
    %38 = tpu.iota {dimensions = array<i32: 0>} : vector<32x1xi32>
    %c15_i32 = arith.constant 15 : i32
    %39 = vector.broadcast %c15_i32 : i32 to vector<32x1xi32>
    %40 = arith.andi %38, %39 : vector<32x1xi32>
    %c3_i32 = arith.constant 3 : i32
    %41 = vector.broadcast %c3_i32 : i32 to vector<32x1xi32>
    %42 = arith.andi %40, %41 : vector<32x1xi32>
    %43 = arith.sitofp %42 : vector<32x1xi32> to vector<32x1xf32>
    %cst_17 = arith.constant 8.000000e+00 : f32
    %44 = vector.broadcast %cst_17 : f32 to vector<32x1xf32>
    %45 = arith.mulf %43, %44 : vector<32x1xf32>
    %c2_i32 = arith.constant 2 : i32
    %46 = vector.broadcast %c2_i32 : i32 to vector<32x1xi32>
    %47 = arith.shrsi %40, %46 : vector<32x1xi32>
    %48 = arith.sitofp %47 : vector<32x1xi32> to vector<32x1xf32>
    %cst_18 = arith.constant 8.000000e+00 : f32
    %49 = vector.broadcast %cst_18 : f32 to vector<32x1xf32>
    %50 = arith.mulf %48, %49 : vector<32x1xf32>
    %51 = arith.subf %45, %34 : vector<32x1xf32>
    %52 = arith.subf %50, %35 : vector<32x1xf32>
    %53 = arith.addf %45, %36 : vector<32x1xf32>
    %54 = arith.addf %50, %37 : vector<32x1xf32>
    %c0_19 = arith.constant 0 : index
    %c0_20 = arith.constant 0 : index
    %55 = vector.load %arg6[%c0_19, %c0_20] : memref<32x16xf32, #tpu.memory_space<vmem>>, vector<32x16xf32>
    %56 = vector.extract_strided_slice %55 {offsets = [0, 0], sizes = [32, 1], strides = [1, 1]} : vector<32x16xf32> to vector<32x1xf32>
    %57 = vector.extract_strided_slice %55 {offsets = [0, 1], sizes = [32, 1], strides = [1, 1]} : vector<32x16xf32> to vector<32x1xf32>
    %58 = vector.extract_strided_slice %55 {offsets = [0, 2], sizes = [32, 1], strides = [1, 1]} : vector<32x16xf32> to vector<32x1xf32>
    %59 = vector.extract_strided_slice %55 {offsets = [0, 3], sizes = [32, 1], strides = [1, 1]} : vector<32x16xf32> to vector<32x1xf32>
    %60 = vector.extract_strided_slice %55 {offsets = [0, 4], sizes = [32, 1], strides = [1, 1]} : vector<32x16xf32> to vector<32x1xf32>
    %61 = vector.extract_strided_slice %55 {offsets = [0, 5], sizes = [32, 1], strides = [1, 1]} : vector<32x16xf32> to vector<32x1xf32>
    %62 = vector.extract_strided_slice %55 {offsets = [0, 6], sizes = [32, 1], strides = [1, 1]} : vector<32x16xf32> to vector<32x1xf32>
    %63 = vector.extract_strided_slice %55 {offsets = [0, 7], sizes = [32, 1], strides = [1, 1]} : vector<32x16xf32> to vector<32x1xf32>
    %64 = vector.extract_strided_slice %55 {offsets = [0, 8], sizes = [32, 1], strides = [1, 1]} : vector<32x16xf32> to vector<32x1xf32>
    %65 = arith.mulf %62, %51 : vector<32x1xf32>
    %66 = arith.mulf %63, %52 : vector<32x1xf32>
    %67 = arith.addf %65, %66 : vector<32x1xf32>
    %68 = arith.addf %67, %64 : vector<32x1xf32>
    %69 = math.absf %68 : vector<32x1xf32>
    %cst_21 = arith.constant 9.99999993E-9 : f32
    %70 = vector.broadcast %cst_21 : f32 to vector<32x1xf32>
    %71 = arith.cmpf olt, %69, %70 : vector<32x1xf32>
    %cst_22 = arith.constant 9.99999993E-9 : f32
    %72 = vector.broadcast %cst_22 : f32 to vector<32x1xf32>
    %73 = arith.select %71, %72, %68 : vector<32x1xi1>, vector<32x1xf32>
    %74 = tpu.reciprocal %73 {approx = true} : vector<32x1xf32> -> vector<32x1xf32>
    %75 = arith.mulf %56, %51 : vector<32x1xf32>
    %76 = arith.mulf %57, %52 : vector<32x1xf32>
    %77 = arith.addf %75, %76 : vector<32x1xf32>
    %78 = arith.addf %77, %58 : vector<32x1xf32>
    %79 = arith.mulf %78, %74 : vector<32x1xf32>
    %80 = arith.mulf %59, %51 : vector<32x1xf32>
    %81 = arith.mulf %60, %52 : vector<32x1xf32>
    %82 = arith.addf %80, %81 : vector<32x1xf32>
    %83 = arith.addf %82, %61 : vector<32x1xf32>
    %84 = arith.mulf %83, %74 : vector<32x1xf32>
    %85 = arith.mulf %62, %53 : vector<32x1xf32>
    %86 = arith.mulf %63, %52 : vector<32x1xf32>
    %87 = arith.addf %85, %86 : vector<32x1xf32>
    %88 = arith.addf %87, %64 : vector<32x1xf32>
    %89 = math.absf %88 : vector<32x1xf32>
    %cst_23 = arith.constant 9.99999993E-9 : f32
    %90 = vector.broadcast %cst_23 : f32 to vector<32x1xf32>
    %91 = arith.cmpf olt, %89, %90 : vector<32x1xf32>
    %cst_24 = arith.constant 9.99999993E-9 : f32
    %92 = vector.broadcast %cst_24 : f32 to vector<32x1xf32>
    %93 = arith.select %91, %92, %88 : vector<32x1xi1>, vector<32x1xf32>
    %94 = tpu.reciprocal %93 {approx = true} : vector<32x1xf32> -> vector<32x1xf32>
    %95 = arith.mulf %56, %53 : vector<32x1xf32>
    %96 = arith.mulf %57, %52 : vector<32x1xf32>
    %97 = arith.addf %95, %96 : vector<32x1xf32>
    %98 = arith.addf %97, %58 : vector<32x1xf32>
    %99 = arith.mulf %98, %94 : vector<32x1xf32>
    %100 = arith.mulf %59, %53 : vector<32x1xf32>
    %101 = arith.mulf %60, %52 : vector<32x1xf32>
    %102 = arith.addf %100, %101 : vector<32x1xf32>
    %103 = arith.addf %102, %61 : vector<32x1xf32>
    %104 = arith.mulf %103, %94 : vector<32x1xf32>
    %105 = arith.mulf %62, %51 : vector<32x1xf32>
    %106 = arith.mulf %63, %54 : vector<32x1xf32>
    %107 = arith.addf %105, %106 : vector<32x1xf32>
    %108 = arith.addf %107, %64 : vector<32x1xf32>
    %109 = math.absf %108 : vector<32x1xf32>
    %cst_25 = arith.constant 9.99999993E-9 : f32
    %110 = vector.broadcast %cst_25 : f32 to vector<32x1xf32>
    %111 = arith.cmpf olt, %109, %110 : vector<32x1xf32>
    %cst_26 = arith.constant 9.99999993E-9 : f32
    %112 = vector.broadcast %cst_26 : f32 to vector<32x1xf32>
    %113 = arith.select %111, %112, %108 : vector<32x1xi1>, vector<32x1xf32>
    %114 = tpu.reciprocal %113 {approx = true} : vector<32x1xf32> -> vector<32x1xf32>
    %115 = arith.mulf %56, %51 : vector<32x1xf32>
    %116 = arith.mulf %57, %54 : vector<32x1xf32>
    %117 = arith.addf %115, %116 : vector<32x1xf32>
    %118 = arith.addf %117, %58 : vector<32x1xf32>
    %119 = arith.mulf %118, %114 : vector<32x1xf32>
    %120 = arith.mulf %59, %51 : vector<32x1xf32>
    %121 = arith.mulf %60, %54 : vector<32x1xf32>
    %122 = arith.addf %120, %121 : vector<32x1xf32>
    %123 = arith.addf %122, %61 : vector<32x1xf32>
    %124 = arith.mulf %123, %114 : vector<32x1xf32>
    %125 = arith.mulf %62, %53 : vector<32x1xf32>
    %126 = arith.mulf %63, %54 : vector<32x1xf32>
    %127 = arith.addf %125, %126 : vector<32x1xf32>
    %128 = arith.addf %127, %64 : vector<32x1xf32>
    %129 = math.absf %128 : vector<32x1xf32>
    %cst_27 = arith.constant 9.99999993E-9 : f32
    %130 = vector.broadcast %cst_27 : f32 to vector<32x1xf32>
    %131 = arith.cmpf olt, %129, %130 : vector<32x1xf32>
    %cst_28 = arith.constant 9.99999993E-9 : f32
    %132 = vector.broadcast %cst_28 : f32 to vector<32x1xf32>
    %133 = arith.select %131, %132, %128 : vector<32x1xi1>, vector<32x1xf32>
    %134 = tpu.reciprocal %133 {approx = true} : vector<32x1xf32> -> vector<32x1xf32>
    %135 = arith.mulf %56, %53 : vector<32x1xf32>
    %136 = arith.mulf %57, %54 : vector<32x1xf32>
    %137 = arith.addf %135, %136 : vector<32x1xf32>
    %138 = arith.addf %137, %58 : vector<32x1xf32>
    %139 = arith.mulf %138, %134 : vector<32x1xf32>
    %140 = arith.mulf %59, %53 : vector<32x1xf32>
    %141 = arith.mulf %60, %54 : vector<32x1xf32>
    %142 = arith.addf %140, %141 : vector<32x1xf32>
    %143 = arith.addf %142, %61 : vector<32x1xf32>
    %144 = arith.mulf %143, %134 : vector<32x1xf32>
    %145 = arith.minimumf %79, %99 : vector<32x1xf32>
    %146 = arith.minimumf %119, %139 : vector<32x1xf32>
    %147 = arith.minimumf %145, %146 : vector<32x1xf32>
    %148 = arith.maximumf %79, %99 : vector<32x1xf32>
    %149 = arith.maximumf %119, %139 : vector<32x1xf32>
    %150 = arith.maximumf %148, %149 : vector<32x1xf32>
    %151 = arith.minimumf %84, %104 : vector<32x1xf32>
    %152 = arith.minimumf %124, %144 : vector<32x1xf32>
    %153 = arith.minimumf %151, %152 : vector<32x1xf32>
    %154 = arith.maximumf %84, %104 : vector<32x1xf32>
    %155 = arith.maximumf %124, %144 : vector<32x1xf32>
    %156 = arith.maximumf %154, %155 : vector<32x1xf32>
    %cst_29 = arith.constant 0.000000e+00 : f32
    %cst_30 = arith.constant 6.400000e+01 : f32
    %157 = vector.broadcast %cst_29 : f32 to vector<32x1xf32>
    %158 = arith.maximumf %157, %147 : vector<32x1xf32>
    %159 = vector.broadcast %cst_30 : f32 to vector<32x1xf32>
    %160 = arith.minimumf %159, %158 : vector<32x1xf32>
    %cst_31 = arith.constant 0.000000e+00 : f32
    %cst_32 = arith.constant 6.400000e+01 : f32
    %161 = vector.broadcast %cst_31 : f32 to vector<32x1xf32>
    %162 = arith.maximumf %161, %150 : vector<32x1xf32>
    %163 = vector.broadcast %cst_32 : f32 to vector<32x1xf32>
    %164 = arith.minimumf %163, %162 : vector<32x1xf32>
    %cst_33 = arith.constant 0.000000e+00 : f32
    %cst_34 = arith.constant 6.400000e+01 : f32
    %165 = vector.broadcast %cst_33 : f32 to vector<32x1xf32>
    %166 = arith.maximumf %165, %153 : vector<32x1xf32>
    %167 = vector.broadcast %cst_34 : f32 to vector<32x1xf32>
    %168 = arith.minimumf %167, %166 : vector<32x1xf32>
    %cst_35 = arith.constant 0.000000e+00 : f32
    %cst_36 = arith.constant 6.400000e+01 : f32
    %169 = vector.broadcast %cst_35 : f32 to vector<32x1xf32>
    %170 = arith.maximumf %169, %156 : vector<32x1xf32>
    %171 = vector.broadcast %cst_36 : f32 to vector<32x1xf32>
    %172 = arith.minimumf %171, %170 : vector<32x1xf32>
    %173 = tpu.concatenate %160, %168, %164, %172 in 1 : vector<32x1xf32>, vector<32x1xf32>, vector<32x1xf32>, vector<32x1xf32> -> vector<32x4xf32>
    %174 = tpu.concatenate %173, %173, %173, %173 in 0 : vector<32x4xf32>, vector<32x4xf32>, vector<32x4xf32>, vector<32x4xf32> -> vector<128x4xf32>
    %175 = vector.extract_strided_slice %19 {offsets = [0, 0], sizes = [32, 1], strides = [1, 1]} : vector<32x4xf32> to vector<32x1xf32>
    %176 = vector.extract_strided_slice %19 {offsets = [0, 1], sizes = [32, 1], strides = [1, 1]} : vector<32x4xf32> to vector<32x1xf32>
    %177 = vector.extract_strided_slice %19 {offsets = [0, 2], sizes = [32, 1], strides = [1, 1]} : vector<32x4xf32> to vector<32x1xf32>
    %178 = vector.extract_strided_slice %19 {offsets = [0, 3], sizes = [32, 1], strides = [1, 1]} : vector<32x4xf32> to vector<32x1xf32>
    %179 = tpu.concatenate %175, %176, %177, %178 in 0 : vector<32x1xf32>, vector<32x1xf32>, vector<32x1xf32>, vector<32x1xf32> -> vector<128x1xf32>
    %cst_37 = arith.constant 3.500000e-01 : f32
    %180 = vector.broadcast %cst_37 : f32 to vector<128x1xf32>
    %181 = arith.cmpf ogt, %179, %180 : vector<128x1xf32>
    %cst_38 = arith.constant 0.000000e+00 : f32
    %182 = vector.broadcast %cst_38 : f32 to vector<128x1xf32>
    %183 = arith.select %181, %179, %182 : vector<128x1xi1>, vector<128x1xf32>
    %184 = tpu.iota {dimensions = array<i32: 0>} : vector<128x1xi32>
    %c5_i32 = arith.constant 5 : i32
    %185 = vector.broadcast %c5_i32 : i32 to vector<128x1xi32>
    %186 = arith.shrsi %184, %185 : vector<128x1xi32>
    %187 = arith.sitofp %186 : vector<128x1xi32> to vector<128x1xf32>
    %c31_i32 = arith.constant 31 : i32
    %188 = vector.broadcast %c31_i32 : i32 to vector<128x1xi32>
    %189 = arith.andi %184, %188 : vector<128x1xi32>
    %c4_i32 = arith.constant 4 : i32
    %190 = vector.broadcast %c4_i32 : i32 to vector<128x1xi32>
    %191 = arith.shrsi %189, %190 : vector<128x1xi32>
    %192 = arith.sitofp %191 : vector<128x1xi32> to vector<128x1xf32>
    %cst_39 = arith.constant 4.000000e+00 : f32
    %193 = vector.broadcast %cst_39 : f32 to vector<128x1xf32>
    %194 = arith.mulf %192, %193 : vector<128x1xf32>
    %195 = arith.addf %194, %187 : vector<128x1xf32>
    %cst_40 = arith.constant 6.500000e+01 : f32
    %196 = vector.broadcast %cst_40 : f32 to vector<128x1xf32>
    %197 = arith.mulf %195, %196 : vector<128x1xf32>
    %198 = tpu.concatenate %174, %183, %187, %192, %197 in 1 : vector<128x4xf32>, vector<128x1xf32>, vector<128x1xf32>, vector<128x1xf32>, vector<128x1xf32> -> vector<128x8xf32>
    %199 = tpu.iota {dimensions = array<i32: 0>} : vector<128x128xi32>
    %200 = tpu.iota {dimensions = array<i32: 1>} : vector<128x128xi32>
    %201 = tpu.transpose %198, [1, 0] : vector<128x8xf32> -> vector<8x128xf32>
    %202 = vector.extract_strided_slice %201 {offsets = [4, 0], sizes = [1, 128], strides = [1, 1]} : vector<8x128xf32> to vector<1x128xf32>
    %203 = vector.broadcast %183 : vector<128x1xf32> to vector<128x128xf32>
    %204 = vector.broadcast %202 : vector<1x128xf32> to vector<128x128xf32>
    %205 = arith.cmpf ogt, %203, %204 : vector<128x128xf32>
    %206 = vector.broadcast %183 : vector<128x1xf32> to vector<128x128xf32>
    %207 = vector.broadcast %202 : vector<1x128xf32> to vector<128x128xf32>
    %208 = arith.cmpf oeq, %206, %207 : vector<128x128xf32>
    %209 = arith.cmpi slt, %199, %200 : vector<128x128xi32>
    %210 = arith.andi %208, %209 : vector<128x128xi1>
    %211 = arith.ori %205, %210 : vector<128x128xi1>
    %212 = arith.extui %211 : vector<128x128xi1> to vector<128x128xi32>
    %213 = arith.sitofp %212 : vector<128x128xi32> to vector<128x128xf32>
    %cst_41 = arith.constant dense<0.000000e+00> : vector<128xf32>
    %214 = vector.multi_reduction <add>, %213, %cst_41 [0] : vector<128x128xf32> to vector<128xf32>
    %215 = vector.shape_cast %214 : vector<128xf32> to vector<1x128xf32>
    %216 = arith.sitofp %199 : vector<128x128xi32> to vector<128x128xf32>
    %217 = vector.broadcast %215 : vector<1x128xf32> to vector<128x128xf32>
    %218 = arith.cmpf oeq, %216, %217 : vector<128x128xf32>
    %219 = arith.extui %218 : vector<128x128xi1> to vector<128x128xi32>
    %220 = arith.sitofp %219 : vector<128x128xi32> to vector<128x128xf32>
    %cst_42 = arith.constant dense<0.000000e+00> : vector<128x8xf32>
    %221 = tpu.matmul %220, %198, %cst_42 {dimension_numbers = #tpu.dot_dimension_numbers<[1], [0], [0], [1], [0, 0, 1, 1], [], []>} : vector<128x128xf32>, vector<128x8xf32>, vector<128x8xf32> -> vector<128x8xf32>
    %222 = tpu.transpose %221, [1, 0] : vector<128x8xf32> -> vector<8x128xf32>
    %223 = vector.extract_strided_slice %221 {offsets = [0, 0], sizes = [128, 4], strides = [1, 1]} : vector<128x8xf32> to vector<128x4xf32>
    %224 = vector.extract_strided_slice %221 {offsets = [0, 7], sizes = [128, 1], strides = [1, 1]} : vector<128x8xf32> to vector<128x1xf32>
    %225 = vector.broadcast %224 : vector<128x1xf32> to vector<128x4xf32>
    %226 = arith.addf %223, %225 : vector<128x4xf32>
    %227 = vector.extract_strided_slice %222 {offsets = [0, 0], sizes = [4, 128], strides = [1, 1]} : vector<8x128xf32> to vector<4x128xf32>
    %228 = vector.extract_strided_slice %222 {offsets = [7, 0], sizes = [1, 128], strides = [1, 1]} : vector<8x128xf32> to vector<1x128xf32>
    %229 = vector.broadcast %228 : vector<1x128xf32> to vector<4x128xf32>
    %230 = arith.addf %227, %229 : vector<4x128xf32>
    %231 = vector.extract_strided_slice %226 {offsets = [0, 0], sizes = [128, 1], strides = [1, 1]} : vector<128x4xf32> to vector<128x1xf32>
    %232 = vector.extract_strided_slice %226 {offsets = [0, 1], sizes = [128, 1], strides = [1, 1]} : vector<128x4xf32> to vector<128x1xf32>
    %233 = vector.extract_strided_slice %226 {offsets = [0, 2], sizes = [128, 1], strides = [1, 1]} : vector<128x4xf32> to vector<128x1xf32>
    %234 = vector.extract_strided_slice %226 {offsets = [0, 3], sizes = [128, 1], strides = [1, 1]} : vector<128x4xf32> to vector<128x1xf32>
    %235 = vector.extract_strided_slice %230 {offsets = [0, 0], sizes = [1, 128], strides = [1, 1]} : vector<4x128xf32> to vector<1x128xf32>
    %236 = vector.extract_strided_slice %230 {offsets = [1, 0], sizes = [1, 128], strides = [1, 1]} : vector<4x128xf32> to vector<1x128xf32>
    %237 = vector.extract_strided_slice %230 {offsets = [2, 0], sizes = [1, 128], strides = [1, 1]} : vector<4x128xf32> to vector<1x128xf32>
    %238 = vector.extract_strided_slice %230 {offsets = [3, 0], sizes = [1, 128], strides = [1, 1]} : vector<4x128xf32> to vector<1x128xf32>
    %239 = vector.broadcast %233 : vector<128x1xf32> to vector<128x128xf32>
    %240 = vector.broadcast %237 : vector<1x128xf32> to vector<128x128xf32>
    %241 = arith.minimumf %239, %240 : vector<128x128xf32>
    %242 = vector.broadcast %231 : vector<128x1xf32> to vector<128x128xf32>
    %243 = vector.broadcast %235 : vector<1x128xf32> to vector<128x128xf32>
    %244 = arith.maximumf %242, %243 : vector<128x128xf32>
    %245 = arith.subf %241, %244 : vector<128x128xf32>
    %cst_43 = arith.constant 0.000000e+00 : f32
    %246 = vector.broadcast %cst_43 : f32 to vector<128x128xf32>
    %247 = arith.maximumf %245, %246 : vector<128x128xf32>
    %248 = vector.broadcast %234 : vector<128x1xf32> to vector<128x128xf32>
    %249 = vector.broadcast %238 : vector<1x128xf32> to vector<128x128xf32>
    %250 = arith.minimumf %248, %249 : vector<128x128xf32>
    %251 = vector.broadcast %232 : vector<128x1xf32> to vector<128x128xf32>
    %252 = vector.broadcast %236 : vector<1x128xf32> to vector<128x128xf32>
    %253 = arith.maximumf %251, %252 : vector<128x128xf32>
    %254 = arith.subf %250, %253 : vector<128x128xf32>
    %cst_44 = arith.constant 0.000000e+00 : f32
    %255 = vector.broadcast %cst_44 : f32 to vector<128x128xf32>
    %256 = arith.maximumf %254, %255 : vector<128x128xf32>
    %257 = arith.mulf %247, %256 : vector<128x128xf32>
    %258 = arith.subf %233, %231 : vector<128x1xf32>
    %cst_45 = arith.constant 0.000000e+00 : f32
    %259 = vector.broadcast %cst_45 : f32 to vector<128x1xf32>
    %260 = arith.maximumf %258, %259 : vector<128x1xf32>
    %261 = arith.subf %234, %232 : vector<128x1xf32>
    %cst_46 = arith.constant 0.000000e+00 : f32
    %262 = vector.broadcast %cst_46 : f32 to vector<128x1xf32>
    %263 = arith.maximumf %261, %262 : vector<128x1xf32>
    %264 = arith.mulf %260, %263 : vector<128x1xf32>
    %265 = arith.subf %237, %235 : vector<1x128xf32>
    %cst_47 = arith.constant 0.000000e+00 : f32
    %266 = vector.broadcast %cst_47 : f32 to vector<1x128xf32>
    %267 = arith.maximumf %265, %266 : vector<1x128xf32>
    %268 = arith.subf %238, %236 : vector<1x128xf32>
    %cst_48 = arith.constant 0.000000e+00 : f32
    %269 = vector.broadcast %cst_48 : f32 to vector<1x128xf32>
    %270 = arith.maximumf %268, %269 : vector<1x128xf32>
    %271 = arith.mulf %267, %270 : vector<1x128xf32>
    %272 = vector.broadcast %264 : vector<128x1xf32> to vector<128x128xf32>
    %273 = vector.broadcast %271 : vector<1x128xf32> to vector<128x128xf32>
    %274 = arith.addf %272, %273 : vector<128x128xf32>
    %275 = arith.subf %274, %257 : vector<128x128xf32>
    %cst_49 = arith.constant 6.000000e-01 : f32
    %276 = vector.broadcast %cst_49 : f32 to vector<128x128xf32>
    %277 = arith.mulf %276, %275 : vector<128x128xf32>
    %278 = arith.cmpf ogt, %257, %277 : vector<128x128xf32>
    %279 = arith.cmpi sgt, %200, %199 : vector<128x128xi32>
    %280 = arith.andi %278, %279 : vector<128x128xi1>
    %281 = arith.extui %280 : vector<128x128xi1> to vector<128x128xi32>
    %282 = arith.sitofp %281 : vector<128x128xi32> to vector<128x128xf32>
    %c0_50 = arith.constant 0 : index
    %c0_51 = arith.constant 0 : index
    %283 = vector.load %arg8[%c0_50, %c0_51] : memref<128x128xf32, #tpu.memory_space<vmem>>, vector<128x128xf32>
    tpu.vector_store %arg8[%c0_50, %c0_51], %282 {strides = array<i32>} : memref<128x128xf32, #tpu.memory_space<vmem>>, vector<128x128xf32>,
    %284 = vector.extract_strided_slice %222 {offsets = [4, 0], sizes = [1, 128], strides = [1, 1]} : vector<8x128xf32> to vector<1x128xf32>
    %cst_52 = arith.constant 0.000000e+00 : f32
    %285 = vector.broadcast %cst_52 : f32 to vector<1x128xf32>
    %286 = arith.cmpf ogt, %284, %285 : vector<1x128xf32>
    %287 = arith.extui %286 : vector<1x128xi1> to vector<1x128xi32>
    %288 = arith.sitofp %287 : vector<1x128xi32> to vector<1x128xf32>
    %289 = tpu.iota {dimensions = array<i32: 1>} : vector<1x128xi32>
    %c0_i32 = arith.constant 0 : i32
    %c128_i32 = arith.constant 128 : i32
    %290 = arith.addi %c0_i32, %c128_i32 : i32
    %c1_i32 = arith.constant 1 : i32
    %291 = scf.for %arg9 = %c0_i32 to %290 step %c1_i32 iter_args(%arg10 = %288) -> (vector<1x128xf32>)  : i32 {
      %358 = arith.index_cast %arg9 : i32 to index
      %c0_71 = arith.constant 0 : index
      %359 = vector.load %arg8[%358, %c0_71] : memref<128x128xf32, #tpu.memory_space<vmem>>, vector<1x128xf32>
      %360 = vector.broadcast %arg9 : i32 to vector<1x128xi32>
      %361 = arith.cmpi eq, %289, %360 : vector<1x128xi32>
      %cst_72 = arith.constant 0.000000e+00 : f32
      %362 = vector.broadcast %cst_72 : f32 to vector<1x128xf32>
      %363 = arith.select %361, %arg10, %362 : vector<1x128xi1>, vector<1x128xf32>
      %cst_73 = arith.constant dense<0.000000e+00> : vector<1xf32>
      %364 = vector.multi_reduction <add>, %363, %cst_73 [1] : vector<1x128xf32> to vector<1xf32>
      %365 = vector.shape_cast %364 : vector<1xf32> to vector<1x1xf32>
      %366 = vector.broadcast %365 : vector<1x1xf32> to vector<1x128xf32>
      %367 = arith.mulf %359, %366 : vector<1x128xf32>
      %cst_74 = arith.constant 1.000000e+00 : f32
      %368 = vector.broadcast %cst_74 : f32 to vector<1x128xf32>
      %369 = arith.subf %368, %367 : vector<1x128xf32>
      %370 = arith.mulf %arg10, %369 : vector<1x128xf32>
      scf.yield %370 : vector<1x128xf32>
    }
    %c128_i32_53 = arith.constant 128 : i32
    %292 = arith.cmpi eq, %199, %200 : vector<128x128xi32>
    %cst_54 = arith.constant 0.000000e+00 : f32
    %293 = vector.shape_cast %291 : vector<1x128xf32> to vector<1x128xf32>
    %294 = vector.broadcast %293 : vector<1x128xf32> to vector<128x128xf32>
    %295 = vector.broadcast %cst_54 : f32 to vector<128x128xf32>
    %296 = arith.select %292, %294, %295 : vector<128x128xi1>, vector<128x128xf32>
    %cst_55 = arith.constant dense<0.000000e+00> : vector<128xf32>
    %297 = vector.multi_reduction <add>, %296, %cst_55 [1] : vector<128x128xf32> to vector<128xf32>
    %298 = vector.shape_cast %297 : vector<128xf32> to vector<128x1xf32>
    %299 = vector.extract_strided_slice %221 {offsets = [0, 4], sizes = [128, 1], strides = [1, 1]} : vector<128x8xf32> to vector<128x1xf32>
    %300 = arith.mulf %299, %298 : vector<128x1xf32>
    %301 = arith.mulf %284, %291 : vector<1x128xf32>
    %302 = vector.extract_strided_slice %221 {offsets = [0, 6], sizes = [128, 1], strides = [1, 1]} : vector<128x8xf32> to vector<128x1xf32>
    %303 = vector.extract_strided_slice %222 {offsets = [6, 0], sizes = [1, 128], strides = [1, 1]} : vector<8x128xf32> to vector<1x128xf32>
    %304 = vector.broadcast %302 : vector<128x1xf32> to vector<128x128xf32>
    %305 = vector.broadcast %303 : vector<1x128xf32> to vector<128x128xf32>
    %306 = arith.subf %304, %305 : vector<128x128xf32>
    %307 = math.absf %306 : vector<128x128xf32>
    %cst_56 = arith.constant 5.000000e-01 : f32
    %308 = vector.broadcast %cst_56 : f32 to vector<128x128xf32>
    %309 = arith.cmpf olt, %307, %308 : vector<128x128xf32>
    %310 = vector.broadcast %300 : vector<128x1xf32> to vector<128x128xf32>
    %311 = vector.broadcast %301 : vector<1x128xf32> to vector<128x128xf32>
    %312 = arith.cmpf ogt, %310, %311 : vector<128x128xf32>
    %313 = vector.broadcast %300 : vector<128x1xf32> to vector<128x128xf32>
    %314 = vector.broadcast %301 : vector<1x128xf32> to vector<128x128xf32>
    %315 = arith.cmpf oeq, %313, %314 : vector<128x128xf32>
    %316 = arith.cmpi slt, %199, %200 : vector<128x128xi32>
    %317 = arith.andi %315, %316 : vector<128x128xi1>
    %318 = arith.ori %312, %317 : vector<128x128xi1>
    %319 = arith.andi %309, %318 : vector<128x128xi1>
    %320 = arith.extui %319 : vector<128x128xi1> to vector<128x128xi32>
    %321 = arith.sitofp %320 : vector<128x128xi32> to vector<128x128xf32>
    %cst_57 = arith.constant dense<0.000000e+00> : vector<128xf32>
    %322 = vector.multi_reduction <add>, %321, %cst_57 [0] : vector<128x128xf32> to vector<128xf32>
    %323 = vector.shape_cast %322 : vector<128xf32> to vector<1x128xf32>
    %cst_58 = arith.constant 5.000000e-01 : f32
    %324 = vector.broadcast %cst_58 : f32 to vector<1x128xf32>
    %325 = arith.addf %303, %324 : vector<1x128xf32>
    %326 = math.floor %325 : vector<1x128xf32>
    %cst_59 = arith.constant 1.280000e+02 : f32
    %327 = vector.broadcast %cst_59 : f32 to vector<1x128xf32>
    %328 = arith.mulf %326, %327 : vector<1x128xf32>
    %329 = arith.addf %328, %323 : vector<1x128xf32>
    %330 = tpu.iota {dimensions = array<i32: 0>} : vector<256x128xi32>
    %331 = arith.sitofp %330 : vector<256x128xi32> to vector<256x128xf32>
    %332 = vector.broadcast %329 : vector<1x128xf32> to vector<256x128xf32>
    %333 = arith.subf %331, %332 : vector<256x128xf32>
    %334 = math.absf %333 : vector<256x128xf32>
    %cst_60 = arith.constant 5.000000e-01 : f32
    %335 = vector.broadcast %cst_60 : f32 to vector<256x128xf32>
    %336 = arith.cmpf olt, %334, %335 : vector<256x128xf32>
    %337 = arith.extui %336 : vector<256x128xi1> to vector<256x128xi32>
    %338 = arith.sitofp %337 : vector<256x128xi32> to vector<256x128xf32>
    %cst_61 = arith.constant 0.000000e+00 : f32
    %339 = vector.broadcast %cst_61 : f32 to vector<128x1xf32>
    %340 = arith.cmpf ogt, %300, %339 : vector<128x1xf32>
    %341 = vector.extract_strided_slice %221 {offsets = [0, 5], sizes = [128, 1], strides = [1, 1]} : vector<128x8xf32> to vector<128x1xf32>
    %cst_62 = arith.constant 1.000000e+00 : f32
    %342 = vector.broadcast %cst_62 : f32 to vector<128x1xf32>
    %343 = arith.addf %341, %342 : vector<128x1xf32>
    %cst_63 = arith.constant 0.000000e+00 : f32
    %344 = vector.broadcast %cst_63 : f32 to vector<128x1xf32>
    %345 = arith.select %340, %343, %344 : vector<128x1xi1>, vector<128x1xf32>
    %346 = vector.extract_strided_slice %221 {offsets = [0, 0], sizes = [128, 4], strides = [1, 1]} : vector<128x8xf32> to vector<128x4xf32>
    %cst_64 = arith.constant 0.000000e+00 : f32
    %347 = vector.broadcast %cst_64 : f32 to vector<128x2xf32>
    %348 = tpu.concatenate %346, %300, %345, %347 in 1 : vector<128x4xf32>, vector<128x1xf32>, vector<128x1xf32>, vector<128x2xf32> -> vector<128x8xf32>
    %cst_65 = arith.constant dense<0.000000e+00> : vector<256x8xf32>
    %349 = tpu.matmul %338, %348, %cst_65 {dimension_numbers = #tpu.dot_dimension_numbers<[1], [0], [0], [1], [0, 0, 1, 1], [], []>} : vector<256x128xf32>, vector<128x8xf32>, vector<256x8xf32> -> vector<256x8xf32>
    %c0_66 = arith.constant 0 : index
    %c0_67 = arith.constant 0 : index
    %350 = vector.load %arg7[%c0_66, %c0_67] : memref<256x8xf32, #tpu.memory_space<vmem>>, vector<256x8xf32>
    tpu.vector_store %arg7[%c0_66, %c0_67], %349 {strides = array<i32>} : memref<256x8xf32, #tpu.memory_space<vmem>>, vector<256x8xf32>,
    %351 = vector.extract_strided_slice %349 {offsets = [0, 5], sizes = [256, 1], strides = [1, 1]} : vector<256x8xf32> to vector<256x1xf32>
    %cst_68 = arith.constant 5.000000e-01 : f32
    %352 = vector.broadcast %cst_68 : f32 to vector<256x1xf32>
    %353 = arith.addf %351, %352 : vector<256x1xf32>
    %354 = math.floor %353 : vector<256x1xf32>
    %cst_69 = arith.constant 1.000000e+00 : f32
    %355 = vector.broadcast %cst_69 : f32 to vector<256x1xf32>
    %356 = arith.subf %354, %355 : vector<256x1xf32>
    %c0_70 = arith.constant 0 : index
    %c5 = arith.constant 5 : index
    %357 = vector.load %arg7[%c0_70, %c5] : memref<256x8xf32, #tpu.memory_space<vmem>>, vector<256x1xf32>
    tpu.vector_store %arg7[%c0_70, %c5], %356 {strides = array<i32>} : memref<256x8xf32, #tpu.memory_space<vmem>>, vector<256x1xf32>,
    return
  }
}

</mosaic_0001>

<llo_original>
// kernel: custom-call.11
$region0: #{custom-call.11}
  %s0 = inlined_call_operand.vmem [shape: f32[2,3,3], index: 0, kind: input, shape index: {}]
  %s1 = inlined_call_operand.vmem [shape: f32[2,3,3], index: 1, kind: output, shape index: {0}]
  %s2 = inlined_call_operand.hbm [shape: s32[2,3], index: 2, kind: output, shape index: {1}]
  %s3 = inlined_call_operand.vmem [shape: s32[2,3], index: 3, kind: output, shape index: {2}]
  %4 = xla_tuple %s1, %s2, %s3
  $region1: #{custom-call.11} parent=0
    #allocation0 [shape = 'u8[4096]{0}', space=vmem, size = 0x1000, scoped, tag = 'operand span for operand 0']
    #allocation1 [shape = 'u8[4096]{0}', space=vmem, size = 0x1000, scoped, tag = 'packed  for operand 0']
    #allocation2 [shape = 'u8[4096]{0}', space=vmem, size = 0x1000, scoped, tag = 'operand span for operand 1']
    #allocation3 [shape = 'u8[4096]{0}', space=vmem, size = 0x1000, scoped, tag = 'packed  for operand 1']
    #allocation4 [shape = 'u8[4096]{0}', space=vmem, size = 0x1000, scoped, tag = 'operand span for operand 2']
    #allocation5 [shape = 'u8[2048]{0}', space=vmem, size = 0x800, scoped, tag = 'packed  for operand 2']
    #allocation6 [shape = 's32[2]{0}', space=sflag, size = 0x8, scoped, tag = 'scoped memory for custom-call.11']
    #allocation7 [shape = 'u8[4096]{0}', space=vmem, size = 0x1000, scoped, tag = 'operand span for operand 3']
    #allocation8 [shape = 'u8[2048]{0}', space=vmem, size = 0x800, scoped, tag = 'packed  for operand 3']
    %5 = vsyncpa [#allocation6], 0
    %s6 = scalar_lea.sflag [#allocation6], 1
    %7 = vsyncpa %s6, 0
    loop: start=0, step=1, limit=4
    $region2: #{custom-call.11} parent=1 // loop_pre_header
      _
    $region3: #{custom-call.11} parent=1 // loop_header
      %s9 = sphi 0, %s13
      %p10 = scmp.ge.s32.totalorder %s9, 4
      %s21 = sphi 0, %s23
      %s24 = sphi 0, %s21
      %s25 = sphi 0, %s24
      %s41 = sphi 0, %s25
      %s49 = sphi 0, %s51
      %s52 = sphi 0, %s49
      %s53 = sphi 0, %s52
      %s69 = sphi 0, %s53
    $region4: #{custom-call.11} parent=1 // loop_header_branch
      %12 = sbr.rel (%p10) target = $region8
    $region5: #{custom-call.11} parent=1 // loop_body
      %s14 = ssub.s32 %s9, 1
      %s15 = ssub.s32 %s9, 2
      %s16 = sadd.s32 %s9, 1
      %s17 = sshrl.u32 %s9, 3
      %s18 = sshrl.u32 %s16, 3
      %s19 = ssub.s32 %s17, %s18
      %p20 = scmp.eq.s32.totalorder %s19, 0
      %s22 = sadd.s32 %s21, 1
      %s23 = scalar_select %p20, %s21, %s22
      %p26 = pneg %p20
      %p27 = scmp.eq.s32.totalorder %s9, 1
      %p28 = por %p26, %p27
      %p29 = scmp.ne.s32.totalorder %s21, %s24
      %p30 = scmp.eq.s32.totalorder %s9, 0
      %p31 = por %p29, %p30
      %p32 = scmp.ne.s32.totalorder %s21, %s24
      %p33 = scmp.eq.s32.totalorder %s14, 1
      %p34 = por %p32, %p33
      %p35 = scmp.ne.s32.totalorder %s24, %s25
      %p36 = scmp.eq.s32.totalorder %s14, 0
      %p37 = por %p35, %p36
      %p38 = scmp.ne.s32.totalorder %s24, %s25
      %p39 = scmp.eq.s32.totalorder %s15, 1
      %p40 = por %p38, %p39
      %p42 = scmp.ne.s32.totalorder %s25, %s41
      %p43 = scmp.eq.s32.totalorder %s15, 0
      %p44 = por %p42, %p43
      %s45 = sshrl.u32 %s9, 3
      %s46 = sshrl.u32 %s16, 3
      %s47 = ssub.s32 %s45, %s46
      %p48 = scmp.eq.s32.totalorder %s47, 0
      %s50 = sadd.s32 %s49, 1
      %s51 = scalar_select %p48, %s49, %s50
      %p54 = pneg %p48
      %p55 = scmp.eq.s32.totalorder %s9, 1
      %p56 = por %p54, %p55
      %p57 = scmp.ne.s32.totalorder %s49, %s52
      %p58 = scmp.eq.s32.totalorder %s9, 0
      %p59 = por %p57, %p58
      %p60 = scmp.ne.s32.totalorder %s49, %s52
      %p61 = scmp.eq.s32.totalorder %s14, 1
      %p62 = por %p60, %p61
      %p63 = scmp.ne.s32.totalorder %s52, %s53
      %p64 = scmp.eq.s32.totalorder %s14, 0
      %p65 = por %p63, %p64
      %p66 = scmp.ne.s32.totalorder %s52, %s53
      %p67 = scmp.eq.s32.totalorder %s15, 1
      %p68 = por %p66, %p67
      %p70 = scmp.ne.s32.totalorder %s53, %s69
      %p71 = scmp.eq.s32.totalorder %s15, 0
      %p72 = por %p70, %p71
      %p73 = scmp.le.s32.totalorder 1, %s9
      %p74 = scmp.lt.s32.totalorder %s9, 3
      %p75 = pnand %p73, %p74
      %p76 = pneg %p75
      // Predicated region
      $region9: #{custom-call.11} parent=5 // pred_check
        _
      $region10: #{custom-call.11} parent=5 // pred_check_branch
        %78 = sbr.rel (%p75) target = $region12
      $region11: #{custom-call.11} parent=5 // pred_region
        %s79 = ssub.s32 %s9, 1
      $region12: #{custom-call.11} parent=5 // pred_fallthru
        _
      %p80 = scmp.lt.s32.totalorder %s9, 2
      // Predicated region
      $region13: #{custom-call.11} parent=5 // pred_check
        %p81 = pneg %p80
      $region14: #{custom-call.11} parent=5 // pred_check_branch
        %83 = sbr.rel (%p81) target = $region16
      $region15: #{custom-call.11} parent=5 // pred_region
        %s84 = sand.u32 %s9, 1
        %s85 = sand.u32 %s9, 1
        %s86 = smul.addr %s85, 4
        %s87 = scalar_lea.vmem [#allocation1], %s86
        %s88 = smul.addr %s9, 4
        %s89 = scalar_lea.vmem %s0, %s88
        // Predicated region
        $region17: #{custom-call.11} parent=15 // pred_check
          _
        $region18: #{custom-call.11} parent=15 // pred_check_branch
          %91 = sbr.rel (0) target = $region20
        $region19: #{custom-call.11} parent=15 // pred_region
          // Predicated region
          $region21: #{custom-call.11} parent=19 // pred_check
            _
          $region22: #{custom-call.11} parent=19 // pred_check_branch
            %93 = sbr.rel target = $region24
          $region23: #{custom-call.11} parent=19 // pred_region
            // Predicated region
            $region36: #{custom-call.11} parent=23 // pred_check
              _
            $region37: #{custom-call.11} parent=23 // pred_check_branch
              %109 = sbr.rel (0) target = $region39
            $region38: #{custom-call.11} parent=23 // pred_region
              %s111 = ssub.s32 16, 1
              loop: start=0, step=1, limit=1
              $region40: #{custom-call.11} parent=38 // loop_pre_header
                _
              $region41: #{custom-call.11} parent=38 // loop_header
                %s113 = sphi 0, %s117
                %p114 = scmp.ge.s32.totalorder %s113, 1
                %s118 = sphi %s89, %s89
                %s119 = sphi %s87, %s87
              $region42: #{custom-call.11} parent=38 // loop_header_branch
                %116 = sbr.rel (%p114) target = $region46
              $region43: #{custom-call.11} parent=38 // loop_body
                %v120 = vld [vmem:[%s118] sm:%s111]
                %121 = vst [vmem:[%s119] sm:%s111] %v120
              $region44: #{custom-call.11} parent=38 // loop_footer
                %s117 = sadd.s32 1, %s113
              $region45: #{custom-call.11} parent=38 // loop_footer_branch
                %112 = sbr.rel target = $region41
              $region46: #{custom-call.11} parent=38 // loop_exit
                _
            $region39: #{custom-call.11} parent=23 // pred_fallthru
              _
          $region24: #{custom-call.11} parent=19 // pred_fallthru
            _
          // Predicated region
          $region25: #{custom-call.11} parent=19 // pred_check
            _
          $region26: #{custom-call.11} parent=19 // pred_check_branch
            %95 = sbr.rel (0) target = $region28
          $region27: #{custom-call.11} parent=19 // pred_region
            %s97 = ssub.s32 16, 1
            loop: start=0, step=1, limit=1
            $region29: #{custom-call.11} parent=27 // loop_pre_header
              _
            $region30: #{custom-call.11} parent=27 // loop_header
              %s99 = sphi 0, %s103
              %p100 = scmp.ge.s32.totalorder %s99, 1
              %s104 = sphi %s89, %s89
              %s105 = sphi %s87, %s87
            $region31: #{custom-call.11} parent=27 // loop_header_branch
              %102 = sbr.rel (%p100) target = $region35
            $region32: #{custom-call.11} parent=27 // loop_body
              %v106 = vld [vmem:[%s104] sm:%s97]
              %107 = vst [vmem:[%s105] sm:%s97] %v106
            $region33: #{custom-call.11} parent=27 // loop_footer
              %s103 = sadd.s32 1, %s99
            $region34: #{custom-call.11} parent=27 // loop_footer_branch
              %98 = sbr.rel target = $region30
            $region35: #{custom-call.11} parent=27 // loop_exit
              _
          $region28: #{custom-call.11} parent=19 // pred_fallthru
            _
        $region20: #{custom-call.11} parent=15 // pred_fallthru
          _
        %122 = vnop
      $region16: #{custom-call.11} parent=5 // pred_fallthru
        _
      %p123 = scmp.le.s32.totalorder 1, %s9
      %p124 = scmp.lt.s32.totalorder %s9, 3
      %p125 = pnand %p123, %p124
      %p126 = pneg %p125
      // Predicated region
      $region47: #{custom-call.11} parent=5 // pred_check
        _
      $region48: #{custom-call.11} parent=5 // pred_check_branch
        %128 = sbr.rel (%p125) target = $region50
      $region49: #{custom-call.11} parent=5 // pred_region
        #allocation9 [shape = 's32[3,128]{1,0}', space=vmem, size = 0x1000, scoped, tag = 'scratch for permutations']
        %s129 = ssub.s32 %s9, 1
        %s130 = sand.u32 %s14, 1
        %s131 = sand.u32 %s14, 1
        %s132 = smul.addr %s131, 4
        %s133 = scalar_lea.vmem [#allocation1], %s132
        %s134 = sand.u32 %s14, 1
        %s135 = sand.u32 %s14, 1
        %s136 = smul.addr %s135, 4
        %s137 = scalar_lea.vmem [#allocation1], %s136
        %s138 = sand.u32 %s14, 1
        %s139 = sand.u32 %s14, 1
        %s140 = smul.addr %s139, 4
        %s141 = scalar_lea.vmem [#allocation3], %s140
        %p142 = pneg %p37
        %p143 = pneg %p34
        %s144 = sand.u32 %s24, 1
        %s145 = scalar_lea.sflag [#allocation6], %s144
        %s146 = sand.u32 %s24, 1
        %s147 = smul.addr %s146, 2
        %s148 = scalar_lea.vmem [#allocation5], %s147
        %p149 = pneg %p65
        %p150 = pneg %p62
        %s151 = sand.u32 %s52, 1
        %s152 = sand.u32 %s52, 1
        %s153 = smul.addr %s152, 2
        %s154 = scalar_lea.vmem [#allocation8], %s153
        %s156 = ssub.s32 16, 1
        %v157 = vld [vmem:[%s137] sm:%s156]
        %158 = vst [vmem:[#allocation0] sm:%s156] %v157
        %s159 = sshrl.u32 %s14, 3
        %s160 = sshrl.u32 %s14, 3
        %v161 = vld [vmem:[#allocation0] sm:$0xff]
        %162 = vst [vmem:[#allocation2] sm:$0xff] %v161
        %s163 = sand.u32 %s14, 7
        %s164 = scalar_lea.vmem [#allocation4], %s163
        %s165 = sand.u32 %s14, 7
        %s166 = scalar_lea.vmem [#allocation7], %s165
        %167 = vst [vmem:[%s164] sm:$0x1] 0
        %v168 = vlaneseq
        %v169 = vshrl.u32 %v168, 7
        %v170 = vmov %v169
        %172 = vst [vmem:[#allocation9] sm:$0xff] %v170
        loop: start=0, step=1, limit=3
        $region52: #{custom-call.11} parent=49 // loop_pre_header
          _
        $region53: #{custom-call.11} parent=49 // loop_header
          %s174 = sphi 0, %s178
          %p175 = scmp.ge.s32.totalorder %s174, 3
        $region54: #{custom-call.11} parent=49 // loop_header_branch
          %177 = sbr.rel (%p175) target = $region58
        $region55: #{custom-call.11} parent=49 // loop_body
          %v179 = vstv %s174
          %v180 = vlaneseq
          %v181 = vshrl.u32 %v180, 7
          %v182 = vmov %v181
          %v183 = vld [vmem:[#allocation2] sm:$0xff]
          %v184 = vand.u32 2147483647, %v183
          %v186 = vstv %s174
          %vm187 = vcmp.ge.s32.totalorder %v182, %v186
          %vm188 = vcmp.lt.s32.totalorder %v182, 3
          %vm189 = vmand %vm187, %vm188
          %vm190 = vcmp.lt.f32.partialorder -inf, %v184
          %vm191 = vmand %vm189, %vm190
          %v192 = vsel %vm191, %v182, %v179
          %v193 = vsel %vm191, %v184, -inf
          %v194 = vrot.slane %v193, 1
          %v195 = vrot.slane %v192, 1
          %vm196 = vcmp.ge.f32.partialorder %v194, %v193
          %v197 = vsel %vm196, %v194, %v193
          %v198 = vsel %vm196, %v195, %v192
          %v199 = vrot.slane %v194, 1
          %v200 = vrot.slane %v195, 1
          %vm201 = vcmp.ge.f32.partialorder %v199, %v197
          %v202 = vsel %vm201, %v199, %v197
          %v203 = vsel %vm201, %v200, %v198
          %v204 = vrot.slane %v199, 1
          %v205 = vrot.slane %v200, 1
          %vm206 = vcmp.ge.f32.partialorder %v204, %v202
          %v207 = vsel %vm206, %v204, %v202
          %v208 = vsel %vm206, %v205, %v203
          %v209 = vrot.slane %v204, 1
          %v210 = vrot.slane %v205, 1
          %vm211 = vcmp.ge.f32.partialorder %v209, %v207
          %v212 = vsel %vm211, %v209, %v207
          %v213 = vsel %vm211, %v210, %v208
          %v214 = vrot.slane %v209, 1
          %v215 = vrot.slane %v210, 1
          %vm216 = vcmp.ge.f32.partialorder %v214, %v212
          %v217 = vsel %vm216, %v214, %v212
          %v218 = vsel %vm216, %v215, %v213
          %v219 = vrot.slane %v214, 1
          %v220 = vrot.slane %v215, 1
          %vm221 = vcmp.ge.f32.partialorder %v219, %v217
          %v222 = vsel %vm221, %v219, %v217
          %v223 = vsel %vm221, %v220, %v218
          %v224 = vrot.slane %v219, 1
          %v225 = vrot.slane %v220, 1
          %vm226 = vcmp.ge.f32.partialorder %v224, %v222
          %v227 = vsel %vm226, %v224, %v222
          %v228 = vsel %vm226, %v225, %v223
          %s229 = ssub.s32 128, %s174
          %230 = vrot.lane.b32.xlu0 %v228, %s229
          %v231 = vpop.permute.xlu0 %230
          %s232 = vtos %v231
          %v233 = vstv %s174
          %v234 = vlaneseq
          %v235 = vand.u32 %v234, 127
          %vm236 = vcmp.eq.s32.totalorder %v235, %v233
          %v237 = vstv %s232
          %v238 = vld [vmem:[%s164] ss:$0 sm:$0xff]
          %v239 = vsel %vm236, %v237, %v238
          %240 = vst [vmem:[%s164] sm:$0x1] %v239
          %s241 = scalar_lea.vmem [#allocation2], %s174
          %s242 = scalar_lea.vmem [#allocation2], %s232
          %v243 = vld [vmem:[%s241] ss:$0 sm:$0xff]
          %v244 = vld [vmem:[%s242] ss:$0 sm:$0xff]
          %245 = vst [vmem:[%s242] sm:$0x1] %v243
          %246 = vst [vmem:[%s241] sm:$0x1] %v244
          %s247 = scalar_lea.vmem [#allocation9], %s174
          %s248 = scalar_lea.vmem [#allocation9], %s232
          %v249 = vld [vmem:[%s247] ss:$0 sm:$0xff]
          %v250 = vld [vmem:[%s248] ss:$0 sm:$0xff]
          %251 = vst [vmem:[%s248] sm:$0x1] %v249
          %252 = vst [vmem:[%s247] sm:$0x1] %v250
          %vm253 = vcmp.ne.f32.partialorder %v244, 0.0
          %vm254 = vmand %vm236, %vm253
          %v255 = vsel %vm254, %v244, 1.0
          %v256 = vlaneseq
          %v257 = vand.u32 %v256, 127
          %v258 = vstv %s174
          %vm259 = vcmp.gt.s32.totalorder %v257, %v258
          %v260 = vsel %vm259, %v244, 0.0
          %v261 = vlaneseq
          %v262 = vshrl.u32 %v261, 7
          %v263 = vmov %v262
          %v264 = vld [vmem:[#allocation2] sm:$0xff]
          %v266 = vstv %s174
          %vm267 = vcmp.gt.s32.totalorder %v263, %v266
          %v268 = vsel %vm267, %v255, 1.0
          %v269 = vrcp.pop %v268
          %v270 = vmul.f32 %v268, %v269
          %v271 = vsub.f32 1.0, %v270
          %v272 = vmul.f32 %v269, %v271
          %v273 = vadd.f32 %v269, %v272
          %vm274 = vweird.f32 %v268
          %vm275 = vweird.f32 %v269
          %vm276 = vmor %vm274, %vm275
          %v277 = vsel %vm276, %v269, %v273
          %v278 = vand.u32 2147483647, %v268
          %vm279 = vcmp.eq.f32.partialorder %v278, 8.507059e+37
          %v280 = vand.u32 %v268, 2147483648
          %v281 = vor.u32 1.1754944e-38, %v280
          %v282 = vsel %vm279, %v281, %v277
          %v283 = vmul.f32 %v264, %v282
          %vm284 = vmand %vm267, %vm236
          %v285 = vsel %vm284, %v283, 0.0
          %286 = vadd.xlane.f32.xlu0 %v285
          %v287 = vpop.xlane.xlu0 %286
          %v288 = vmul.f32 %v287, %v260
          %v289 = vsub.f32 %v283, %v288
          %290 = vst [vmem:[#allocation2] sm:$0xff] %v289
        $region56: #{custom-call.11} parent=49 // loop_footer
          %s178 = sadd.s32 1, %s174
        $region57: #{custom-call.11} parent=49 // loop_footer_branch
          %173 = sbr.rel target = $region53
        $region58: #{custom-call.11} parent=49 // loop_exit
          _
        %v291 = vld [vmem:[#allocation9] sm:$0xff]
        %s292 = scalar_lea.vmem [#allocation9], 8
        %s293 = scalar_lea.vmem [#allocation9], 16
        %s294 = scalar_lea.vmem [#allocation9], 24
        %s295 = scalar_lea.vmem [#allocation9], 32
        %s296 = scalar_lea.vmem [#allocation9], 40
        %s297 = scalar_lea.vmem [#allocation9], 48
        %s298 = scalar_lea.vmem [#allocation9], 56
        %s299 = scalar_lea.vmem [#allocation9], 64
        %s300 = scalar_lea.vmem [#allocation9], 72
        %s301 = scalar_lea.vmem [#allocation9], 80
        %s302 = scalar_lea.vmem [#allocation9], 88
        %s303 = scalar_lea.vmem [#allocation9], 96
        %s304 = scalar_lea.vmem [#allocation9], 104
        %s305 = scalar_lea.vmem [#allocation9], 112
        %s306 = scalar_lea.vmem [#allocation9], 120
        %307 = vxpose.xlu0.b32.start [1/16] %v291, 128
        %308 = vxpose.xlu0.b32.cont [2/16] 0, 128
        %309 = vxpose.xlu0.b32.cont [3/16] 0, 128
        %310 = vxpose.xlu0.b32.cont [4/16] 0, 128
        %311 = vxpose.xlu0.b32.cont [5/16] 0, 128
        %312 = vxpose.xlu0.b32.cont [6/16] 0, 128
        %313 = vxpose.xlu0.b32.cont [7/16] 0, 128
        %314 = vxpose.xlu0.b32.cont [8/16] 0, 128
        %315 = vxpose.xlu0.b32.cont [9/16] 0, 128
        %316 = vxpose.xlu0.b32.cont [10/16] 0, 128
        %317 = vxpose.xlu0.b32.cont [11/16] 0, 128
        %318 = vxpose.xlu0.b32.cont [12/16] 0, 128
        %319 = vxpose.xlu0.b32.cont [13/16] 0, 128
        %320 = vxpose.xlu0.b32.cont [14/16] 0, 128
        %321 = vxpose.xlu0.b32.cont [15/16] 0, 128
        %322 = vxpose.xlu0.b32.end [16/16] 0, 128
        %v323 = vpop.trf.xlu0
        %v324 = vpop.trf.xlu0
        %v325 = vpop.trf.xlu0
        %v326 = vpop.trf.xlu0
        %v327 = vpop.trf.xlu0
        %v328 = vpop.trf.xlu0
        %v329 = vpop.trf.xlu0
        %v330 = vpop.trf.xlu0
        %v331 = vpop.trf.xlu0
        %v332 = vpop.trf.xlu0
        %v333 = vpop.trf.xlu0
        %v334 = vpop.trf.xlu0
        %v335 = vpop.trf.xlu0
        %v336 = vpop.trf.xlu0
        %v337 = vpop.trf.xlu0
        %v338 = vpop.trf.xlu0
        %339 = vst [vmem:[%s166] sm:$0x1] %v323
        %s341 = ssub.s32 16, 1
        %v342 = vld [vmem:[#allocation2] sm:%s341]
        %s344 = ssub.s32 16, 1
        %345 = vst [vmem:[%s141] sm:%s344] %v342
        %s347 = ssub.s32 4, 1
        %v348 = vld [vmem:[#allocation4] sm:%s347]
        %s350 = ssub.s32 4, 1
        %351 = vst [vmem:[%s148] sm:%s350] %v348
        %s353 = ssub.s32 4, 1
        %v354 = vld [vmem:[#allocation7] sm:%s353]
        %s356 = ssub.s32 4, 1
        %357 = vst [vmem:[%s154] sm:%s356] %v354
        %s358 = sand.u32 %s14, 1
        %s359 = sand.u32 %s14, 1
        %s360 = smul.addr %s359, 4
        %s361 = scalar_lea.vmem [#allocation3], %s360
        %s362 = sand.u32 %s24, 1
        %s363 = scalar_lea.sflag [#allocation6], %s362
        %s364 = sand.u32 %s24, 1
        %s365 = smul.addr %s364, 2
        %s366 = scalar_lea.vmem [#allocation5], %s365
        %s367 = sand.u32 %s52, 1
        %s368 = sand.u32 %s52, 1
        %s369 = smul.addr %s368, 2
        %s370 = scalar_lea.vmem [#allocation8], %s369
        %s371 = smul.addr %s14, 4
        %s372 = scalar_lea.vmem %s1, %s371
        // Predicated region
        $region59: #{custom-call.11} parent=49 // pred_check
          _
        $region60: #{custom-call.11} parent=49 // pred_check_branch
          %374 = sbr.rel (0) target = $region62
        $region61: #{custom-call.11} parent=49 // pred_region
          // Predicated region
          $region63: #{custom-call.11} parent=61 // pred_check
            _
          $region64: #{custom-call.11} parent=61 // pred_check_branch
            %376 = sbr.rel target = $region66
          $region65: #{custom-call.11} parent=61 // pred_region
            // Predicated region
            $region78: #{custom-call.11} parent=65 // pred_check
              _
            $region79: #{custom-call.11} parent=65 // pred_check_branch
              %392 = sbr.rel (0) target = $region81
            $region80: #{custom-call.11} parent=65 // pred_region
              %s394 = ssub.s32 16, 1
              loop: start=0, step=1, limit=1
              $region82: #{custom-call.11} parent=80 // loop_pre_header
                _
              $region83: #{custom-call.11} parent=80 // loop_header
                %s396 = sphi 0, %s400
                %p397 = scmp.ge.s32.totalorder %s396, 1
                %s401 = sphi %s361, %s361
                %s402 = sphi %s372, %s372
              $region84: #{custom-call.11} parent=80 // loop_header_branch
                %399 = sbr.rel (%p397) target = $region88
              $region85: #{custom-call.11} parent=80 // loop_body
                %v403 = vld [vmem:[%s401] sm:%s394]
                %404 = vst [vmem:[%s402] sm:%s394] %v403
              $region86: #{custom-call.11} parent=80 // loop_footer
                %s400 = sadd.s32 1, %s396
              $region87: #{custom-call.11} parent=80 // loop_footer_branch
                %395 = sbr.rel target = $region83
              $region88: #{custom-call.11} parent=80 // loop_exit
                _
            $region81: #{custom-call.11} parent=65 // pred_fallthru
              _
          $region66: #{custom-call.11} parent=61 // pred_fallthru
            _
          // Predicated region
          $region67: #{custom-call.11} parent=61 // pred_check
            _
          $region68: #{custom-call.11} parent=61 // pred_check_branch
            %378 = sbr.rel (0) target = $region70
          $region69: #{custom-call.11} parent=61 // pred_region
            %s380 = ssub.s32 16, 1
            loop: start=0, step=1, limit=1
            $region71: #{custom-call.11} parent=69 // loop_pre_header
              _
            $region72: #{custom-call.11} parent=69 // loop_header
              %s382 = sphi 0, %s386
              %p383 = scmp.ge.s32.totalorder %s382, 1
              %s387 = sphi %s361, %s361
              %s388 = sphi %s372, %s372
            $region73: #{custom-call.11} parent=69 // loop_header_branch
              %385 = sbr.rel (%p383) target = $region77
            $region74: #{custom-call.11} parent=69 // loop_body
              %v389 = vld [vmem:[%s387] sm:%s380]
              %390 = vst [vmem:[%s388] sm:%s380] %v389
            $region75: #{custom-call.11} parent=69 // loop_footer
              %s386 = sadd.s32 1, %s382
            $region76: #{custom-call.11} parent=69 // loop_footer_branch
              %381 = sbr.rel target = $region72
            $region77: #{custom-call.11} parent=69 // loop_exit
              _
          $region70: #{custom-call.11} parent=61 // pred_fallthru
            _
        $region62: #{custom-call.11} parent=49 // pred_fallthru
          _
        %405 = vnop
        // Predicated region
        $region89: #{custom-call.11} parent=49 // pred_check
          %p406 = pneg %p34
        $region90: #{custom-call.11} parent=49 // pred_check_branch
          %408 = sbr.rel (%p406) target = $region92
        $region91: #{custom-call.11} parent=49 // pred_region
          %s409 = sshrl.u32 %s14, 3
          %411 = vsyncadd %s363, 0
          %s412 = smul.addr %s409, 2
          %s413 = scalar_lea.hbm %s2, %s412
          %s415 = sshll.u32 %s366, 4
          %s416 = int_to_ptr.vmem [resolvable:$true] %s415
          %s417 = sshll.u32 %s413, 4
          %s418 = int_to_ptr.hbm [resolvable:$true] %s417
          %420 = dma.vmem_to_hbm [thread:$0]  %s416, 32, %s418, %s363
        $region92: #{custom-call.11} parent=49 // pred_fallthru
          _
        // Predicated region
        $region93: #{custom-call.11} parent=49 // pred_check
          %p421 = pneg %p62
        $region94: #{custom-call.11} parent=49 // pred_check_branch
          %423 = sbr.rel (%p421) target = $region96
        $region95: #{custom-call.11} parent=49 // pred_region
          %s424 = sshrl.u32 %s14, 3
          %s425 = smul.addr %s424, 2
          %s426 = scalar_lea.vmem %s3, %s425
          // Predicated region
          $region97: #{custom-call.11} parent=95 // pred_check
            _
          $region98: #{custom-call.11} parent=95 // pred_check_branch
            %428 = sbr.rel (0) target = $region100
          $region99: #{custom-call.11} parent=95 // pred_region
            // Predicated region
            $region101: #{custom-call.11} parent=99 // pred_check
              _
            $region102: #{custom-call.11} parent=99 // pred_check_branch
              %430 = sbr.rel target = $region104
            $region103: #{custom-call.11} parent=99 // pred_region
              // Predicated region
              $region116: #{custom-call.11} parent=103 // pred_check
                _
              $region117: #{custom-call.11} parent=103 // pred_check_branch
                %446 = sbr.rel (0) target = $region119
              $region118: #{custom-call.11} parent=103 // pred_region
                %s448 = ssub.s32 4, 1
                loop: start=0, step=1, limit=1
                $region120: #{custom-call.11} parent=118 // loop_pre_header
                  _
                $region121: #{custom-call.11} parent=118 // loop_header
                  %s450 = sphi 0, %s454
                  %p451 = scmp.ge.s32.totalorder %s450, 1
                  %s455 = sphi %s370, %s370
                  %s456 = sphi %s426, %s426
                $region122: #{custom-call.11} parent=118 // loop_header_branch
                  %453 = sbr.rel (%p451) target = $region126
                $region123: #{custom-call.11} parent=118 // loop_body
                  %v457 = vld [vmem:[%s455] sm:%s448]
                  %458 = vst [vmem:[%s456] sm:%s448] %v457
                $region124: #{custom-call.11} parent=118 // loop_footer
                  %s454 = sadd.s32 1, %s450
                $region125: #{custom-call.11} parent=118 // loop_footer_branch
                  %449 = sbr.rel target = $region121
                $region126: #{custom-call.11} parent=118 // loop_exit
                  _
              $region119: #{custom-call.11} parent=103 // pred_fallthru
                _
            $region104: #{custom-call.11} parent=99 // pred_fallthru
              _
            // Predicated region
            $region105: #{custom-call.11} parent=99 // pred_check
              _
            $region106: #{custom-call.11} parent=99 // pred_check_branch
              %432 = sbr.rel (0) target = $region108
            $region107: #{custom-call.11} parent=99 // pred_region
              %s434 = ssub.s32 4, 1
              loop: start=0, step=1, limit=1
              $region109: #{custom-call.11} parent=107 // loop_pre_header
                _
              $region110: #{custom-call.11} parent=107 // loop_header
                %s436 = sphi 0, %s440
                %p437 = scmp.ge.s32.totalorder %s436, 1
                %s441 = sphi %s370, %s370
                %s442 = sphi %s426, %s426
              $region111: #{custom-call.11} parent=107 // loop_header_branch
                %439 = sbr.rel (%p437) target = $region115
              $region112: #{custom-call.11} parent=107 // loop_body
                %v443 = vld [vmem:[%s441] sm:%s434]
                %444 = vst [vmem:[%s442] sm:%s434] %v443
              $region113: #{custom-call.11} parent=107 // loop_footer
                %s440 = sadd.s32 1, %s436
              $region114: #{custom-call.11} parent=107 // loop_footer_branch
                %435 = sbr.rel target = $region110
              $region115: #{custom-call.11} parent=107 // loop_exit
                _
            $region108: #{custom-call.11} parent=99 // pred_fallthru
              _
          $region100: #{custom-call.11} parent=95 // pred_fallthru
            _
          %459 = vnop
        $region96: #{custom-call.11} parent=49 // pred_fallthru
          _
      $region50: #{custom-call.11} parent=5 // pred_fallthru
        _
      %p460 = scmp.le.s32.totalorder 2, %s9
      // Predicated region
      $region127: #{custom-call.11} parent=5 // pred_check
        %p461 = pneg %p460
      $region128: #{custom-call.11} parent=5 // pred_check_branch
        %463 = sbr.rel (%p461) target = $region130
      $region129: #{custom-call.11} parent=5 // pred_region
        %s464 = ssub.s32 %s9, 2
        %s465 = sand.u32 %s15, 1
        %s466 = sand.u32 %s15, 1
        %s467 = smul.addr %s466, 4
        %s468 = scalar_lea.vmem [#allocation3], %s467
        // Predicated region
        $region131: #{custom-call.11} parent=129 // pred_check
          %p469 = pneg %p40
        $region132: #{custom-call.11} parent=129 // pred_check_branch
          %471 = sbr.rel (%p469) target = $region134
        $region133: #{custom-call.11} parent=129 // pred_region
          %s472 = sand.u32 %s25, 1
          %s473 = scalar_lea.sflag [#allocation6], %s472
          %s474 = sand.u32 %s25, 1
          %s475 = smul.addr %s474, 2
          %s476 = scalar_lea.vmem [#allocation5], %s475
          %478 = dma.done %s473, 32
        $region134: #{custom-call.11} parent=129 // pred_fallthru
          _
        // Predicated region
        $region135: #{custom-call.11} parent=129 // pred_check
          %p479 = pneg %p68
        $region136: #{custom-call.11} parent=129 // pred_check_branch
          %481 = sbr.rel (%p479) target = $region138
        $region137: #{custom-call.11} parent=129 // pred_region
          %s482 = sand.u32 %s53, 1
          %s483 = sand.u32 %s53, 1
          %s484 = smul.addr %s483, 2
          %s485 = scalar_lea.vmem [#allocation8], %s484
        $region138: #{custom-call.11} parent=129 // pred_fallthru
          _
      $region130: #{custom-call.11} parent=5 // pred_fallthru
        _
    $region6: #{custom-call.11} parent=1 // loop_footer
      %s13 = sadd.s32 1, %s9
    $region7: #{custom-call.11} parent=1 // loop_footer_branch
      %8 = sbr.rel target = $region3
    $region8: #{custom-call.11} parent=1 // loop_exit
      _
    %486 = vsyncpa [#allocation6], 1
    %s487 = scalar_lea.sflag [#allocation6], 1
    %488 = vsyncpa %s487, 1

// kernel: custom-call.13
$region0: #{custom-call.13}
  %s0 = inlined_call_operand.vmem [shape: f32[2,1,3,3], index: 0, kind: input, shape index: {}]
  %s1 = inlined_call_operand.vmem [shape: f32[2,1,3,3], index: 1, kind: output, shape index: {}]
  $region1: #{custom-call.13} parent=0
    #allocation0 [shape = 'u8[4096]{0}', space=vmem, size = 0x1000, scoped, tag = 'operand span for operand 0']
    #allocation1 [shape = 'u8[4096]{0}', space=vmem, size = 0x1000, scoped, tag = 'packed  for operand 0']
    #allocation2 [shape = 'u8[4096]{0}', space=vmem, size = 0x1000, scoped, tag = 'operand span for operand 1']
    #allocation3 [shape = 'u8[4096]{0}', space=vmem, size = 0x1000, scoped, tag = 'packed  for operand 1']
    loop: start=0, step=1, limit=4
    $region2: #{custom-call.13} parent=1 // loop_pre_header
      _
    $region3: #{custom-call.13} parent=1 // loop_header
      %s3 = sphi 0, %s7
      %p4 = scmp.ge.s32.totalorder %s3, 4
      %s10 = sphi 0, %s36
      %s11 = sphi 0, %s32
      %s12 = sphi 0, %s28
      %s13 = sphi 0, %s24
      %s14 = sphi 0, %s10
      %s15 = sphi 0, %s11
      %s16 = sphi 0, %s12
      %s17 = sphi 0, %s13
      %s18 = sphi 0, %s14
      %s19 = sphi 0, %s15
      %s20 = sphi 0, %s16
      %s21 = sphi 0, %s17
    $region4: #{custom-call.13} parent=1 // loop_header_branch
      %6 = sbr.rel (%p4) target = $region8
    $region5: #{custom-call.13} parent=1 // loop_body
      %s8 = ssub.s32 %s3, 1
      %s9 = ssub.s32 %s3, 2
      %s22 = sadd.s32 1, %s13
      %p23 = scmp.ge.s32.totalorder %s22, 1
      %s24 = scalar_select %p23, 0, %s22
      %s25 = sadd.s32 1, %s12
      %s26 = scalar_select %p23, %s25, %s12
      %p27 = scmp.ge.s32.totalorder %s26, 1
      %s28 = scalar_select %p27, 0, %s26
      %s29 = sadd.s32 1, %s11
      %s30 = scalar_select %p27, %s29, %s11
      %p31 = scmp.ge.s32.totalorder %s30, 1
      %s32 = scalar_select %p31, 0, %s30
      %s33 = sadd.s32 1, %s10
      %s34 = scalar_select %p31, %s33, %s10
      %p35 = scmp.ge.s32.totalorder %s34, 2
      %s36 = scalar_select %p35, 0, %s34
      %p37 = scmp.le.s32.totalorder 1, %s3
      %p38 = scmp.lt.s32.totalorder %s3, 3
      %p39 = pnand %p37, %p38
      %p40 = pneg %p39
      // Predicated region
      $region9: #{custom-call.13} parent=5 // pred_check
        _
      $region10: #{custom-call.13} parent=5 // pred_check_branch
        %42 = sbr.rel (%p39) target = $region12
      $region11: #{custom-call.13} parent=5 // pred_region
        %s43 = ssub.s32 %s3, 1
      $region12: #{custom-call.13} parent=5 // pred_fallthru
        _
      %p44 = scmp.lt.s32.totalorder %s3, 2
      // Predicated region
      $region13: #{custom-call.13} parent=5 // pred_check
        %p45 = pneg %p44
      $region14: #{custom-call.13} parent=5 // pred_check_branch
        %47 = sbr.rel (%p45) target = $region16
      $region15: #{custom-call.13} parent=5 // pred_region
        %s48 = sand.u32 %s3, 1
        %s49 = sand.u32 %s3, 1
        %s50 = smul.addr %s49, 4
        %s51 = scalar_lea.vmem [#allocation1], %s50
        %s52 = sadd.s32 %s13, %s12
        %s53 = sadd.s32 %s52, %s11
        %s54 = sadd.s32 %s53, %s10
        %s55 = smul.addr %s54, 4
        %s56 = scalar_lea.vmem %s0, %s55
        // Predicated region
        $region17: #{custom-call.13} parent=15 // pred_check
          _
        $region18: #{custom-call.13} parent=15 // pred_check_branch
          %58 = sbr.rel (0) target = $region20
        $region19: #{custom-call.13} parent=15 // pred_region
          // Predicated region
          $region21: #{custom-call.13} parent=19 // pred_check
            _
          $region22: #{custom-call.13} parent=19 // pred_check_branch
            %60 = sbr.rel target = $region24
          $region23: #{custom-call.13} parent=19 // pred_region
            // Predicated region
            $region36: #{custom-call.13} parent=23 // pred_check
              _
            $region37: #{custom-call.13} parent=23 // pred_check_branch
              %76 = sbr.rel (0) target = $region39
            $region38: #{custom-call.13} parent=23 // pred_region
              %s78 = ssub.s32 16, 1
              loop: start=0, step=1, limit=1
              $region40: #{custom-call.13} parent=38 // loop_pre_header
                _
              $region41: #{custom-call.13} parent=38 // loop_header
                %s80 = sphi 0, %s84
                %p81 = scmp.ge.s32.totalorder %s80, 1
                %s85 = sphi %s56, %s56
                %s86 = sphi %s51, %s51
              $region42: #{custom-call.13} parent=38 // loop_header_branch
                %83 = sbr.rel (%p81) target = $region46
              $region43: #{custom-call.13} parent=38 // loop_body
                %v87 = vld [vmem:[%s85] sm:%s78]
                %88 = vst [vmem:[%s86] sm:%s78] %v87
              $region44: #{custom-call.13} parent=38 // loop_footer
                %s84 = sadd.s32 1, %s80
              $region45: #{custom-call.13} parent=38 // loop_footer_branch
                %79 = sbr.rel target = $region41
              $region46: #{custom-call.13} parent=38 // loop_exit
                _
            $region39: #{custom-call.13} parent=23 // pred_fallthru
              _
          $region24: #{custom-call.13} parent=19 // pred_fallthru
            _
          // Predicated region
          $region25: #{custom-call.13} parent=19 // pred_check
            _
          $region26: #{custom-call.13} parent=19 // pred_check_branch
            %62 = sbr.rel (0) target = $region28
          $region27: #{custom-call.13} parent=19 // pred_region
            %s64 = ssub.s32 16, 1
            loop: start=0, step=1, limit=1
            $region29: #{custom-call.13} parent=27 // loop_pre_header
              _
            $region30: #{custom-call.13} parent=27 // loop_header
              %s66 = sphi 0, %s70
              %p67 = scmp.ge.s32.totalorder %s66, 1
              %s71 = sphi %s56, %s56
              %s72 = sphi %s51, %s51
            $region31: #{custom-call.13} parent=27 // loop_header_branch
              %69 = sbr.rel (%p67) target = $region35
            $region32: #{custom-call.13} parent=27 // loop_body
              %v73 = vld [vmem:[%s71] sm:%s64]
              %74 = vst [vmem:[%s72] sm:%s64] %v73
            $region33: #{custom-call.13} parent=27 // loop_footer
              %s70 = sadd.s32 1, %s66
            $region34: #{custom-call.13} parent=27 // loop_footer_branch
              %65 = sbr.rel target = $region30
            $region35: #{custom-call.13} parent=27 // loop_exit
              _
          $region28: #{custom-call.13} parent=19 // pred_fallthru
            _
        $region20: #{custom-call.13} parent=15 // pred_fallthru
          _
        %89 = vnop
      $region16: #{custom-call.13} parent=5 // pred_fallthru
        _
      %p90 = scmp.le.s32.totalorder 1, %s3
      %p91 = scmp.lt.s32.totalorder %s3, 3
      %p92 = pnand %p90, %p91
      %p93 = pneg %p92
      // Predicated region
      $region47: #{custom-call.13} parent=5 // pred_check
        _
      $region48: #{custom-call.13} parent=5 // pred_check_branch
        %95 = sbr.rel (%p92) target = $region50
      $region49: #{custom-call.13} parent=5 // pred_region
        #allocation4 [shape = 'f32[3,3]{1,0}', space=vmem, size = 0x1000, scoped, tag = 'rescaled input a']
        %s96 = ssub.s32 %s3, 1
        %s97 = sand.u32 %s8, 1
        %s98 = sand.u32 %s8, 1
        %s99 = smul.addr %s98, 4
        %s100 = scalar_lea.vmem [#allocation1], %s99
        %s101 = sand.u32 %s8, 1
        %s102 = sand.u32 %s8, 1
        %s103 = smul.addr %s102, 4
        %s104 = scalar_lea.vmem [#allocation1], %s103
        %s105 = sand.u32 %s8, 1
        %s106 = sand.u32 %s8, 1
        %s107 = smul.addr %s106, 4
        %s108 = scalar_lea.vmem [#allocation3], %s107
        %s110 = ssub.s32 16, 1
        %v111 = vld [vmem:[%s104] sm:%s110]
        %112 = vst [vmem:[#allocation0] sm:%s110] %v111
        %v113 = vlaneseq
        %v114 = vand.u32 %v113, 127
        %vm115 = vcmp.lt.s32.totalorder %v114, 3
        %v116 = vlaneseq
        %v117 = vshrl.u32 %v116, 7
        %vm119 = vcmp.eq.s32.totalorder %v117, %v114
        %v120 = vld [vmem:[#allocation0] sm:$0xff]
        %v121 = vsel %vm119, %v120, 0.0
        %122 = vadd.xlane.f32.xlu0 %v121
        %v123 = vpop.xlane.xlu0 %122
        %vm124 = vcmp.ge.s32.totalorder %v117, %v114
        %vm125 = vmand %vm124, %vm115
        %v126 = vsel %vm125, %v120, 0.0
        %v127 = vrcp.pop %v123
        %v128 = vmul.f32 %v123, %v127
        %v129 = vsub.f32 1.0, %v128
        %v130 = vmul.f32 %v127, %v129
        %v131 = vadd.f32 %v127, %v130
        %vm132 = vweird.f32 %v123
        %vm133 = vweird.f32 %v127
        %vm134 = vmor %vm132, %vm133
        %v135 = vsel %vm134, %v127, %v131
        %v136 = vand.u32 2147483647, %v123
        %vm137 = vcmp.eq.f32.partialorder %v136, 8.507059e+37
        %v138 = vand.u32 %v123, 2147483648
        %v139 = vor.u32 1.1754944e-38, %v138
        %v140 = vsel %vm137, %v139, %v135
        %v141 = vmul.f32 %v126, %v140
        %142 = vst [vmem:[#allocation4] sm:$0xff] %v141
        %v143 = vlaneseq
        %v144 = vand.u32 %v143, 127
        %v145 = vlaneseq
        %v146 = vshrl.u32 %v145, 7
        %vm148 = vcmp.eq.s32.totalorder %v144, %v146
        %v149 = vlaneseq
        %v150 = vand.u32 %v149, 127
        %vm151 = vcmp.eq.s32.totalorder %v150, 0
        %v152 = vsel %vm151, 1.0, -1.0
        %v153 = vsel %vm148, %v152, 0.0
        %s154 = scalar_lea.vmem [#allocation4], 1
        %v155 = vld [vmem:[%s154] ss:$0 sm:$0xff]
        %v156 = vxor.u32 %v155, 2147483648
        %v157 = vlaneseq
        %v158 = vand.u32 %v157, 127
        %vm159 = vcmp.eq.s32.totalorder %v158, 1
        %v160 = vmul.f32 %v156, %v153
        %161 = vadd.xlane.f32.xlu0 %v160
        %v162 = vpop.xlane.xlu0 %161
        %v163 = vsel %vm159, %v162, %v153
        %s164 = scalar_lea.vmem [#allocation4], 2
        %v165 = vld [vmem:[%s164] ss:$0 sm:$0xff]
        %v166 = vxor.u32 %v165, 2147483648
        %v167 = vlaneseq
        %v168 = vand.u32 %v167, 127
        %vm169 = vcmp.eq.s32.totalorder %v168, 2
        %v170 = vmul.f32 %v166, %v163
        %171 = vadd.xlane.f32.xlu0 %v170
        %v172 = vpop.xlane.xlu0 %171
        %v173 = vsel %vm169, %v172, %v163
        %v174 = vrcp.pop %v123
        %v175 = vmul.f32 %v123, %v174
        %v176 = vsub.f32 1.0, %v175
        %v177 = vmul.f32 %v174, %v176
        %v178 = vadd.f32 %v174, %v177
        %vm179 = vweird.f32 %v123
        %vm180 = vweird.f32 %v174
        %vm181 = vmor %vm179, %vm180
        %v182 = vsel %vm181, %v174, %v178
        %v183 = vand.u32 2147483647, %v123
        %vm184 = vcmp.eq.f32.partialorder %v183, 8.507059e+37
        %v185 = vand.u32 %v123, 2147483648
        %v186 = vor.u32 1.1754944e-38, %v185
        %v187 = vsel %vm184, %v186, %v182
        %v188 = vmul.f32 %v173, %v187
        %vm189 = vweird.f32 %v123
        %v190 = vsel %vm189, %v173, %v188
        %191 = vst [vmem:[#allocation2] sm:$0xff] %v190
        %s193 = ssub.s32 16, 1
        %v194 = vld [vmem:[#allocation2] sm:%s193]
        %s196 = ssub.s32 16, 1
        %197 = vst [vmem:[%s108] sm:%s196] %v194
        %s198 = sand.u32 %s8, 1
        %s199 = sand.u32 %s8, 1
        %s200 = smul.addr %s199, 4
        %s201 = scalar_lea.vmem [#allocation3], %s200
        %s202 = sadd.s32 %s17, %s16
        %s203 = sadd.s32 %s202, %s15
        %s204 = sadd.s32 %s203, %s14
        %s205 = smul.addr %s204, 4
        %s206 = scalar_lea.vmem %s1, %s205
        // Predicated region
        $region51: #{custom-call.13} parent=49 // pred_check
          _
        $region52: #{custom-call.13} parent=49 // pred_check_branch
          %208 = sbr.rel (0) target = $region54
        $region53: #{custom-call.13} parent=49 // pred_region
          // Predicated region
          $region55: #{custom-call.13} parent=53 // pred_check
            _
          $region56: #{custom-call.13} parent=53 // pred_check_branch
            %210 = sbr.rel target = $region58
          $region57: #{custom-call.13} parent=53 // pred_region
            // Predicated region
            $region70: #{custom-call.13} parent=57 // pred_check
              _
            $region71: #{custom-call.13} parent=57 // pred_check_branch
              %226 = sbr.rel (0) target = $region73
            $region72: #{custom-call.13} parent=57 // pred_region
              %s228 = ssub.s32 16, 1
              loop: start=0, step=1, limit=1
              $region74: #{custom-call.13} parent=72 // loop_pre_header
                _
              $region75: #{custom-call.13} parent=72 // loop_header
                %s230 = sphi 0, %s234
                %p231 = scmp.ge.s32.totalorder %s230, 1
                %s235 = sphi %s201, %s201
                %s236 = sphi %s206, %s206
              $region76: #{custom-call.13} parent=72 // loop_header_branch
                %233 = sbr.rel (%p231) target = $region80
              $region77: #{custom-call.13} parent=72 // loop_body
                %v237 = vld [vmem:[%s235] sm:%s228]
                %238 = vst [vmem:[%s236] sm:%s228] %v237
              $region78: #{custom-call.13} parent=72 // loop_footer
                %s234 = sadd.s32 1, %s230
              $region79: #{custom-call.13} parent=72 // loop_footer_branch
                %229 = sbr.rel target = $region75
              $region80: #{custom-call.13} parent=72 // loop_exit
                _
            $region73: #{custom-call.13} parent=57 // pred_fallthru
              _
          $region58: #{custom-call.13} parent=53 // pred_fallthru
            _
          // Predicated region
          $region59: #{custom-call.13} parent=53 // pred_check
            _
          $region60: #{custom-call.13} parent=53 // pred_check_branch
            %212 = sbr.rel (0) target = $region62
          $region61: #{custom-call.13} parent=53 // pred_region
            %s214 = ssub.s32 16, 1
            loop: start=0, step=1, limit=1
            $region63: #{custom-call.13} parent=61 // loop_pre_header
              _
            $region64: #{custom-call.13} parent=61 // loop_header
              %s216 = sphi 0, %s220
              %p217 = scmp.ge.s32.totalorder %s216, 1
              %s221 = sphi %s201, %s201
              %s222 = sphi %s206, %s206
            $region65: #{custom-call.13} parent=61 // loop_header_branch
              %219 = sbr.rel (%p217) target = $region69
            $region66: #{custom-call.13} parent=61 // loop_body
              %v223 = vld [vmem:[%s221] sm:%s214]
              %224 = vst [vmem:[%s222] sm:%s214] %v223
            $region67: #{custom-call.13} parent=61 // loop_footer
              %s220 = sadd.s32 1, %s216
            $region68: #{custom-call.13} parent=61 // loop_footer_branch
              %215 = sbr.rel target = $region64
            $region69: #{custom-call.13} parent=61 // loop_exit
              _
          $region62: #{custom-call.13} parent=53 // pred_fallthru
            _
        $region54: #{custom-call.13} parent=49 // pred_fallthru
          _
        %239 = vnop
      $region50: #{custom-call.13} parent=5 // pred_fallthru
        _
      %p240 = scmp.le.s32.totalorder 2, %s3
      // Predicated region
      $region81: #{custom-call.13} parent=5 // pred_check
        %p241 = pneg %p240
      $region82: #{custom-call.13} parent=5 // pred_check_branch
        %243 = sbr.rel (%p241) target = $region84
      $region83: #{custom-call.13} parent=5 // pred_region
        %s244 = ssub.s32 %s3, 2
        %s245 = sand.u32 %s9, 1
        %s246 = sand.u32 %s9, 1
        %s247 = smul.addr %s246, 4
        %s248 = scalar_lea.vmem [#allocation3], %s247
      $region84: #{custom-call.13} parent=5 // pred_fallthru
        _
    $region6: #{custom-call.13} parent=1 // loop_footer
      %s7 = sadd.s32 1, %s3
    $region7: #{custom-call.13} parent=1 // loop_footer_branch
      %2 = sbr.rel target = $region3
    $region8: #{custom-call.13} parent=1 // loop_exit
      _

// kernel: custom-call.12
$region0: #{custom-call.12}
  %s0 = inlined_call_operand.vmem [shape: f32[2,1,3,3], index: 0, kind: input, shape index: {}]
  %s1 = inlined_call_operand.vmem [shape: f32[2,1,3,3], index: 1, kind: output, shape index: {}]
  $region1: #{custom-call.12} parent=0
    #allocation0 [shape = 'u8[4096]{0}', space=vmem, size = 0x1000, scoped, tag = 'operand span for operand 0']
    #allocation1 [shape = 'u8[4096]{0}', space=vmem, size = 0x1000, scoped, tag = 'packed  for operand 0']
    #allocation2 [shape = 'u8[4096]{0}', space=vmem, size = 0x1000, scoped, tag = 'operand span for operand 1']
    #allocation3 [shape = 'u8[4096]{0}', space=vmem, size = 0x1000, scoped, tag = 'packed  for operand 1']
    loop: start=0, step=1, limit=4
    $region2: #{custom-call.12} parent=1 // loop_pre_header
      _
    $region3: #{custom-call.12} parent=1 // loop_header
      %s3 = sphi 0, %s7
      %p4 = scmp.ge.s32.totalorder %s3, 4
      %s10 = sphi 0, %s36
      %s11 = sphi 0, %s32
      %s12 = sphi 0, %s28
      %s13 = sphi 0, %s24
      %s14 = sphi 0, %s10
      %s15 = sphi 0, %s11
      %s16 = sphi 0, %s12
      %s17 = sphi 0, %s13
      %s18 = sphi 0, %s14
      %s19 = sphi 0, %s15
      %s20 = sphi 0, %s16
      %s21 = sphi 0, %s17
    $region4: #{custom-call.12} parent=1 // loop_header_branch
      %6 = sbr.rel (%p4) target = $region8
    $region5: #{custom-call.12} parent=1 // loop_body
      %s8 = ssub.s32 %s3, 1
      %s9 = ssub.s32 %s3, 2
      %s22 = sadd.s32 1, %s13
      %p23 = scmp.ge.s32.totalorder %s22, 1
      %s24 = scalar_select %p23, 0, %s22
      %s25 = sadd.s32 1, %s12
      %s26 = scalar_select %p23, %s25, %s12
      %p27 = scmp.ge.s32.totalorder %s26, 1
      %s28 = scalar_select %p27, 0, %s26
      %s29 = sadd.s32 1, %s11
      %s30 = scalar_select %p27, %s29, %s11
      %p31 = scmp.ge.s32.totalorder %s30, 1
      %s32 = scalar_select %p31, 0, %s30
      %s33 = sadd.s32 1, %s10
      %s34 = scalar_select %p31, %s33, %s10
      %p35 = scmp.ge.s32.totalorder %s34, 2
      %s36 = scalar_select %p35, 0, %s34
      %p37 = scmp.le.s32.totalorder 1, %s3
      %p38 = scmp.lt.s32.totalorder %s3, 3
      %p39 = pnand %p37, %p38
      %p40 = pneg %p39
      // Predicated region
      $region9: #{custom-call.12} parent=5 // pred_check
        _
      $region10: #{custom-call.12} parent=5 // pred_check_branch
        %42 = sbr.rel (%p39) target = $region12
      $region11: #{custom-call.12} parent=5 // pred_region
        %s43 = ssub.s32 %s3, 1
      $region12: #{custom-call.12} parent=5 // pred_fallthru
        _
      %p44 = scmp.lt.s32.totalorder %s3, 2
      // Predicated region
      $region13: #{custom-call.12} parent=5 // pred_check
        %p45 = pneg %p44
      $region14: #{custom-call.12} parent=5 // pred_check_branch
        %47 = sbr.rel (%p45) target = $region16
      $region15: #{custom-call.12} parent=5 // pred_region
        %s48 = sand.u32 %s3, 1
        %s49 = sand.u32 %s3, 1
        %s50 = smul.addr %s49, 4
        %s51 = scalar_lea.vmem [#allocation1], %s50
        %s52 = sadd.s32 %s13, %s12
        %s53 = sadd.s32 %s52, %s11
        %s54 = sadd.s32 %s53, %s10
        %s55 = smul.addr %s54, 4
        %s56 = scalar_lea.vmem %s0, %s55
        // Predicated region
        $region17: #{custom-call.12} parent=15 // pred_check
          _
        $region18: #{custom-call.12} parent=15 // pred_check_branch
          %58 = sbr.rel (0) target = $region20
        $region19: #{custom-call.12} parent=15 // pred_region
          // Predicated region
          $region21: #{custom-call.12} parent=19 // pred_check
            _
          $region22: #{custom-call.12} parent=19 // pred_check_branch
            %60 = sbr.rel target = $region24
          $region23: #{custom-call.12} parent=19 // pred_region
            // Predicated region
            $region36: #{custom-call.12} parent=23 // pred_check
              _
            $region37: #{custom-call.12} parent=23 // pred_check_branch
              %76 = sbr.rel (0) target = $region39
            $region38: #{custom-call.12} parent=23 // pred_region
              %s78 = ssub.s32 16, 1
              loop: start=0, step=1, limit=1
              $region40: #{custom-call.12} parent=38 // loop_pre_header
                _
              $region41: #{custom-call.12} parent=38 // loop_header
                %s80 = sphi 0, %s84
                %p81 = scmp.ge.s32.totalorder %s80, 1
                %s85 = sphi %s56, %s56
                %s86 = sphi %s51, %s51
              $region42: #{custom-call.12} parent=38 // loop_header_branch
                %83 = sbr.rel (%p81) target = $region46
              $region43: #{custom-call.12} parent=38 // loop_body
                %v87 = vld [vmem:[%s85] sm:%s78]
                %88 = vst [vmem:[%s86] sm:%s78] %v87
              $region44: #{custom-call.12} parent=38 // loop_footer
                %s84 = sadd.s32 1, %s80
              $region45: #{custom-call.12} parent=38 // loop_footer_branch
                %79 = sbr.rel target = $region41
              $region46: #{custom-call.12} parent=38 // loop_exit
                _
            $region39: #{custom-call.12} parent=23 // pred_fallthru
              _
          $region24: #{custom-call.12} parent=19 // pred_fallthru
            _
          // Predicated region
          $region25: #{custom-call.12} parent=19 // pred_check
            _
          $region26: #{custom-call.12} parent=19 // pred_check_branch
            %62 = sbr.rel (0) target = $region28
          $region27: #{custom-call.12} parent=19 // pred_region
            %s64 = ssub.s32 16, 1
            loop: start=0, step=1, limit=1
            $region29: #{custom-call.12} parent=27 // loop_pre_header
              _
            $region30: #{custom-call.12} parent=27 // loop_header
              %s66 = sphi 0, %s70
              %p67 = scmp.ge.s32.totalorder %s66, 1
              %s71 = sphi %s56, %s56
              %s72 = sphi %s51, %s51
            $region31: #{custom-call.12} parent=27 // loop_header_branch
              %69 = sbr.rel (%p67) target = $region35
            $region32: #{custom-call.12} parent=27 // loop_body
              %v73 = vld [vmem:[%s71] sm:%s64]
              %74 = vst [vmem:[%s72] sm:%s64] %v73
            $region33: #{custom-call.12} parent=27 // loop_footer
              %s70 = sadd.s32 1, %s66
            $region34: #{custom-call.12} parent=27 // loop_footer_branch
              %65 = sbr.rel target = $region30
            $region35: #{custom-call.12} parent=27 // loop_exit
              _
          $region28: #{custom-call.12} parent=19 // pred_fallthru
            _
        $region20: #{custom-call.12} parent=15 // pred_fallthru
          _
        %89 = vnop
      $region16: #{custom-call.12} parent=5 // pred_fallthru
        _
      %p90 = scmp.le.s32.totalorder 1, %s3
      %p91 = scmp.lt.s32.totalorder %s3, 3
      %p92 = pnand %p90, %p91
      %p93 = pneg %p92
      // Predicated region
      $region47: #{custom-call.12} parent=5 // pred_check
        _
      $region48: #{custom-call.12} parent=5 // pred_check_branch
        %95 = sbr.rel (%p92) target = $region50
      $region49: #{custom-call.12} parent=5 // pred_region
        #allocation4 [shape = 'f32[3,3]{1,0}', space=vmem, size = 0x1000, scoped, tag = 'rescaled input a']
        %s96 = ssub.s32 %s3, 1
        %s97 = sand.u32 %s8, 1
        %s98 = sand.u32 %s8, 1
        %s99 = smul.addr %s98, 4
        %s100 = scalar_lea.vmem [#allocation1], %s99
        %s101 = sand.u32 %s8, 1
        %s102 = sand.u32 %s8, 1
        %s103 = smul.addr %s102, 4
        %s104 = scalar_lea.vmem [#allocation1], %s103
        %s105 = sand.u32 %s8, 1
        %s106 = sand.u32 %s8, 1
        %s107 = smul.addr %s106, 4
        %s108 = scalar_lea.vmem [#allocation3], %s107
        %s110 = ssub.s32 16, 1
        %v111 = vld [vmem:[%s104] sm:%s110]
        %112 = vst [vmem:[#allocation0] sm:%s110] %v111
        %v113 = vlaneseq
        %v114 = vand.u32 %v113, 127
        %vm115 = vcmp.lt.s32.totalorder %v114, 3
        %v116 = vlaneseq
        %v117 = vshrl.u32 %v116, 7
        %vm119 = vcmp.eq.s32.totalorder %v117, %v114
        %v120 = vld [vmem:[#allocation0] sm:$0xff]
        %v121 = vsel %vm119, %v120, 0.0
        %122 = vadd.xlane.f32.xlu0 %v121
        %v123 = vpop.xlane.xlu0 %122
        %vm124 = vcmp.le.s32.totalorder %v117, %v114
        %vm125 = vmand %vm124, %vm115
        %v126 = vsel %vm125, %v120, 0.0
        %v127 = vrcp.pop %v123
        %v128 = vmul.f32 %v123, %v127
        %v129 = vsub.f32 1.0, %v128
        %v130 = vmul.f32 %v127, %v129
        %v131 = vadd.f32 %v127, %v130
        %vm132 = vweird.f32 %v123
        %vm133 = vweird.f32 %v127
        %vm134 = vmor %vm132, %vm133
        %v135 = vsel %vm134, %v127, %v131
        %v136 = vand.u32 2147483647, %v123
        %vm137 = vcmp.eq.f32.partialorder %v136, 8.507059e+37
        %v138 = vand.u32 %v123, 2147483648
        %v139 = vor.u32 1.1754944e-38, %v138
        %v140 = vsel %vm137, %v139, %v135
        %v141 = vmul.f32 %v126, %v140
        %142 = vst [vmem:[#allocation4] sm:$0xff] %v141
        %v143 = vlaneseq
        %v144 = vand.u32 %v143, 127
        %v145 = vlaneseq
        %v146 = vshrl.u32 %v145, 7
        %vm148 = vcmp.eq.s32.totalorder %v144, %v146
        %v149 = vlaneseq
        %v150 = vand.u32 %v149, 127
        %vm151 = vcmp.eq.s32.totalorder %v150, 2
        %v152 = vsel %vm151, 1.0, -1.0
        %v153 = vsel %vm148, %v152, 0.0
        %s154 = scalar_lea.vmem [#allocation4], 1
        %v155 = vld [vmem:[%s154] ss:$0 sm:$0xff]
        %v156 = vxor.u32 %v155, 2147483648
        %v157 = vlaneseq
        %v158 = vand.u32 %v157, 127
        %vm159 = vcmp.eq.s32.totalorder %v158, 1
        %v160 = vmul.f32 %v156, %v153
        %161 = vadd.xlane.f32.xlu0 %v160
        %v162 = vpop.xlane.xlu0 %161
        %v163 = vsel %vm159, %v162, %v153
        %v164 = vld [vmem:[#allocation4] ss:$0 sm:$0xff]
        %v165 = vxor.u32 %v164, 2147483648
        %v166 = vlaneseq
        %v167 = vand.u32 %v166, 127
        %vm168 = vcmp.eq.s32.totalorder %v167, 0
        %v169 = vmul.f32 %v165, %v163
        %170 = vadd.xlane.f32.xlu0 %v169
        %v171 = vpop.xlane.xlu0 %170
        %v172 = vsel %vm168, %v171, %v163
        %v173 = vrcp.pop %v123
        %v174 = vmul.f32 %v123, %v173
        %v175 = vsub.f32 1.0, %v174
        %v176 = vmul.f32 %v173, %v175
        %v177 = vadd.f32 %v173, %v176
        %vm178 = vweird.f32 %v123
        %vm179 = vweird.f32 %v173
        %vm180 = vmor %vm178, %vm179
        %v181 = vsel %vm180, %v173, %v177
        %v182 = vand.u32 2147483647, %v123
        %vm183 = vcmp.eq.f32.partialorder %v182, 8.507059e+37
        %v184 = vand.u32 %v123, 2147483648
        %v185 = vor.u32 1.1754944e-38, %v184
        %v186 = vsel %vm183, %v185, %v181
        %v187 = vmul.f32 %v172, %v186
        %vm188 = vweird.f32 %v123
        %v189 = vsel %vm188, %v172, %v187
        %190 = vst [vmem:[#allocation2] sm:$0xff] %v189
        %s192 = ssub.s32 16, 1
        %v193 = vld [vmem:[#allocation2] sm:%s192]
        %s195 = ssub.s32 16, 1
        %196 = vst [vmem:[%s108] sm:%s195] %v193
        %s197 = sand.u32 %s8, 1
        %s198 = sand.u32 %s8, 1
        %s199 = smul.addr %s198, 4
        %s200 = scalar_lea.vmem [#allocation3], %s199
        %s201 = sadd.s32 %s17, %s16
        %s202 = sadd.s32 %s201, %s15
        %s203 = sadd.s32 %s202, %s14
        %s204 = smul.addr %s203, 4
        %s205 = scalar_lea.vmem %s1, %s204
        // Predicated region
        $region51: #{custom-call.12} parent=49 // pred_check
          _
        $region52: #{custom-call.12} parent=49 // pred_check_branch
          %207 = sbr.rel (0) target = $region54
        $region53: #{custom-call.12} parent=49 // pred_region
          // Predicated region
          $region55: #{custom-call.12} parent=53 // pred_check
            _
          $region56: #{custom-call.12} parent=53 // pred_check_branch
            %209 = sbr.rel target = $region58
          $region57: #{custom-call.12} parent=53 // pred_region
            // Predicated region
            $region70: #{custom-call.12} parent=57 // pred_check
              _
            $region71: #{custom-call.12} parent=57 // pred_check_branch
              %225 = sbr.rel (0) target = $region73
            $region72: #{custom-call.12} parent=57 // pred_region
              %s227 = ssub.s32 16, 1
              loop: start=0, step=1, limit=1
              $region74: #{custom-call.12} parent=72 // loop_pre_header
                _
              $region75: #{custom-call.12} parent=72 // loop_header
                %s229 = sphi 0, %s233
                %p230 = scmp.ge.s32.totalorder %s229, 1
                %s234 = sphi %s200, %s200
                %s235 = sphi %s205, %s205
              $region76: #{custom-call.12} parent=72 // loop_header_branch
                %232 = sbr.rel (%p230) target = $region80
              $region77: #{custom-call.12} parent=72 // loop_body
                %v236 = vld [vmem:[%s234] sm:%s227]
                %237 = vst [vmem:[%s235] sm:%s227] %v236
              $region78: #{custom-call.12} parent=72 // loop_footer
                %s233 = sadd.s32 1, %s229
              $region79: #{custom-call.12} parent=72 // loop_footer_branch
                %228 = sbr.rel target = $region75
              $region80: #{custom-call.12} parent=72 // loop_exit
                _
            $region73: #{custom-call.12} parent=57 // pred_fallthru
              _
          $region58: #{custom-call.12} parent=53 // pred_fallthru
            _
          // Predicated region
          $region59: #{custom-call.12} parent=53 // pred_check
            _
          $region60: #{custom-call.12} parent=53 // pred_check_branch
            %211 = sbr.rel (0) target = $region62
          $region61: #{custom-call.12} parent=53 // pred_region
            %s213 = ssub.s32 16, 1
            loop: start=0, step=1, limit=1
            $region63: #{custom-call.12} parent=61 // loop_pre_header
              _
            $region64: #{custom-call.12} parent=61 // loop_header
              %s215 = sphi 0, %s219
              %p216 = scmp.ge.s32.totalorder %s215, 1
              %s220 = sphi %s200, %s200
              %s221 = sphi %s205, %s205
            $region65: #{custom-call.12} parent=61 // loop_header_branch
              %218 = sbr.rel (%p216) target = $region69
            $region66: #{custom-call.12} parent=61 // loop_body
              %v222 = vld [vmem:[%s220] sm:%s213]
              %223 = vst [vmem:[%s221] sm:%s213] %v222
            $region67: #{custom-call.12} parent=61 // loop_footer
              %s219 = sadd.s32 1, %s215
            $region68: #{custom-call.12} parent=61 // loop_footer_branch
              %214 = sbr.rel target = $region64
            $region69: #{custom-call.12} parent=61 // loop_exit
              _
          $region62: #{custom-call.12} parent=53 // pred_fallthru
            _
        $region54: #{custom-call.12} parent=49 // pred_fallthru
          _
        %238 = vnop
      $region50: #{custom-call.12} parent=5 // pred_fallthru
        _
      %p239 = scmp.le.s32.totalorder 2, %s3
      // Predicated region
      $region81: #{custom-call.12} parent=5 // pred_check
        %p240 = pneg %p239
      $region82: #{custom-call.12} parent=5 // pred_check_branch
        %242 = sbr.rel (%p240) target = $region84
      $region83: #{custom-call.12} parent=5 // pred_region
        %s243 = ssub.s32 %s3, 2
        %s244 = sand.u32 %s9, 1
        %s245 = sand.u32 %s9, 1
        %s246 = smul.addr %s245, 4
        %s247 = scalar_lea.vmem [#allocation3], %s246
      $region84: #{custom-call.12} parent=5 // pred_fallthru
        _
    $region6: #{custom-call.12} parent=1 // loop_footer
      %s7 = sadd.s32 1, %s3
    $region7: #{custom-call.12} parent=1 // loop_footer_branch
      %2 = sbr.rel target = $region3
    $region8: #{custom-call.12} parent=1 // loop_exit
      _

// kernel: scripted_predictor_forward.1
$region0: #{scripted_predictor_forward.1}
  #allocation0 [shape = 'u32[]', space=smem, size = 0x4, offset = 0x4, fixed_abs, tag = 'smem constant byte address 0x4 - core index']
  #allocation1 [shape = 'u32[72,128]{1,0:T(1,128)}', space=vmem, size = 0x9000, scoped, tag = 'internal scratch']
  #allocation2 [shape = 'f32[128,128]{1,0:T(8,128)}', space=vmem, size = 0x10000, scoped, tag = 'scratch operand']
  %s0 = inlined_call_operand.vmem [shape: bf16[32,192], index: 0, kind: input, shape index: {}]
  %s1 = inlined_call_operand.vmem [shape: bf16[192,32], index: 1, kind: input, shape index: {}]
  %s2 = inlined_call_operand.vmem [shape: f32[1,32], index: 2, kind: input, shape index: {}]
  %s3 = inlined_call_operand.vmem [shape: bf16[32,36], index: 3, kind: input, shape index: {}]
  %s4 = inlined_call_operand.vmem [shape: f32[1,36], index: 4, kind: input, shape index: {}]
  %s5 = inlined_call_operand.vmem [shape: f32[32,8], index: 5, kind: input, shape index: {}]
  %s6 = inlined_call_operand.vmem [shape: f32[32,16], index: 6, kind: input, shape index: {}]
  %s7 = inlined_call_operand.vmem [shape: f32[256,8], index: 7, kind: output, shape index: {}]
  %s8 = sld [smem:[#allocation0]]
  $region45: #{scripted_predictor_forward.1} parent=0
    _
  %s10 = ssub.s32 1, %s8
  %s11 = scalar_select 0, %s10, %s8
  // Predicated region
  $region2: #{scripted_predictor_forward.1} parent=0 // pred_check
    _
  $region3: #{scripted_predictor_forward.1} parent=0 // pred_check_branch
    %13 = sbr.rel (0) target = $region5
  $region4: #{scripted_predictor_forward.1} parent=0 // pred_region
    _
  $region5: #{scripted_predictor_forward.1} parent=0 // pred_fallthru
    _
  // Predicated region
  $region6: #{scripted_predictor_forward.1} parent=0 // pred_check
    _
  $region7: #{scripted_predictor_forward.1} parent=0 // pred_check_branch
    %15 = sbr.rel (0) target = $region9
  $region8: #{scripted_predictor_forward.1} parent=0 // pred_region
    _
  $region9: #{scripted_predictor_forward.1} parent=0 // pred_fallthru
    _
  // Predicated region
  $region10: #{scripted_predictor_forward.1} parent=0 // pred_check
    _
  $region11: #{scripted_predictor_forward.1} parent=0 // pred_check_branch
    %17 = sbr.rel (0) target = $region13
  $region12: #{scripted_predictor_forward.1} parent=0 // pred_region
    _
  $region13: #{scripted_predictor_forward.1} parent=0 // pred_fallthru
    _
  // Predicated region
  $region14: #{scripted_predictor_forward.1} parent=0 // pred_check
    _
  $region15: #{scripted_predictor_forward.1} parent=0 // pred_check_branch
    %19 = sbr.rel (0) target = $region17
  $region16: #{scripted_predictor_forward.1} parent=0 // pred_region
    _
  $region17: #{scripted_predictor_forward.1} parent=0 // pred_fallthru
    _
  // Predicated region
  $region18: #{scripted_predictor_forward.1} parent=0 // pred_check
    _
  $region19: #{scripted_predictor_forward.1} parent=0 // pred_check_branch
    %21 = sbr.rel (0) target = $region21
  $region20: #{scripted_predictor_forward.1} parent=0 // pred_region
    _
  $region21: #{scripted_predictor_forward.1} parent=0 // pred_fallthru
    _
  // Predicated region
  $region22: #{scripted_predictor_forward.1} parent=0 // pred_check
    _
  $region23: #{scripted_predictor_forward.1} parent=0 // pred_check_branch
    %23 = sbr.rel (0) target = $region25
  $region24: #{scripted_predictor_forward.1} parent=0 // pred_region
    _
  $region25: #{scripted_predictor_forward.1} parent=0 // pred_fallthru
    _
  // Predicated region
  $region26: #{scripted_predictor_forward.1} parent=0 // pred_check
    _
  $region27: #{scripted_predictor_forward.1} parent=0 // pred_check_branch
    %25 = sbr.rel (0) target = $region29
  $region28: #{scripted_predictor_forward.1} parent=0 // pred_region
    _
  $region29: #{scripted_predictor_forward.1} parent=0 // pred_fallthru
    _
  %v27 = vld [vmem:[%s0] sm:$0xff]
  %v28 = vld [vmem:[%s0 + $0x8] sm:$0xff]
  %v29 = vld [vmem:[%s0 + $0x10] sm:$0xff]
  %v30 = vld [vmem:[%s0 + $0x18] sm:$0xff]
  %v31 = vld [vmem:[%s1] sm:$0xf]
  %v32 = vld [vmem:[%s1 + $0x4] sm:$0xf]
  %v33 = vld [vmem:[%s1 + $0x8] sm:$0xf]
  %v34 = vld [vmem:[%s1 + $0xc] sm:$0xf]
  %v35 = vld [vmem:[%s1 + $0x10] sm:$0xf]
  %v36 = vld [vmem:[%s1 + $0x14] sm:$0xf]
  %v37 = vld [vmem:[%s1 + $0x18] sm:$0xf]
  %v38 = vld [vmem:[%s1 + $0x1c] sm:$0xf]
  %v39 = vld [vmem:[%s1 + $0x20] sm:$0xf]
  %v40 = vld [vmem:[%s1 + $0x24] sm:$0xf]
  %v41 = vld [vmem:[%s1 + $0x28] sm:$0xf]
  %v42 = vld [vmem:[%s1 + $0x2c] sm:$0xf]
  %v43 = vld [vmem:[%s1 + $0x30] sm:$0xf]
  %v44 = vld [vmem:[%s1 + $0x34] sm:$0xf]
  %v45 = vld [vmem:[%s1 + $0x38] sm:$0xf]
  %v46 = vld [vmem:[%s1 + $0x3c] sm:$0xf]
  %v47 = vld [vmem:[%s1 + $0x40] sm:$0xf]
  %v48 = vld [vmem:[%s1 + $0x44] sm:$0xf]
  %v49 = vld [vmem:[%s1 + $0x48] sm:$0xf]
  %v50 = vld [vmem:[%s1 + $0x4c] sm:$0xf]
  %v51 = vld [vmem:[%s1 + $0x50] sm:$0xf]
  %v52 = vld [vmem:[%s1 + $0x54] sm:$0xf]
  %v53 = vld [vmem:[%s1 + $0x58] sm:$0xf]
  %v54 = vld [vmem:[%s1 + $0x5c] sm:$0xf]
  %v55 = vld [vmem:[%s2] sm:$0x1]
  %v57 = vperm.slane %v55, 0
  %v63 = vunpack.c.l.b16 %v27
  %v64 = vunpack.c.h.b16 %v27
  %v65 = vunpack.c.l.b16 %v28
  %v66 = vunpack.c.h.b16 %v28
  %v67 = vunpack.c.l.b16 %v29
  %v68 = vunpack.c.h.b16 %v29
  %v69 = vunpack.c.l.b16 %v30
  %v70 = vunpack.c.h.b16 %v30
  %v71 = vpack.c.b16 %v65, %v63
  %v72 = vpack.c.b16 %v66, %v64
  %v73 = vpack.c.b16 %v69, %v67
  %v74 = vpack.c.b16 %v70, %v68
  %v101 = vunpack.c.l.b16 %v31
  %v102 = vunpack.c.l.b16 %v32
  %v103 = vunpack.c.l.b16 %v33
  %v104 = vunpack.c.l.b16 %v34
  %v105 = vunpack.c.l.b16 %v35
  %v106 = vunpack.c.l.b16 %v36
  %v107 = vunpack.c.l.b16 %v37
  %v108 = vunpack.c.l.b16 %v38
  %v109 = vunpack.c.l.b16 %v39
  %v110 = vunpack.c.l.b16 %v40
  %v111 = vunpack.c.l.b16 %v41
  %v112 = vunpack.c.l.b16 %v42
  %v113 = vunpack.c.l.b16 %v43
  %v114 = vunpack.c.l.b16 %v44
  %v115 = vunpack.c.l.b16 %v45
  %v116 = vunpack.c.l.b16 %v46
  %v117 = vunpack.c.l.b16 %v47
  %v118 = vunpack.c.l.b16 %v48
  %v119 = vunpack.c.l.b16 %v49
  %v120 = vunpack.c.l.b16 %v50
  %v121 = vunpack.c.l.b16 %v51
  %v122 = vunpack.c.l.b16 %v52
  %v123 = vunpack.c.l.b16 %v53
  %v124 = vunpack.c.l.b16 %v54
  %v125 = vpack.c.b16 %v102, %v101
  %v126 = vpack.c.b16 %v104, %v103
  %v127 = vpack.c.b16 %v106, %v105
  %v128 = vpack.c.b16 %v108, %v107
  %v129 = vpack.c.b16 %v110, %v109
  %v130 = vpack.c.b16 %v112, %v111
  %v131 = vpack.c.b16 %v114, %v113
  %v132 = vpack.c.b16 %v116, %v115
  %v133 = vpack.c.b16 %v118, %v117
  %v134 = vpack.c.b16 %v120, %v119
  %v135 = vpack.c.b16 %v122, %v121
  %v136 = vpack.c.b16 %v124, %v123
  %vm149 = vcmask 523264
  %v151 = vsel %vm149, %v72, 0
  %v154 = vsel %vm149, %v74, 0
  %156 = vmatpush.bf16.msra.mxu0 %v132
  %157 = vmatpush.bf16.msra.mxu0 %v131
  %158 = vmatpush.bf16.msra.mxu0 %v130
  %159 = vmatpush.bf16.msra.mxu0 %v129
  %160 = vmatpush.bf16.msra.mxu0 %v128
  %161 = vmatpush.bf16.msra.mxu0 %v127
  %162 = vmatpush.bf16.msra.mxu0 %v126
  %163 = vmatpush.bf16.msra.mxu0 %v125
  %164 = vmatmul.bf16.gmra.mxu0 %v71
  %v165 = vpop.f32.mrf.mxu0
  %v166 = vadd.f32 %v57, %v165
  %v167 = vpop.f32.mrf.mxu0
  %v168 = vadd.f32 %v57, %v167
  %169 = vmatmul.bf16.gmra.mxu0 %v73
  %v170 = vpop.f32.mrf.mxu0
  %v171 = vadd.f32 %v57, %v170
  %v172 = vpop.f32.mrf.mxu0
  %v173 = vadd.f32 %v57, %v172
  %174 = vdwg.mxu0
  %175 = vmatpush.bf16.msra.mxu0 0
  %176 = vmatpush.bf16.msra.mxu0 0
  %177 = vmatpush.bf16.msra.mxu0 0
  %178 = vmatpush.bf16.msra.mxu0 0
  %179 = vmatpush.bf16.msra.mxu0 %v136
  %180 = vmatpush.bf16.msra.mxu0 %v135
  %181 = vmatpush.bf16.msra.mxu0 %v134
  %182 = vmatpush.bf16.msra.mxu0 %v133
  %183 = vmatmul.bf16.gmra.mxu0 %v151
  %v184 = vpop.f32.mrf.mxu0
  %v185 = vadd.f32 %v166, %v184
  %v186 = vpop.f32.mrf.mxu0
  %v187 = vadd.f32 %v168, %v186
  %188 = vmatmul.bf16.gmra.mxu0 %v154
  %v189 = vpop.f32.mrf.mxu0
  %v190 = vadd.f32 %v171, %v189
  %v191 = vpop.f32.mrf.mxu0
  %v192 = vadd.f32 %v173, %v191
  %193 = vdwg.mxu0
  %v194 = vmax.f32 %v185, 0.0
  %v195 = vmax.f32 %v187, 0.0
  %v196 = vmax.f32 %v190, 0.0
  %v197 = vmax.f32 %v192, 0.0
  %v198 = vpack.c.bf16 %v195, %v194
  %v199 = vpack.c.bf16 %v197, %v196
  %v200 = vld [vmem:[%s3] sm:$0xf]
  %v201 = vld [vmem:[%s3 + $0x4] sm:$0xf]
  %v202 = vld [vmem:[%s3 + $0x8] sm:$0xf]
  %v203 = vld [vmem:[%s3 + $0xc] sm:$0xf]
  %v204 = vld [vmem:[%s4] sm:$0x1]
  %v206 = vperm.slane %v204, 0
  %v212 = vunpack.c.l.b16 %v200
  %v213 = vunpack.c.l.b16 %v201
  %v214 = vunpack.c.l.b16 %v202
  %v215 = vunpack.c.l.b16 %v203
  %v216 = vpack.c.b16 %v213, %v212
  %v217 = vpack.c.b16 %v215, %v214
  %vm220 = vcmask 261120
  %v222 = vsel %vm220, %v198, 0
  %v225 = vsel %vm220, %v199, 0
  %227 = vmatpush.bf16.msra.mxu0 0
  %228 = vmatpush.bf16.msra.mxu0 0
  %229 = vmatpush.bf16.msra.mxu0 0
  %230 = vmatpush.bf16.msra.mxu0 0
  %231 = vmatpush.bf16.msra.mxu0 0
  %232 = vmatpush.bf16.msra.mxu0 0
  %233 = vmatpush.bf16.msra.mxu0 %v217
  %234 = vmatpush.bf16.msra.mxu0 %v216
  %235 = vmatmul.bf16.gmra.mxu0 %v222
  %v236 = vpop.f32.mrf.mxu0
  %v237 = vadd.f32 %v206, %v236
  %v238 = vpop.f32.mrf.mxu0
  %v239 = vadd.f32 %v206, %v238
  %240 = vmatmul.bf16.gmra.mxu0 %v225
  %v241 = vpop.f32.mrf.mxu0
  %v242 = vadd.f32 %v206, %v241
  %v243 = vpop.f32.mrf.mxu0
  %v244 = vadd.f32 %v206, %v243
  %245 = vdwg.mxu0
  %v246 = vxor.u32 %v237, 2147483648
  %v247 = vxor.u32 %v239, 2147483648
  %v248 = vxor.u32 %v242, 2147483648
  %v249 = vxor.u32 %v244, 2147483648
  %v250 = vmul.f32 %v246, 1.442695
  %v251 = vpow.pop %v250
  %v252 = vmul.f32 %v247, 1.442695
  %v253 = vpow.pop %v252
  %v254 = vmul.f32 %v248, 1.442695
  %v255 = vpow.pop %v254
  %v256 = vmul.f32 %v249, 1.442695
  %v257 = vpow.pop %v256
  %v258 = vadd.f32 %v251, 1.0
  %v259 = vadd.f32 %v253, 1.0
  %v260 = vadd.f32 %v255, 1.0
  %v261 = vadd.f32 %v257, 1.0
  %v262 = vrcp.pop %v258
  %v263 = vmul.f32 %v258, %v262
  %v264 = vsub.f32 1.0, %v263
  %v265 = vmul.f32 %v262, %v264
  %v266 = vadd.f32 %v262, %v265
  %vm267 = vweird.f32 %v258
  %vm268 = vweird.f32 %v262
  %vm269 = vmor %vm267, %vm268
  %v270 = vsel %vm269, %v262, %v266
  %v271 = vand.u32 2147483647, %v258
  %vm272 = vcmp.eq.f32.partialorder %v271, 8.507059e+37
  %v273 = vand.u32 %v258, 2147483648
  %v274 = vor.u32 1.1754944e-38, %v273
  %v275 = vsel %vm272, %v274, %v270
  %v276 = vmul.f32 1.0, %v275
  %v277 = vrcp.pop %v259
  %v278 = vmul.f32 %v259, %v277
  %v279 = vsub.f32 1.0, %v278
  %v280 = vmul.f32 %v277, %v279
  %v281 = vadd.f32 %v277, %v280
  %vm282 = vweird.f32 %v259
  %vm283 = vweird.f32 %v277
  %vm284 = vmor %vm282, %vm283
  %v285 = vsel %vm284, %v277, %v281
  %v286 = vand.u32 2147483647, %v259
  %vm287 = vcmp.eq.f32.partialorder %v286, 8.507059e+37
  %v288 = vand.u32 %v259, 2147483648
  %v289 = vor.u32 1.1754944e-38, %v288
  %v290 = vsel %vm287, %v289, %v285
  %v291 = vmul.f32 1.0, %v290
  %v292 = vrcp.pop %v260
  %v293 = vmul.f32 %v260, %v292
  %v294 = vsub.f32 1.0, %v293
  %v295 = vmul.f32 %v292, %v294
  %v296 = vadd.f32 %v292, %v295
  %vm297 = vweird.f32 %v260
  %vm298 = vweird.f32 %v292
  %vm299 = vmor %vm297, %vm298
  %v300 = vsel %vm299, %v292, %v296
  %v301 = vand.u32 2147483647, %v260
  %vm302 = vcmp.eq.f32.partialorder %v301, 8.507059e+37
  %v303 = vand.u32 %v260, 2147483648
  %v304 = vor.u32 1.1754944e-38, %v303
  %v305 = vsel %vm302, %v304, %v300
  %v306 = vmul.f32 1.0, %v305
  %v307 = vrcp.pop %v261
  %v308 = vmul.f32 %v261, %v307
  %v309 = vsub.f32 1.0, %v308
  %v310 = vmul.f32 %v307, %v309
  %v311 = vadd.f32 %v307, %v310
  %vm312 = vweird.f32 %v261
  %vm313 = vweird.f32 %v307
  %vm314 = vmor %vm312, %vm313
  %v315 = vsel %vm314, %v307, %v311
  %v316 = vand.u32 2147483647, %v261
  %vm317 = vcmp.eq.f32.partialorder %v316, 8.507059e+37
  %v318 = vand.u32 %v261, 2147483648
  %v319 = vor.u32 1.1754944e-38, %v318
  %v320 = vsel %vm317, %v319, %v315
  %v321 = vmul.f32 1.0, %v320
  %v322 = vsel %vm220, %v237, -inf
  %323 = vmax.xlane.f32.xlu0 %v322
  %v324 = vpop.xlane.xlu0 %323
  %v325 = vsel %vm220, %v239, -inf
  %326 = vmax.xlane.f32.xlu0 %v325
  %v327 = vpop.xlane.xlu0 %326
  %v328 = vsel %vm220, %v242, -inf
  %329 = vmax.xlane.f32.xlu0 %v328
  %v330 = vpop.xlane.xlu0 %329
  %v331 = vsel %vm220, %v244, -inf
  %332 = vmax.xlane.f32.xlu0 %v331
  %v333 = vpop.xlane.xlu0 %332
  %v334 = vsub.f32 %v237, %v324
  %v335 = vsub.f32 %v239, %v327
  %v336 = vsub.f32 %v242, %v330
  %v337 = vsub.f32 %v244, %v333
  %v338 = vmul.f32 %v334, 1.442695
  %v339 = vpow.pop %v338
  %v340 = vmul.f32 %v335, 1.442695
  %v341 = vpow.pop %v340
  %v342 = vmul.f32 %v336, 1.442695
  %v343 = vpow.pop %v342
  %v344 = vmul.f32 %v337, 1.442695
  %v345 = vpow.pop %v344
  %v346 = vld [vmem:[%s5] sm:$0xff]
  %v347 = vld [vmem:[%s5 + $0x8] sm:$0xff]
  %v348 = vld [vmem:[%s5 + $0x10] sm:$0xff]
  %v349 = vld [vmem:[%s5 + $0x18] sm:$0xff]
  %v351 = vsel %vm220, %v339, 0
  %v354 = vsel %vm220, %v341, 0
  %v357 = vsel %vm220, %v343, 0
  %v360 = vsel %vm220, %v345, 0
  %362 = vmatpush.msra.mxu0 0.0
  %363 = vmatpush.msra.mxu0 0.0
  %364 = vmatpush.msra.mxu0 0.0
  %365 = vmatpush.msra.mxu0 0.0
  %366 = vmatpush.msra.mxu0 0.0
  %367 = vmatpush.msra.mxu0 0.0
  %368 = vmatpush.msra.mxu0 0.0
  %369 = vmatpush.msra.mxu0 0.0
  %370 = vmatpush.msra.mxu0 0.0
  %371 = vmatpush.msra.mxu0 0.0
  %372 = vmatpush.msra.mxu0 0.0
  %373 = vmatpush.msra.mxu0 0.0
  %374 = vmatpush.msra.mxu0 %v349
  %375 = vmatpush.msra.mxu0 %v348
  %376 = vmatpush.msra.mxu0 %v347
  %377 = vmatpush.msra.mxu0 %v346
  %378 = vmatmul.f32.gmra.mxu0 %v351
  %v379 = vpop.f32.mrf.mxu0
  %v380 = vadd.f32 0.0, %v379
  %381 = vmatmul.f32.gmra.mxu0 %v354
  %v382 = vpop.f32.mrf.mxu0
  %v383 = vadd.f32 0.0, %v382
  %384 = vmatmul.f32.gmra.mxu0 %v357
  %v385 = vpop.f32.mrf.mxu0
  %v386 = vadd.f32 0.0, %v385
  %387 = vmatmul.f32.gmra.mxu0 %v360
  %v388 = vpop.f32.mrf.mxu0
  %v389 = vadd.f32 0.0, %v388
  %390 = vdwg.mxu0
  %v391 = vmax.f32 %v380, 1e-30
  %v392 = vmax.f32 %v383, 1e-30
  %v393 = vmax.f32 %v386, 1e-30
  %v394 = vmax.f32 %v389, 1e-30
  %v395 = vrcp.pop %v391
  %v396 = vrcp.pop %v392
  %v397 = vrcp.pop %v393
  %v398 = vrcp.pop %v394
  %403 = vrot.lane.b32.xlu0 %v395, 4
  %v404 = vpop.permute.xlu0 %403
  %405 = vrot.lane.b32.xlu0 %v396, 4
  %v406 = vpop.permute.xlu0 %405
  %407 = vrot.lane.b32.xlu0 %v397, 4
  %v408 = vpop.permute.xlu0 %407
  %409 = vrot.lane.b32.xlu0 %v398, 4
  %v410 = vpop.permute.xlu0 %409
  %v415 = vmul.f32 %v380, %v404
  %v416 = vmul.f32 %v383, %v406
  %v417 = vmul.f32 %v386, %v408
  %v418 = vmul.f32 %v389, %v410
  %v419 = vlaneseq
  %v420 = vshrl.u32 %v419, 7
  %v421 = vadd.s32 %v420, 8
  %v422 = vadd.s32 %v420, 16
  %v423 = vadd.s32 %v420, 24
  %v424 = vand.u32 %v420, 15
  %v425 = vand.u32 %v421, 15
  %v426 = vand.u32 %v422, 15
  %v427 = vand.u32 %v423, 15
  %v428 = vand.u32 %v424, 3
  %v429 = vand.u32 %v425, 3
  %v430 = vand.u32 %v426, 3
  %v431 = vand.u32 %v427, 3
  %v432 = vcvt.s32.f32 %v428
  %v433 = vcvt.s32.f32 %v429
  %v434 = vcvt.s32.f32 %v430
  %v435 = vcvt.s32.f32 %v431
  %v436 = vmul.f32 %v432, 8.0
  %v437 = vmul.f32 %v433, 8.0
  %v438 = vmul.f32 %v434, 8.0
  %v439 = vmul.f32 %v435, 8.0
  %v440 = vshra.s32 %v424, 2
  %v441 = vshra.s32 %v425, 2
  %v442 = vshra.s32 %v426, 2
  %v443 = vshra.s32 %v427, 2
  %v444 = vcvt.s32.f32 %v440
  %v445 = vcvt.s32.f32 %v441
  %v446 = vcvt.s32.f32 %v442
  %v447 = vcvt.s32.f32 %v443
  %v448 = vmul.f32 %v444, 8.0
  %v449 = vmul.f32 %v445, 8.0
  %v450 = vmul.f32 %v446, 8.0
  %v451 = vmul.f32 %v447, 8.0
  %v452 = vsub.f32 %v436, %v415
  %v453 = vsub.f32 %v437, %v416
  %v454 = vsub.f32 %v438, %v417
  %v455 = vsub.f32 %v439, %v418
  %v456 = vsub.f32 %v448, %v415
  %v457 = vsub.f32 %v449, %v416
  %v458 = vsub.f32 %v450, %v417
  %v459 = vsub.f32 %v451, %v418
  %v460 = vadd.f32 %v436, %v415
  %v461 = vadd.f32 %v437, %v416
  %v462 = vadd.f32 %v438, %v417
  %v463 = vadd.f32 %v439, %v418
  %v464 = vadd.f32 %v448, %v415
  %v465 = vadd.f32 %v449, %v416
  %v466 = vadd.f32 %v450, %v417
  %v467 = vadd.f32 %v451, %v418
  %v468 = vld [vmem:[%s6] sm:$0xff]
  %v469 = vld [vmem:[%s6 + $0x8] sm:$0xff]
  %v470 = vld [vmem:[%s6 + $0x10] sm:$0xff]
  %v471 = vld [vmem:[%s6 + $0x18] sm:$0xff]
  %476 = vrot.lane.b32.xlu0 %v452, 2
  %v477 = vpop.permute.xlu0 %476
  %478 = vrot.lane.b32.xlu0 %v453, 2
  %v479 = vpop.permute.xlu0 %478
  %480 = vrot.lane.b32.xlu0 %v454, 2
  %v481 = vpop.permute.xlu0 %480
  %482 = vrot.lane.b32.xlu0 %v455, 2
  %v483 = vpop.permute.xlu0 %482
  %v488 = vmul.f32 %v468, %v477
  %v489 = vmul.f32 %v469, %v479
  %v490 = vmul.f32 %v470, %v481
  %v491 = vmul.f32 %v471, %v483
  %496 = vrot.lane.b32.xlu0 %v456, 2
  %v497 = vpop.permute.xlu0 %496
  %498 = vrot.lane.b32.xlu0 %v457, 2
  %v499 = vpop.permute.xlu0 %498
  %500 = vrot.lane.b32.xlu0 %v458, 2
  %v501 = vpop.permute.xlu0 %500
  %502 = vrot.lane.b32.xlu0 %v459, 2
  %v503 = vpop.permute.xlu0 %502
  %v508 = vmul.f32 %v468, %v497
  %v509 = vmul.f32 %v469, %v499
  %v510 = vmul.f32 %v470, %v501
  %v511 = vmul.f32 %v471, %v503
  %516 = vrot.lane.b32.xlu0 %v508, 127
  %v517 = vpop.permute.xlu0 %516
  %518 = vrot.lane.b32.xlu0 %v509, 127
  %v519 = vpop.permute.xlu0 %518
  %520 = vrot.lane.b32.xlu0 %v510, 127
  %v521 = vpop.permute.xlu0 %520
  %522 = vrot.lane.b32.xlu0 %v511, 127
  %v523 = vpop.permute.xlu0 %522
  %v528 = vadd.f32 %v488, %v517
  %v529 = vadd.f32 %v489, %v519
  %v530 = vadd.f32 %v490, %v521
  %v531 = vadd.f32 %v491, %v523
  %536 = vrot.lane.b32.xlu0 %v468, 126
  %v537 = vpop.permute.xlu0 %536
  %538 = vrot.lane.b32.xlu0 %v469, 126
  %v539 = vpop.permute.xlu0 %538
  %540 = vrot.lane.b32.xlu0 %v470, 126
  %v541 = vpop.permute.xlu0 %540
  %542 = vrot.lane.b32.xlu0 %v471, 126
  %v543 = vpop.permute.xlu0 %542
  %v548 = vadd.f32 %v528, %v537
  %v549 = vadd.f32 %v529, %v539
  %v550 = vadd.f32 %v530, %v541
  %v551 = vadd.f32 %v531, %v543
  %v552 = vand.u32 2147483647, %v548
  %v553 = vand.u32 2147483647, %v549
  %v554 = vand.u32 2147483647, %v550
  %v555 = vand.u32 2147483647, %v551
  %vm556 = vcmp.lt.f32.partialorder %v552, 1e-08
  %vm557 = vcmp.lt.f32.partialorder %v553, 1e-08
  %vm558 = vcmp.lt.f32.partialorder %v554, 1e-08
  %vm559 = vcmp.lt.f32.partialorder %v555, 1e-08
  %v560 = vsel %vm556, 1e-08, %v548
  %v561 = vsel %vm557, 1e-08, %v549
  %v562 = vsel %vm558, 1e-08, %v550
  %v563 = vsel %vm559, 1e-08, %v551
  %v564 = vrcp.pop %v560
  %v565 = vrcp.pop %v561
  %v566 = vrcp.pop %v562
  %v567 = vrcp.pop %v563
  %568 = vrot.lane.b32.xlu0 %v452, 124
  %v569 = vpop.permute.xlu0 %568
  %570 = vrot.lane.b32.xlu0 %v453, 124
  %v571 = vpop.permute.xlu0 %570
  %572 = vrot.lane.b32.xlu0 %v454, 124
  %v573 = vpop.permute.xlu0 %572
  %574 = vrot.lane.b32.xlu0 %v455, 124
  %v575 = vpop.permute.xlu0 %574
  %v580 = vmul.f32 %v468, %v569
  %v581 = vmul.f32 %v469, %v571
  %v582 = vmul.f32 %v470, %v573
  %v583 = vmul.f32 %v471, %v575
  %584 = vrot.lane.b32.xlu0 %v456, 124
  %v585 = vpop.permute.xlu0 %584
  %586 = vrot.lane.b32.xlu0 %v457, 124
  %v587 = vpop.permute.xlu0 %586
  %588 = vrot.lane.b32.xlu0 %v458, 124
  %v589 = vpop.permute.xlu0 %588
  %590 = vrot.lane.b32.xlu0 %v459, 124
  %v591 = vpop.permute.xlu0 %590
  %v596 = vmul.f32 %v468, %v585
  %v597 = vmul.f32 %v469, %v587
  %v598 = vmul.f32 %v470, %v589
  %v599 = vmul.f32 %v471, %v591
  %604 = vrot.lane.b32.xlu0 %v596, 127
  %v605 = vpop.permute.xlu0 %604
  %606 = vrot.lane.b32.xlu0 %v597, 127
  %v607 = vpop.permute.xlu0 %606
  %608 = vrot.lane.b32.xlu0 %v598, 127
  %v609 = vpop.permute.xlu0 %608
  %610 = vrot.lane.b32.xlu0 %v599, 127
  %v611 = vpop.permute.xlu0 %610
  %v616 = vadd.f32 %v580, %v605
  %v617 = vadd.f32 %v581, %v607
  %v618 = vadd.f32 %v582, %v609
  %v619 = vadd.f32 %v583, %v611
  %v620 = vadd.f32 %v616, %v537
  %v621 = vadd.f32 %v617, %v539
  %v622 = vadd.f32 %v618, %v541
  %v623 = vadd.f32 %v619, %v543
  %628 = vrot.lane.b32.xlu0 %v564, 122
  %v629 = vpop.permute.xlu0 %628
  %630 = vrot.lane.b32.xlu0 %v565, 122
  %v631 = vpop.permute.xlu0 %630
  %632 = vrot.lane.b32.xlu0 %v566, 122
  %v633 = vpop.permute.xlu0 %632
  %634 = vrot.lane.b32.xlu0 %v567, 122
  %v635 = vpop.permute.xlu0 %634
  %v640 = vmul.f32 %v620, %v629
  %v641 = vmul.f32 %v621, %v631
  %v642 = vmul.f32 %v622, %v633
  %v643 = vmul.f32 %v623, %v635
  %644 = vrot.lane.b32.xlu0 %v452, 127
  %v645 = vpop.permute.xlu0 %644
  %646 = vrot.lane.b32.xlu0 %v453, 127
  %v647 = vpop.permute.xlu0 %646
  %648 = vrot.lane.b32.xlu0 %v454, 127
  %v649 = vpop.permute.xlu0 %648
  %650 = vrot.lane.b32.xlu0 %v455, 127
  %v651 = vpop.permute.xlu0 %650
  %v656 = vmul.f32 %v468, %v645
  %v657 = vmul.f32 %v469, %v647
  %v658 = vmul.f32 %v470, %v649
  %v659 = vmul.f32 %v471, %v651
  %660 = vrot.lane.b32.xlu0 %v456, 127
  %v661 = vpop.permute.xlu0 %660
  %662 = vrot.lane.b32.xlu0 %v457, 127
  %v663 = vpop.permute.xlu0 %662
  %664 = vrot.lane.b32.xlu0 %v458, 127
  %v665 = vpop.permute.xlu0 %664
  %666 = vrot.lane.b32.xlu0 %v459, 127
  %v667 = vpop.permute.xlu0 %666
  %v672 = vmul.f32 %v468, %v661
  %v673 = vmul.f32 %v469, %v663
  %v674 = vmul.f32 %v470, %v665
  %v675 = vmul.f32 %v471, %v667
  %680 = vrot.lane.b32.xlu0 %v672, 127
  %v681 = vpop.permute.xlu0 %680
  %682 = vrot.lane.b32.xlu0 %v673, 127
  %v683 = vpop.permute.xlu0 %682
  %684 = vrot.lane.b32.xlu0 %v674, 127
  %v685 = vpop.permute.xlu0 %684
  %686 = vrot.lane.b32.xlu0 %v675, 127
  %v687 = vpop.permute.xlu0 %686
  %v692 = vadd.f32 %v656, %v681
  %v693 = vadd.f32 %v657, %v683
  %v694 = vadd.f32 %v658, %v685
  %v695 = vadd.f32 %v659, %v687
  %v696 = vadd.f32 %v692, %v537
  %v697 = vadd.f32 %v693, %v539
  %v698 = vadd.f32 %v694, %v541
  %v699 = vadd.f32 %v695, %v543
  %700 = vrot.lane.b32.xlu0 %v564, 125
  %v701 = vpop.permute.xlu0 %700
  %702 = vrot.lane.b32.xlu0 %v565, 125
  %v703 = vpop.permute.xlu0 %702
  %704 = vrot.lane.b32.xlu0 %v566, 125
  %v705 = vpop.permute.xlu0 %704
  %706 = vrot.lane.b32.xlu0 %v567, 125
  %v707 = vpop.permute.xlu0 %706
  %v712 = vmul.f32 %v696, %v701
  %v713 = vmul.f32 %v697, %v703
  %v714 = vmul.f32 %v698, %v705
  %v715 = vmul.f32 %v699, %v707
  %v716 = vmul.f32 %v468, %v460
  %v717 = vmul.f32 %v469, %v461
  %v718 = vmul.f32 %v470, %v462
  %v719 = vmul.f32 %v471, %v463
  %v720 = vadd.f32 %v716, %v517
  %v721 = vadd.f32 %v717, %v519
  %v722 = vadd.f32 %v718, %v521
  %v723 = vadd.f32 %v719, %v523
  %v724 = vadd.f32 %v720, %v537
  %v725 = vadd.f32 %v721, %v539
  %v726 = vadd.f32 %v722, %v541
  %v727 = vadd.f32 %v723, %v543
  %v728 = vand.u32 2147483647, %v724
  %v729 = vand.u32 2147483647, %v725
  %v730 = vand.u32 2147483647, %v726
  %v731 = vand.u32 2147483647, %v727
  %vm732 = vcmp.lt.f32.partialorder %v728, 1e-08
  %vm733 = vcmp.lt.f32.partialorder %v729, 1e-08
  %vm734 = vcmp.lt.f32.partialorder %v730, 1e-08
  %vm735 = vcmp.lt.f32.partialorder %v731, 1e-08
  %v736 = vsel %vm732, 1e-08, %v724
  %v737 = vsel %vm733, 1e-08, %v725
  %v738 = vsel %vm734, 1e-08, %v726
  %v739 = vsel %vm735, 1e-08, %v727
  %v740 = vrcp.pop %v736
  %v741 = vrcp.pop %v737
  %v742 = vrcp.pop %v738
  %v743 = vrcp.pop %v739
  %748 = vrot.lane.b32.xlu0 %v460, 122
  %v749 = vpop.permute.xlu0 %748
  %750 = vrot.lane.b32.xlu0 %v461, 122
  %v751 = vpop.permute.xlu0 %750
  %752 = vrot.lane.b32.xlu0 %v462, 122
  %v753 = vpop.permute.xlu0 %752
  %754 = vrot.lane.b32.xlu0 %v463, 122
  %v755 = vpop.permute.xlu0 %754
  %v760 = vmul.f32 %v468, %v749
  %v761 = vmul.f32 %v469, %v751
  %v762 = vmul.f32 %v470, %v753
  %v763 = vmul.f32 %v471, %v755
  %v764 = vadd.f32 %v760, %v605
  %v765 = vadd.f32 %v761, %v607
  %v766 = vadd.f32 %v762, %v609
  %v767 = vadd.f32 %v763, %v611
  %v768 = vadd.f32 %v764, %v537
  %v769 = vadd.f32 %v765, %v539
  %v770 = vadd.f32 %v766, %v541
  %v771 = vadd.f32 %v767, %v543
  %776 = vrot.lane.b32.xlu0 %v740, 122
  %v777 = vpop.permute.xlu0 %776
  %778 = vrot.lane.b32.xlu0 %v741, 122
  %v779 = vpop.permute.xlu0 %778
  %780 = vrot.lane.b32.xlu0 %v742, 122
  %v781 = vpop.permute.xlu0 %780
  %782 = vrot.lane.b32.xlu0 %v743, 122
  %v783 = vpop.permute.xlu0 %782
  %v788 = vmul.f32 %v768, %v777
  %v789 = vmul.f32 %v769, %v779
  %v790 = vmul.f32 %v770, %v781
  %v791 = vmul.f32 %v771, %v783
  %792 = vrot.lane.b32.xlu0 %v460, 125
  %v793 = vpop.permute.xlu0 %792
  %794 = vrot.lane.b32.xlu0 %v461, 125
  %v795 = vpop.permute.xlu0 %794
  %796 = vrot.lane.b32.xlu0 %v462, 125
  %v797 = vpop.permute.xlu0 %796
  %798 = vrot.lane.b32.xlu0 %v463, 125
  %v799 = vpop.permute.xlu0 %798
  %v804 = vmul.f32 %v468, %v793
  %v805 = vmul.f32 %v469, %v795
  %v806 = vmul.f32 %v470, %v797
  %v807 = vmul.f32 %v471, %v799
  %v808 = vadd.f32 %v804, %v681
  %v809 = vadd.f32 %v805, %v683
  %v810 = vadd.f32 %v806, %v685
  %v811 = vadd.f32 %v807, %v687
  %v812 = vadd.f32 %v808, %v537
  %v813 = vadd.f32 %v809, %v539
  %v814 = vadd.f32 %v810, %v541
  %v815 = vadd.f32 %v811, %v543
  %816 = vrot.lane.b32.xlu0 %v740, 125
  %v817 = vpop.permute.xlu0 %816
  %818 = vrot.lane.b32.xlu0 %v741, 125
  %v819 = vpop.permute.xlu0 %818
  %820 = vrot.lane.b32.xlu0 %v742, 125
  %v821 = vpop.permute.xlu0 %820
  %822 = vrot.lane.b32.xlu0 %v743, 125
  %v823 = vpop.permute.xlu0 %822
  %v828 = vmul.f32 %v812, %v817
  %v829 = vmul.f32 %v813, %v819
  %v830 = vmul.f32 %v814, %v821
  %v831 = vmul.f32 %v815, %v823
  %v832 = vmul.f32 %v468, %v464
  %v833 = vmul.f32 %v469, %v465
  %v834 = vmul.f32 %v470, %v466
  %v835 = vmul.f32 %v471, %v467
  %840 = vrot.lane.b32.xlu0 %v832, 127
  %v841 = vpop.permute.xlu0 %840
  %842 = vrot.lane.b32.xlu0 %v833, 127
  %v843 = vpop.permute.xlu0 %842
  %844 = vrot.lane.b32.xlu0 %v834, 127
  %v845 = vpop.permute.xlu0 %844
  %846 = vrot.lane.b32.xlu0 %v835, 127
  %v847 = vpop.permute.xlu0 %846
  %v852 = vadd.f32 %v488, %v841
  %v853 = vadd.f32 %v489, %v843
  %v854 = vadd.f32 %v490, %v845
  %v855 = vadd.f32 %v491, %v847
  %v856 = vadd.f32 %v852, %v537
  %v857 = vadd.f32 %v853, %v539
  %v858 = vadd.f32 %v854, %v541
  %v859 = vadd.f32 %v855, %v543
  %v860 = vand.u32 2147483647, %v856
  %v861 = vand.u32 2147483647, %v857
  %v862 = vand.u32 2147483647, %v858
  %v863 = vand.u32 2147483647, %v859
  %vm864 = vcmp.lt.f32.partialorder %v860, 1e-08
  %vm865 = vcmp.lt.f32.partialorder %v861, 1e-08
  %vm866 = vcmp.lt.f32.partialorder %v862, 1e-08
  %vm867 = vcmp.lt.f32.partialorder %v863, 1e-08
  %v868 = vsel %vm864, 1e-08, %v856
  %v869 = vsel %vm865, 1e-08, %v857
  %v870 = vsel %vm866, 1e-08, %v858
  %v871 = vsel %vm867, 1e-08, %v859
  %v872 = vrcp.pop %v868
  %v873 = vrcp.pop %v869
  %v874 = vrcp.pop %v870
  %v875 = vrcp.pop %v871
  %880 = vrot.lane.b32.xlu0 %v464, 122
  %v881 = vpop.permute.xlu0 %880
  %882 = vrot.lane.b32.xlu0 %v465, 122
  %v883 = vpop.permute.xlu0 %882
  %884 = vrot.lane.b32.xlu0 %v466, 122
  %v885 = vpop.permute.xlu0 %884
  %886 = vrot.lane.b32.xlu0 %v467, 122
  %v887 = vpop.permute.xlu0 %886
  %v892 = vmul.f32 %v468, %v881
  %v893 = vmul.f32 %v469, %v883
  %v894 = vmul.f32 %v470, %v885
  %v895 = vmul.f32 %v471, %v887
  %900 = vrot.lane.b32.xlu0 %v892, 127
  %v901 = vpop.permute.xlu0 %900
  %902 = vrot.lane.b32.xlu0 %v893, 127
  %v903 = vpop.permute.xlu0 %902
  %904 = vrot.lane.b32.xlu0 %v894, 127
  %v905 = vpop.permute.xlu0 %904
  %906 = vrot.lane.b32.xlu0 %v895, 127
  %v907 = vpop.permute.xlu0 %906
  %v912 = vadd.f32 %v580, %v901
  %v913 = vadd.f32 %v581, %v903
  %v914 = vadd.f32 %v582, %v905
  %v915 = vadd.f32 %v583, %v907
  %v916 = vadd.f32 %v912, %v537
  %v917 = vadd.f32 %v913, %v539
  %v918 = vadd.f32 %v914, %v541
  %v919 = vadd.f32 %v915, %v543
  %924 = vrot.lane.b32.xlu0 %v872, 122
  %v925 = vpop.permute.xlu0 %924
  %926 = vrot.lane.b32.xlu0 %v873, 122
  %v927 = vpop.permute.xlu0 %926
  %928 = vrot.lane.b32.xlu0 %v874, 122
  %v929 = vpop.permute.xlu0 %928
  %930 = vrot.lane.b32.xlu0 %v875, 122
  %v931 = vpop.permute.xlu0 %930
  %v936 = vmul.f32 %v916, %v925
  %v937 = vmul.f32 %v917, %v927
  %v938 = vmul.f32 %v918, %v929
  %v939 = vmul.f32 %v919, %v931
  %940 = vrot.lane.b32.xlu0 %v464, 125
  %v941 = vpop.permute.xlu0 %940
  %942 = vrot.lane.b32.xlu0 %v465, 125
  %v943 = vpop.permute.xlu0 %942
  %944 = vrot.lane.b32.xlu0 %v466, 125
  %v945 = vpop.permute.xlu0 %944
  %946 = vrot.lane.b32.xlu0 %v467, 125
  %v947 = vpop.permute.xlu0 %946
  %v952 = vmul.f32 %v468, %v941
  %v953 = vmul.f32 %v469, %v943
  %v954 = vmul.f32 %v470, %v945
  %v955 = vmul.f32 %v471, %v947
  %960 = vrot.lane.b32.xlu0 %v952, 127
  %v961 = vpop.permute.xlu0 %960
  %962 = vrot.lane.b32.xlu0 %v953, 127
  %v963 = vpop.permute.xlu0 %962
  %964 = vrot.lane.b32.xlu0 %v954, 127
  %v965 = vpop.permute.xlu0 %964
  %966 = vrot.lane.b32.xlu0 %v955, 127
  %v967 = vpop.permute.xlu0 %966
  %v972 = vadd.f32 %v656, %v961
  %v973 = vadd.f32 %v657, %v963
  %v974 = vadd.f32 %v658, %v965
  %v975 = vadd.f32 %v659, %v967
  %v976 = vadd.f32 %v972, %v537
  %v977 = vadd.f32 %v973, %v539
  %v978 = vadd.f32 %v974, %v541
  %v979 = vadd.f32 %v975, %v543
  %980 = vrot.lane.b32.xlu0 %v872, 125
  %v981 = vpop.permute.xlu0 %980
  %982 = vrot.lane.b32.xlu0 %v873, 125
  %v983 = vpop.permute.xlu0 %982
  %984 = vrot.lane.b32.xlu0 %v874, 125
  %v985 = vpop.permute.xlu0 %984
  %986 = vrot.lane.b32.xlu0 %v875, 125
  %v987 = vpop.permute.xlu0 %986
  %v992 = vmul.f32 %v976, %v981
  %v993 = vmul.f32 %v977, %v983
  %v994 = vmul.f32 %v978, %v985
  %v995 = vmul.f32 %v979, %v987
  %v996 = vadd.f32 %v716, %v841
  %v997 = vadd.f32 %v717, %v843
  %v998 = vadd.f32 %v718, %v845
  %v999 = vadd.f32 %v719, %v847
  %v1000 = vadd.f32 %v996, %v537
  %v1001 = vadd.f32 %v997, %v539
  %v1002 = vadd.f32 %v998, %v541
  %v1003 = vadd.f32 %v999, %v543
  %v1004 = vand.u32 2147483647, %v1000
  %v1005 = vand.u32 2147483647, %v1001
  %v1006 = vand.u32 2147483647, %v1002
  %v1007 = vand.u32 2147483647, %v1003
  %vm1008 = vcmp.lt.f32.partialorder %v1004, 1e-08
  %vm1009 = vcmp.lt.f32.partialorder %v1005, 1e-08
  %vm1010 = vcmp.lt.f32.partialorder %v1006, 1e-08
  %vm1011 = vcmp.lt.f32.partialorder %v1007, 1e-08
  %v1012 = vsel %vm1008, 1e-08, %v1000
  %v1013 = vsel %vm1009, 1e-08, %v1001
  %v1014 = vsel %vm1010, 1e-08, %v1002
  %v1015 = vsel %vm1011, 1e-08, %v1003
  %v1016 = vrcp.pop %v1012
  %v1017 = vrcp.pop %v1013
  %v1018 = vrcp.pop %v1014
  %v1019 = vrcp.pop %v1015
  %v1020 = vadd.f32 %v760, %v901
  %v1021 = vadd.f32 %v761, %v903
  %v1022 = vadd.f32 %v762, %v905
  %v1023 = vadd.f32 %v763, %v907
  %v1024 = vadd.f32 %v1020, %v537
  %v1025 = vadd.f32 %v1021, %v539
  %v1026 = vadd.f32 %v1022, %v541
  %v1027 = vadd.f32 %v1023, %v543
  %1032 = vrot.lane.b32.xlu0 %v1016, 122
  %v1033 = vpop.permute.xlu0 %1032
  %1034 = vrot.lane.b32.xlu0 %v1017, 122
  %v1035 = vpop.permute.xlu0 %1034
  %1036 = vrot.lane.b32.xlu0 %v1018, 122
  %v1037 = vpop.permute.xlu0 %1036
  %1038 = vrot.lane.b32.xlu0 %v1019, 122
  %v1039 = vpop.permute.xlu0 %1038
  %v1044 = vmul.f32 %v1024, %v1033
  %v1045 = vmul.f32 %v1025, %v1035
  %v1046 = vmul.f32 %v1026, %v1037
  %v1047 = vmul.f32 %v1027, %v1039
  %v1048 = vadd.f32 %v804, %v961
  %v1049 = vadd.f32 %v805, %v963
  %v1050 = vadd.f32 %v806, %v965
  %v1051 = vadd.f32 %v807, %v967
  %v1052 = vadd.f32 %v1048, %v537
  %v1053 = vadd.f32 %v1049, %v539
  %v1054 = vadd.f32 %v1050, %v541
  %v1055 = vadd.f32 %v1051, %v543
  %1056 = vrot.lane.b32.xlu0 %v1016, 125
  %v1057 = vpop.permute.xlu0 %1056
  %1058 = vrot.lane.b32.xlu0 %v1017, 125
  %v1059 = vpop.permute.xlu0 %1058
  %1060 = vrot.lane.b32.xlu0 %v1018, 125
  %v1061 = vpop.permute.xlu0 %1060
  %1062 = vrot.lane.b32.xlu0 %v1019, 125
  %v1063 = vpop.permute.xlu0 %1062
  %v1068 = vmul.f32 %v1052, %v1057
  %v1069 = vmul.f32 %v1053, %v1059
  %v1070 = vmul.f32 %v1054, %v1061
  %v1071 = vmul.f32 %v1055, %v1063
  %v1072 = vmin.f32 %v640, %v788
  %v1073 = vmin.f32 %v641, %v789
  %v1074 = vmin.f32 %v642, %v790
  %v1075 = vmin.f32 %v643, %v791
  %v1076 = vmin.f32 %v936, %v1044
  %v1077 = vmin.f32 %v937, %v1045
  %v1078 = vmin.f32 %v938, %v1046
  %v1079 = vmin.f32 %v939, %v1047
  %v1080 = vmin.f32 %v1072, %v1076
  %v1081 = vmin.f32 %v1073, %v1077
  %v1082 = vmin.f32 %v1074, %v1078
  %v1083 = vmin.f32 %v1075, %v1079
  %v1084 = vmax.f32 %v640, %v788
  %v1085 = vmax.f32 %v641, %v789
  %v1086 = vmax.f32 %v642, %v790
  %v1087 = vmax.f32 %v643, %v791
  %v1088 = vmax.f32 %v936, %v1044
  %v1089 = vmax.f32 %v937, %v1045
  %v1090 = vmax.f32 %v938, %v1046
  %v1091 = vmax.f32 %v939, %v1047
  %v1092 = vmax.f32 %v1084, %v1088
  %v1093 = vmax.f32 %v1085, %v1089
  %v1094 = vmax.f32 %v1086, %v1090
  %v1095 = vmax.f32 %v1087, %v1091
  %v1096 = vmin.f32 %v712, %v828
  %v1097 = vmin.f32 %v713, %v829
  %v1098 = vmin.f32 %v714, %v830
  %v1099 = vmin.f32 %v715, %v831
  %v1100 = vmin.f32 %v992, %v1068
  %v1101 = vmin.f32 %v993, %v1069
  %v1102 = vmin.f32 %v994, %v1070
  %v1103 = vmin.f32 %v995, %v1071
  %v1104 = vmin.f32 %v1096, %v1100
  %v1105 = vmin.f32 %v1097, %v1101
  %v1106 = vmin.f32 %v1098, %v1102
  %v1107 = vmin.f32 %v1099, %v1103
  %v1108 = vmax.f32 %v712, %v828
  %v1109 = vmax.f32 %v713, %v829
  %v1110 = vmax.f32 %v714, %v830
  %v1111 = vmax.f32 %v715, %v831
  %v1112 = vmax.f32 %v992, %v1068
  %v1113 = vmax.f32 %v993, %v1069
  %v1114 = vmax.f32 %v994, %v1070
  %v1115 = vmax.f32 %v995, %v1071
  %v1116 = vmax.f32 %v1108, %v1112
  %v1117 = vmax.f32 %v1109, %v1113
  %v1118 = vmax.f32 %v1110, %v1114
  %v1119 = vmax.f32 %v1111, %v1115
  %v1120 = vmax.f32 %v1080, 0.0
  %v1121 = vmax.f32 %v1081, 0.0
  %v1122 = vmax.f32 %v1082, 0.0
  %v1123 = vmax.f32 %v1083, 0.0
  %v1124 = vmin.f32 %v1120, 64.0
  %v1125 = vmin.f32 %v1121, 64.0
  %v1126 = vmin.f32 %v1122, 64.0
  %v1127 = vmin.f32 %v1123, 64.0
  %v1128 = vmax.f32 %v1092, 0.0
  %v1129 = vmax.f32 %v1093, 0.0
  %v1130 = vmax.f32 %v1094, 0.0
  %v1131 = vmax.f32 %v1095, 0.0
  %v1132 = vmin.f32 %v1128, 64.0
  %v1133 = vmin.f32 %v1129, 64.0
  %v1134 = vmin.f32 %v1130, 64.0
  %v1135 = vmin.f32 %v1131, 64.0
  %v1136 = vmax.f32 %v1104, 0.0
  %v1137 = vmax.f32 %v1105, 0.0
  %v1138 = vmax.f32 %v1106, 0.0
  %v1139 = vmax.f32 %v1107, 0.0
  %v1140 = vmin.f32 %v1136, 64.0
  %v1141 = vmin.f32 %v1137, 64.0
  %v1142 = vmin.f32 %v1138, 64.0
  %v1143 = vmin.f32 %v1139, 64.0
  %v1144 = vmax.f32 %v1116, 0.0
  %v1145 = vmax.f32 %v1117, 0.0
  %v1146 = vmax.f32 %v1118, 0.0
  %v1147 = vmax.f32 %v1119, 0.0
  %v1148 = vmin.f32 %v1144, 64.0
  %v1149 = vmin.f32 %v1145, 64.0
  %v1150 = vmin.f32 %v1146, 64.0
  %v1151 = vmin.f32 %v1147, 64.0
  %1156 = vrot.lane.b32.xlu0 %v1140, 126
  %v1157 = vpop.permute.xlu0 %1156
  %1158 = vrot.lane.b32.xlu0 %v1141, 126
  %v1159 = vpop.permute.xlu0 %1158
  %1160 = vrot.lane.b32.xlu0 %v1142, 126
  %v1161 = vpop.permute.xlu0 %1160
  %1162 = vrot.lane.b32.xlu0 %v1143, 126
  %v1163 = vpop.permute.xlu0 %1162
  %1172 = vrot.lane.b32.xlu0 %v1132, 2
  %v1173 = vpop.permute.xlu0 %1172
  %1174 = vrot.lane.b32.xlu0 %v1133, 2
  %v1175 = vpop.permute.xlu0 %1174
  %1176 = vrot.lane.b32.xlu0 %v1134, 2
  %v1177 = vpop.permute.xlu0 %1176
  %1178 = vrot.lane.b32.xlu0 %v1135, 2
  %v1179 = vpop.permute.xlu0 %1178
  %vm1184 = vcmask 7168
  %v1185 = vsel %vm1184, %v1124, %v1157
  %v1186 = vsel %vm1184, %v1125, %v1159
  %v1187 = vsel %vm1184, %v1126, %v1161
  %v1188 = vsel %vm1184, %v1127, %v1163
  %vm1189 = vcmask 15360
  %v1190 = vsel %vm1189, %v1185, %v1173
  %v1191 = vsel %vm1189, %v1186, %v1175
  %v1192 = vsel %vm1189, %v1187, %v1177
  %v1193 = vsel %vm1189, %v1188, %v1179
  %vm1194 = vcmask 23552
  %v1195 = vsel %vm1194, %v1190, %v1148
  %v1196 = vsel %vm1194, %v1191, %v1149
  %v1197 = vsel %vm1194, %v1192, %v1150
  %v1198 = vsel %vm1194, %v1193, %v1151
  %1203 = vrot.lane.b32.xlu0 %v276, 127
  %v1204 = vpop.permute.xlu0 %1203
  %1205 = vrot.lane.b32.xlu0 %v291, 127
  %v1206 = vpop.permute.xlu0 %1205
  %1207 = vrot.lane.b32.xlu0 %v306, 127
  %v1208 = vpop.permute.xlu0 %1207
  %1209 = vrot.lane.b32.xlu0 %v321, 127
  %v1210 = vpop.permute.xlu0 %1209
  %1215 = vrot.lane.b32.xlu0 %v276, 126
  %v1216 = vpop.permute.xlu0 %1215
  %1217 = vrot.lane.b32.xlu0 %v291, 126
  %v1218 = vpop.permute.xlu0 %1217
  %1219 = vrot.lane.b32.xlu0 %v306, 126
  %v1220 = vpop.permute.xlu0 %1219
  %1221 = vrot.lane.b32.xlu0 %v321, 126
  %v1222 = vpop.permute.xlu0 %1221
  %1227 = vrot.lane.b32.xlu0 %v276, 125
  %v1228 = vpop.permute.xlu0 %1227
  %1229 = vrot.lane.b32.xlu0 %v291, 125
  %v1230 = vpop.permute.xlu0 %1229
  %1231 = vrot.lane.b32.xlu0 %v306, 125
  %v1232 = vpop.permute.xlu0 %1231
  %1233 = vrot.lane.b32.xlu0 %v321, 125
  %v1234 = vpop.permute.xlu0 %1233
  %vm1239 = vcmp.gt.f32.partialorder %v276, 0.35
  %vm1240 = vcmp.gt.f32.partialorder %v291, 0.35
  %vm1241 = vcmp.gt.f32.partialorder %v306, 0.35
  %vm1242 = vcmp.gt.f32.partialorder %v321, 0.35
  %vm1243 = vcmp.gt.f32.partialorder %v1204, 0.35
  %vm1244 = vcmp.gt.f32.partialorder %v1206, 0.35
  %vm1245 = vcmp.gt.f32.partialorder %v1208, 0.35
  %vm1246 = vcmp.gt.f32.partialorder %v1210, 0.35
  %vm1247 = vcmp.gt.f32.partialorder %v1216, 0.35
  %vm1248 = vcmp.gt.f32.partialorder %v1218, 0.35
  %vm1249 = vcmp.gt.f32.partialorder %v1220, 0.35
  %vm1250 = vcmp.gt.f32.partialorder %v1222, 0.35
  %vm1251 = vcmp.gt.f32.partialorder %v1228, 0.35
  %vm1252 = vcmp.gt.f32.partialorder %v1230, 0.35
  %vm1253 = vcmp.gt.f32.partialorder %v1232, 0.35
  %vm1254 = vcmp.gt.f32.partialorder %v1234, 0.35
  %v1255 = vsel %vm1239, %v276, 0.0
  %v1256 = vsel %vm1240, %v291, 0.0
  %v1257 = vsel %vm1241, %v306, 0.0
  %v1258 = vsel %vm1242, %v321, 0.0
  %v1259 = vsel %vm1243, %v1204, 0.0
  %v1260 = vsel %vm1244, %v1206, 0.0
  %v1261 = vsel %vm1245, %v1208, 0.0
  %v1262 = vsel %vm1246, %v1210, 0.0
  %v1263 = vsel %vm1247, %v1216, 0.0
  %v1264 = vsel %vm1248, %v1218, 0.0
  %v1265 = vsel %vm1249, %v1220, 0.0
  %v1266 = vsel %vm1250, %v1222, 0.0
  %v1267 = vsel %vm1251, %v1228, 0.0
  %v1268 = vsel %vm1252, %v1230, 0.0
  %v1269 = vsel %vm1253, %v1232, 0.0
  %v1270 = vsel %vm1254, %v1234, 0.0
  %v1271 = vadd.s32 %v420, 32
  %v1272 = vadd.s32 %v420, 40
  %v1273 = vadd.s32 %v420, 48
  %v1274 = vadd.s32 %v420, 56
  %v1275 = vadd.s32 %v420, 64
  %v1276 = vadd.s32 %v420, 72
  %v1277 = vadd.s32 %v420, 80
  %v1278 = vadd.s32 %v420, 88
  %v1279 = vadd.s32 %v420, 96
  %v1280 = vadd.s32 %v420, 104
  %v1281 = vadd.s32 %v420, 112
  %v1282 = vadd.s32 %v420, 120
  %v1283 = vshra.s32 %v420, 5
  %v1284 = vshra.s32 %v421, 5
  %v1285 = vshra.s32 %v422, 5
  %v1286 = vshra.s32 %v423, 5
  %v1287 = vshra.s32 %v1271, 5
  %v1288 = vshra.s32 %v1272, 5
  %v1289 = vshra.s32 %v1273, 5
  %v1290 = vshra.s32 %v1274, 5
  %v1291 = vshra.s32 %v1275, 5
  %v1292 = vshra.s32 %v1276, 5
  %v1293 = vshra.s32 %v1277, 5
  %v1294 = vshra.s32 %v1278, 5
  %v1295 = vshra.s32 %v1279, 5
  %v1296 = vshra.s32 %v1280, 5
  %v1297 = vshra.s32 %v1281, 5
  %v1298 = vshra.s32 %v1282, 5
  %v1299 = vcvt.s32.f32 %v1283
  %v1300 = vcvt.s32.f32 %v1284
  %v1301 = vcvt.s32.f32 %v1285
  %v1302 = vcvt.s32.f32 %v1286
  %v1303 = vcvt.s32.f32 %v1287
  %v1304 = vcvt.s32.f32 %v1288
  %v1305 = vcvt.s32.f32 %v1289
  %v1306 = vcvt.s32.f32 %v1290
  %v1307 = vcvt.s32.f32 %v1291
  %v1308 = vcvt.s32.f32 %v1292
  %v1309 = vcvt.s32.f32 %v1293
  %v1310 = vcvt.s32.f32 %v1294
  %v1311 = vcvt.s32.f32 %v1295
  %v1312 = vcvt.s32.f32 %v1296
  %v1313 = vcvt.s32.f32 %v1297
  %v1314 = vcvt.s32.f32 %v1298
  %v1315 = vand.u32 %v420, 31
  %v1316 = vand.u32 %v421, 31
  %v1317 = vand.u32 %v422, 31
  %v1318 = vand.u32 %v423, 31
  %v1319 = vand.u32 %v1271, 31
  %v1320 = vand.u32 %v1272, 31
  %v1321 = vand.u32 %v1273, 31
  %v1322 = vand.u32 %v1274, 31
  %v1323 = vand.u32 %v1275, 31
  %v1324 = vand.u32 %v1276, 31
  %v1325 = vand.u32 %v1277, 31
  %v1326 = vand.u32 %v1278, 31
  %v1327 = vand.u32 %v1279, 31
  %v1328 = vand.u32 %v1280, 31
  %v1329 = vand.u32 %v1281, 31
  %v1330 = vand.u32 %v1282, 31
  %v1331 = vshra.s32 %v1315, 4
  %v1332 = vshra.s32 %v1316, 4
  %v1333 = vshra.s32 %v1317, 4
  %v1334 = vshra.s32 %v1318, 4
  %v1335 = vshra.s32 %v1319, 4
  %v1336 = vshra.s32 %v1320, 4
  %v1337 = vshra.s32 %v1321, 4
  %v1338 = vshra.s32 %v1322, 4
  %v1339 = vshra.s32 %v1323, 4
  %v1340 = vshra.s32 %v1324, 4
  %v1341 = vshra.s32 %v1325, 4
  %v1342 = vshra.s32 %v1326, 4
  %v1343 = vshra.s32 %v1327, 4
  %v1344 = vshra.s32 %v1328, 4
  %v1345 = vshra.s32 %v1329, 4
  %v1346 = vshra.s32 %v1330, 4
  %v1347 = vcvt.s32.f32 %v1331
  %v1348 = vcvt.s32.f32 %v1332
  %v1349 = vcvt.s32.f32 %v1333
  %v1350 = vcvt.s32.f32 %v1334
  %v1351 = vcvt.s32.f32 %v1335
  %v1352 = vcvt.s32.f32 %v1336
  %v1353 = vcvt.s32.f32 %v1337
  %v1354 = vcvt.s32.f32 %v1338
  %v1355 = vcvt.s32.f32 %v1339
  %v1356 = vcvt.s32.f32 %v1340
  %v1357 = vcvt.s32.f32 %v1341
  %v1358 = vcvt.s32.f32 %v1342
  %v1359 = vcvt.s32.f32 %v1343
  %v1360 = vcvt.s32.f32 %v1344
  %v1361 = vcvt.s32.f32 %v1345
  %v1362 = vcvt.s32.f32 %v1346
  %v1363 = vmul.f32 %v1347, 4.0
  %v1364 = vmul.f32 %v1348, 4.0
  %v1365 = vmul.f32 %v1349, 4.0
  %v1366 = vmul.f32 %v1350, 4.0
  %v1367 = vmul.f32 %v1351, 4.0
  %v1368 = vmul.f32 %v1352, 4.0
  %v1369 = vmul.f32 %v1353, 4.0
  %v1370 = vmul.f32 %v1354, 4.0
  %v1371 = vmul.f32 %v1355, 4.0
  %v1372 = vmul.f32 %v1356, 4.0
  %v1373 = vmul.f32 %v1357, 4.0
  %v1374 = vmul.f32 %v1358, 4.0
  %v1375 = vmul.f32 %v1359, 4.0
  %v1376 = vmul.f32 %v1360, 4.0
  %v1377 = vmul.f32 %v1361, 4.0
  %v1378 = vmul.f32 %v1362, 4.0
  %v1379 = vadd.f32 %v1363, %v1299
  %v1380 = vadd.f32 %v1364, %v1300
  %v1381 = vadd.f32 %v1365, %v1301
  %v1382 = vadd.f32 %v1366, %v1302
  %v1383 = vadd.f32 %v1367, %v1303
  %v1384 = vadd.f32 %v1368, %v1304
  %v1385 = vadd.f32 %v1369, %v1305
  %v1386 = vadd.f32 %v1370, %v1306
  %v1387 = vadd.f32 %v1371, %v1307
  %v1388 = vadd.f32 %v1372, %v1308
  %v1389 = vadd.f32 %v1373, %v1309
  %v1390 = vadd.f32 %v1374, %v1310
  %v1391 = vadd.f32 %v1375, %v1311
  %v1392 = vadd.f32 %v1376, %v1312
  %v1393 = vadd.f32 %v1377, %v1313
  %v1394 = vadd.f32 %v1378, %v1314
  %v1395 = vmul.f32 %v1379, 65.0
  %v1396 = vmul.f32 %v1380, 65.0
  %v1397 = vmul.f32 %v1381, 65.0
  %v1398 = vmul.f32 %v1382, 65.0
  %v1399 = vmul.f32 %v1383, 65.0
  %v1400 = vmul.f32 %v1384, 65.0
  %v1401 = vmul.f32 %v1385, 65.0
  %v1402 = vmul.f32 %v1386, 65.0
  %v1403 = vmul.f32 %v1387, 65.0
  %v1404 = vmul.f32 %v1388, 65.0
  %v1405 = vmul.f32 %v1389, 65.0
  %v1406 = vmul.f32 %v1390, 65.0
  %v1407 = vmul.f32 %v1391, 65.0
  %v1408 = vmul.f32 %v1392, 65.0
  %v1409 = vmul.f32 %v1393, 65.0
  %v1410 = vmul.f32 %v1394, 65.0
  %1427 = vrot.lane.b32.xlu0 %v1255, 100
  %v1428 = vpop.permute.xlu0 %1427
  %1429 = vrot.lane.b32.xlu0 %v1256, 100
  %v1430 = vpop.permute.xlu0 %1429
  %1431 = vrot.lane.b32.xlu0 %v1257, 100
  %v1432 = vpop.permute.xlu0 %1431
  %1433 = vrot.lane.b32.xlu0 %v1258, 100
  %v1434 = vpop.permute.xlu0 %1433
  %1435 = vrot.lane.b32.xlu0 %v1259, 100
  %v1436 = vpop.permute.xlu0 %1435
  %1437 = vrot.lane.b32.xlu0 %v1260, 100
  %v1438 = vpop.permute.xlu0 %1437
  %1439 = vrot.lane.b32.xlu0 %v1261, 100
  %v1440 = vpop.permute.xlu0 %1439
  %1441 = vrot.lane.b32.xlu0 %v1262, 100
  %v1442 = vpop.permute.xlu0 %1441
  %1443 = vrot.lane.b32.xlu0 %v1263, 100
  %v1444 = vpop.permute.xlu0 %1443
  %1445 = vrot.lane.b32.xlu0 %v1264, 100
  %v1446 = vpop.permute.xlu0 %1445
  %1447 = vrot.lane.b32.xlu0 %v1265, 100
  %v1448 = vpop.permute.xlu0 %1447
  %1449 = vrot.lane.b32.xlu0 %v1266, 100
  %v1450 = vpop.permute.xlu0 %1449
  %1451 = vrot.lane.b32.xlu0 %v1267, 100
  %v1452 = vpop.permute.xlu0 %1451
  %1453 = vrot.lane.b32.xlu0 %v1268, 100
  %v1454 = vpop.permute.xlu0 %1453
  %1455 = vrot.lane.b32.xlu0 %v1269, 100
  %v1456 = vpop.permute.xlu0 %1455
  %1457 = vrot.lane.b32.xlu0 %v1270, 100
  %v1458 = vpop.permute.xlu0 %1457
  %vm1475 = vcmask 31744
  %v1476 = vsel %vm1475, %v1195, %v1428
  %v1477 = vsel %vm1475, %v1196, %v1430
  %v1478 = vsel %vm1475, %v1197, %v1432
  %v1479 = vsel %vm1475, %v1198, %v1434
  %v1480 = vsel %vm1475, %v1195, %v1436
  %v1481 = vsel %vm1475, %v1196, %v1438
  %v1482 = vsel %vm1475, %v1197, %v1440
  %v1483 = vsel %vm1475, %v1198, %v1442
  %v1484 = vsel %vm1475, %v1195, %v1444
  %v1485 = vsel %vm1475, %v1196, %v1446
  %v1486 = vsel %vm1475, %v1197, %v1448
  %v1487 = vsel %vm1475, %v1198, %v1450
  %v1488 = vsel %vm1475, %v1195, %v1452
  %v1489 = vsel %vm1475, %v1196, %v1454
  %v1490 = vsel %vm1475, %v1197, %v1456
  %v1491 = vsel %vm1475, %v1198, %v1458
  %vm1492 = vcmask 39936
  %v1493 = vsel %vm1492, %v1476, %v1299
  %v1494 = vsel %vm1492, %v1477, %v1300
  %v1495 = vsel %vm1492, %v1478, %v1301
  %v1496 = vsel %vm1492, %v1479, %v1302
  %v1497 = vsel %vm1492, %v1480, %v1303
  %v1498 = vsel %vm1492, %v1481, %v1304
  %v1499 = vsel %vm1492, %v1482, %v1305
  %v1500 = vsel %vm1492, %v1483, %v1306
  %v1501 = vsel %vm1492, %v1484, %v1307
  %v1502 = vsel %vm1492, %v1485, %v1308
  %v1503 = vsel %vm1492, %v1486, %v1309
  %v1504 = vsel %vm1492, %v1487, %v1310
  %v1505 = vsel %vm1492, %v1488, %v1311
  %v1506 = vsel %vm1492, %v1489, %v1312
  %v1507 = vsel %vm1492, %v1490, %v1313
  %v1508 = vsel %vm1492, %v1491, %v1314
  %vm1509 = vcmask 48128
  %v1510 = vsel %vm1509, %v1493, %v1347
  %v1511 = vsel %vm1509, %v1494, %v1348
  %v1512 = vsel %vm1509, %v1495, %v1349
  %v1513 = vsel %vm1509, %v1496, %v1350
  %v1514 = vsel %vm1509, %v1497, %v1351
  %v1515 = vsel %vm1509, %v1498, %v1352
  %v1516 = vsel %vm1509, %v1499, %v1353
  %v1517 = vsel %vm1509, %v1500, %v1354
  %v1518 = vsel %vm1509, %v1501, %v1355
  %v1519 = vsel %vm1509, %v1502, %v1356
  %v1520 = vsel %vm1509, %v1503, %v1357
  %v1521 = vsel %vm1509, %v1504, %v1358
  %v1522 = vsel %vm1509, %v1505, %v1359
  %v1523 = vsel %vm1509, %v1506, %v1360
  %v1524 = vsel %vm1509, %v1507, %v1361
  %v1525 = vsel %vm1509, %v1508, %v1362
  %vm1526 = vcmask 56320
  %v1527 = vsel %vm1526, %v1510, %v1395
  %v1528 = vsel %vm1526, %v1511, %v1396
  %v1529 = vsel %vm1526, %v1512, %v1397
  %v1530 = vsel %vm1526, %v1513, %v1398
  %v1531 = vsel %vm1526, %v1514, %v1399
  %v1532 = vsel %vm1526, %v1515, %v1400
  %v1533 = vsel %vm1526, %v1516, %v1401
  %v1534 = vsel %vm1526, %v1517, %v1402
  %v1535 = vsel %vm1526, %v1518, %v1403
  %v1536 = vsel %vm1526, %v1519, %v1404
  %v1537 = vsel %vm1526, %v1520, %v1405
  %v1538 = vsel %vm1526, %v1521, %v1406
  %v1539 = vsel %vm1526, %v1522, %v1407
  %v1540 = vsel %vm1526, %v1523, %v1408
  %v1541 = vsel %vm1526, %v1524, %v1409
  %v1542 = vsel %vm1526, %v1525, %v1410
  %v1543 = vlaneseq
  %v1544 = vand.u32 %v1543, 127
  %1545 = vxpose.xlu0.b32.start [1/16] %v1527, 128
  %1546 = vxpose.xlu0.b32.cont [2/16] %v1528, 128
  %1547 = vxpose.xlu0.b32.cont [3/16] %v1529, 128
  %1548 = vxpose.xlu0.b32.cont [4/16] %v1530, 128
  %1549 = vxpose.xlu0.b32.cont [5/16] %v1531, 128
  %1550 = vxpose.xlu0.b32.cont [6/16] %v1532, 128
  %1551 = vxpose.xlu0.b32.cont [7/16] %v1533, 128
  %1552 = vxpose.xlu0.b32.cont [8/16] %v1534, 128
  %1553 = vxpose.xlu0.b32.cont [9/16] %v1535, 128
  %1554 = vxpose.xlu0.b32.cont [10/16] %v1536, 128
  %1555 = vxpose.xlu0.b32.cont [11/16] %v1537, 128
  %1556 = vxpose.xlu0.b32.cont [12/16] %v1538, 128
  %1557 = vxpose.xlu0.b32.cont [13/16] %v1539, 128
  %1558 = vxpose.xlu0.b32.cont [14/16] %v1540, 128
  %1559 = vxpose.xlu0.b32.cont [15/16] %v1541, 128
  %1560 = vxpose.xlu0.b32.end [16/16] %v1542, 128
  %v1561 = vpop.trf.xlu0
  %v1562 = vpop.trf.xlu0
  %v1563 = vpop.trf.xlu0
  %v1564 = vpop.trf.xlu0
  %v1565 = vpop.trf.xlu0
  %v1566 = vpop.trf.xlu0
  %v1567 = vpop.trf.xlu0
  %v1568 = vpop.trf.xlu0
  %v1569 = vpop.trf.xlu0
  %v1570 = vpop.trf.xlu0
  %v1571 = vpop.trf.xlu0
  %v1572 = vpop.trf.xlu0
  %v1573 = vpop.trf.xlu0
  %v1574 = vpop.trf.xlu0
  %v1575 = vpop.trf.xlu0
  %v1576 = vpop.trf.xlu0
  %1577 = vset.pattern.permute.xlu0 32
  %1578 = vperm.xlu0 %1577, %v1255
  %v1579 = vpop.permute.xlu0 %1578
  %1581 = vset.pattern.permute.xlu0 32
  %1582 = vperm.xlu0 %1581, %v1256
  %v1583 = vpop.permute.xlu0 %1582
  %1585 = vset.pattern.permute.xlu0 32
  %1586 = vperm.xlu0 %1585, %v1257
  %v1587 = vpop.permute.xlu0 %1586
  %1589 = vset.pattern.permute.xlu0 32
  %1590 = vperm.xlu0 %1589, %v1258
  %v1591 = vpop.permute.xlu0 %1590
  %1593 = vset.pattern.permute.xlu0 32
  %1594 = vperm.xlu0 %1593, %v1259
  %v1595 = vpop.permute.xlu0 %1594
  %1597 = vset.pattern.permute.xlu0 32
  %1598 = vperm.xlu0 %1597, %v1260
  %v1599 = vpop.permute.xlu0 %1598
  %1601 = vset.pattern.permute.xlu0 32
  %1602 = vperm.xlu0 %1601, %v1261
  %v1603 = vpop.permute.xlu0 %1602
  %1605 = vset.pattern.permute.xlu0 32
  %1606 = vperm.xlu0 %1605, %v1262
  %v1607 = vpop.permute.xlu0 %1606
  %1609 = vset.pattern.permute.xlu0 32
  %1610 = vperm.xlu0 %1609, %v1263
  %v1611 = vpop.permute.xlu0 %1610
  %1613 = vset.pattern.permute.xlu0 32
  %1614 = vperm.xlu0 %1613, %v1264
  %v1615 = vpop.permute.xlu0 %1614
  %1617 = vset.pattern.permute.xlu0 32
  %1618 = vperm.xlu0 %1617, %v1265
  %v1619 = vpop.permute.xlu0 %1618
  %1621 = vset.pattern.permute.xlu0 32
  %1622 = vperm.xlu0 %1621, %v1266
  %v1623 = vpop.permute.xlu0 %1622
  %1625 = vset.pattern.permute.xlu0 32
  %1626 = vperm.xlu0 %1625, %v1267
  %v1627 = vpop.permute.xlu0 %1626
  %1629 = vset.pattern.permute.xlu0 32
  %1630 = vperm.xlu0 %1629, %v1268
  %v1631 = vpop.permute.xlu0 %1630
  %1633 = vset.pattern.permute.xlu0 32
  %1634 = vperm.xlu0 %1633, %v1269
  %v1635 = vpop.permute.xlu0 %1634
  %1637 = vset.pattern.permute.xlu0 32
  %1638 = vperm.xlu0 %1637, %v1270
  %v1639 = vpop.permute.xlu0 %1638
  %v1641 = vperm.slane %v1561, 4
  %vm1642 = vcmp.gt.f32.partialorder %v1579, %v1641
  %vm1643 = vcmp.gt.f32.partialorder %v1583, %v1641
  %vm1644 = vcmp.gt.f32.partialorder %v1587, %v1641
  %vm1645 = vcmp.gt.f32.partialorder %v1591, %v1641
  %vm1646 = vcmp.gt.f32.partialorder %v1595, %v1641
  %vm1647 = vcmp.gt.f32.partialorder %v1599, %v1641
  %vm1648 = vcmp.gt.f32.partialorder %v1603, %v1641
  %vm1649 = vcmp.gt.f32.partialorder %v1607, %v1641
  %vm1650 = vcmp.gt.f32.partialorder %v1611, %v1641
  %vm1651 = vcmp.gt.f32.partialorder %v1615, %v1641
  %vm1652 = vcmp.gt.f32.partialorder %v1619, %v1641
  %vm1653 = vcmp.gt.f32.partialorder %v1623, %v1641
  %vm1654 = vcmp.gt.f32.partialorder %v1627, %v1641
  %vm1655 = vcmp.gt.f32.partialorder %v1631, %v1641
  %vm1656 = vcmp.gt.f32.partialorder %v1635, %v1641
  %vm1657 = vcmp.gt.f32.partialorder %v1639, %v1641
  %vm1658 = vcmp.eq.f32.partialorder %v1579, %v1641
  %vm1659 = vcmp.eq.f32.partialorder %v1583, %v1641
  %vm1660 = vcmp.eq.f32.partialorder %v1587, %v1641
  %vm1661 = vcmp.eq.f32.partialorder %v1591, %v1641
  %vm1662 = vcmp.eq.f32.partialorder %v1595, %v1641
  %vm1663 = vcmp.eq.f32.partialorder %v1599, %v1641
  %vm1664 = vcmp.eq.f32.partialorder %v1603, %v1641
  %vm1665 = vcmp.eq.f32.partialorder %v1607, %v1641
  %vm1666 = vcmp.eq.f32.partialorder %v1611, %v1641
  %vm1667 = vcmp.eq.f32.partialorder %v1615, %v1641
  %vm1668 = vcmp.eq.f32.partialorder %v1619, %v1641
  %vm1669 = vcmp.eq.f32.partialorder %v1623, %v1641
  %vm1670 = vcmp.eq.f32.partialorder %v1627, %v1641
  %vm1671 = vcmp.eq.f32.partialorder %v1631, %v1641
  %vm1672 = vcmp.eq.f32.partialorder %v1635, %v1641
  %vm1673 = vcmp.eq.f32.partialorder %v1639, %v1641
  %vm1674 = vcmp.lt.s32.totalorder %v420, %v1544
  %vm1675 = vcmp.lt.s32.totalorder %v421, %v1544
  %vm1676 = vcmp.lt.s32.totalorder %v422, %v1544
  %vm1677 = vcmp.lt.s32.totalorder %v423, %v1544
  %vm1678 = vcmp.lt.s32.totalorder %v1271, %v1544
  %vm1679 = vcmp.lt.s32.totalorder %v1272, %v1544
  %vm1680 = vcmp.lt.s32.totalorder %v1273, %v1544
  %vm1681 = vcmp.lt.s32.totalorder %v1274, %v1544
  %vm1682 = vcmp.lt.s32.totalorder %v1275, %v1544
  %vm1683 = vcmp.lt.s32.totalorder %v1276, %v1544
  %vm1684 = vcmp.lt.s32.totalorder %v1277, %v1544
  %vm1685 = vcmp.lt.s32.totalorder %v1278, %v1544
  %vm1686 = vcmp.lt.s32.totalorder %v1279, %v1544
  %vm1687 = vcmp.lt.s32.totalorder %v1280, %v1544
  %vm1688 = vcmp.lt.s32.totalorder %v1281, %v1544
  %vm1689 = vcmp.lt.s32.totalorder %v1282, %v1544
  %vm1690 = vmand %vm1658, %vm1674
  %vm1691 = vmand %vm1659, %vm1675
  %vm1692 = vmand %vm1660, %vm1676
  %vm1693 = vmand %vm1661, %vm1677
  %vm1694 = vmand %vm1662, %vm1678
  %vm1695 = vmand %vm1663, %vm1679
  %vm1696 = vmand %vm1664, %vm1680
  %vm1697 = vmand %vm1665, %vm1681
  %vm1698 = vmand %vm1666, %vm1682
  %vm1699 = vmand %vm1667, %vm1683
  %vm1700 = vmand %vm1668, %vm1684
  %vm1701 = vmand %vm1669, %vm1685
  %vm1702 = vmand %vm1670, %vm1686
  %vm1703 = vmand %vm1671, %vm1687
  %vm1704 = vmand %vm1672, %vm1688
  %vm1705 = vmand %vm1673, %vm1689
  %vm1706 = vmor %vm1642, %vm1690
  %vm1707 = vmor %vm1643, %vm1691
  %vm1708 = vmor %vm1644, %vm1692
  %vm1709 = vmor %vm1645, %vm1693
  %vm1710 = vmor %vm1646, %vm1694
  %vm1711 = vmor %vm1647, %vm1695
  %vm1712 = vmor %vm1648, %vm1696
  %vm1713 = vmor %vm1649, %vm1697
  %vm1714 = vmor %vm1650, %vm1698
  %vm1715 = vmor %vm1651, %vm1699
  %vm1716 = vmor %vm1652, %vm1700
  %vm1717 = vmor %vm1653, %vm1701
  %vm1718 = vmor %vm1654, %vm1702
  %vm1719 = vmor %vm1655, %vm1703
  %vm1720 = vmor %vm1656, %vm1704
  %vm1721 = vmor %vm1657, %vm1705
  %v1722 = vsel %vm1706, 1, 0
  %v1723 = vsel %vm1707, 1, 0
  %v1724 = vsel %vm1708, 1, 0
  %v1725 = vsel %vm1709, 1, 0
  %v1726 = vsel %vm1710, 1, 0
  %v1727 = vsel %vm1711, 1, 0
  %v1728 = vsel %vm1712, 1, 0
  %v1729 = vsel %vm1713, 1, 0
  %v1730 = vsel %vm1714, 1, 0
  %v1731 = vsel %vm1715, 1, 0
  %v1732 = vsel %vm1716, 1, 0
  %v1733 = vsel %vm1717, 1, 0
  %v1734 = vsel %vm1718, 1, 0
  %v1735 = vsel %vm1719, 1, 0
  %v1736 = vsel %vm1720, 1, 0
  %v1737 = vsel %vm1721, 1, 0
  %v1738 = vcvt.s32.f32 %v1722
  %v1739 = vcvt.s32.f32 %v1723
  %v1740 = vcvt.s32.f32 %v1724
  %v1741 = vcvt.s32.f32 %v1725
  %v1742 = vcvt.s32.f32 %v1726
  %v1743 = vcvt.s32.f32 %v1727
  %v1744 = vcvt.s32.f32 %v1728
  %v1745 = vcvt.s32.f32 %v1729
  %v1746 = vcvt.s32.f32 %v1730
  %v1747 = vcvt.s32.f32 %v1731
  %v1748 = vcvt.s32.f32 %v1732
  %v1749 = vcvt.s32.f32 %v1733
  %v1750 = vcvt.s32.f32 %v1734
  %v1751 = vcvt.s32.f32 %v1735
  %v1752 = vcvt.s32.f32 %v1736
  %v1753 = vcvt.s32.f32 %v1737
  %v1754 = vadd.f32 %v1738, %v1739
  %v1755 = vadd.f32 %v1754, %v1740
  %v1756 = vadd.f32 %v1755, %v1741
  %v1757 = vadd.f32 %v1756, %v1742
  %v1758 = vadd.f32 %v1757, %v1743
  %v1759 = vadd.f32 %v1758, %v1744
  %v1760 = vadd.f32 %v1759, %v1745
  %v1761 = vadd.f32 %v1760, %v1746
  %v1762 = vadd.f32 %v1761, %v1747
  %v1763 = vadd.f32 %v1762, %v1748
  %v1764 = vadd.f32 %v1763, %v1749
  %v1765 = vadd.f32 %v1764, %v1750
  %v1766 = vadd.f32 %v1765, %v1751
  %v1767 = vadd.f32 %v1766, %v1752
  %v1768 = vadd.f32 %v1767, %v1753
  %v1769 = vrot.slane %v1768, 4
  %v1770 = vadd.f32 %v1768, %v1769
  %v1771 = vrot.slane %v1770, 2
  %v1772 = vadd.f32 %v1770, %v1771
  %v1773 = vrot.slane %v1772, 1
  %v1774 = vadd.f32 %v1772, %v1773
  %v1775 = vcvt.s32.f32 %v420
  %v1776 = vcvt.s32.f32 %v421
  %v1777 = vcvt.s32.f32 %v422
  %v1778 = vcvt.s32.f32 %v423
  %v1779 = vcvt.s32.f32 %v1271
  %v1780 = vcvt.s32.f32 %v1272
  %v1781 = vcvt.s32.f32 %v1273
  %v1782 = vcvt.s32.f32 %v1274
  %v1783 = vcvt.s32.f32 %v1275
  %v1784 = vcvt.s32.f32 %v1276
  %v1785 = vcvt.s32.f32 %v1277
  %v1786 = vcvt.s32.f32 %v1278
  %v1787 = vcvt.s32.f32 %v1279
  %v1788 = vcvt.s32.f32 %v1280
  %v1789 = vcvt.s32.f32 %v1281
  %v1790 = vcvt.s32.f32 %v1282
  %vm1791 = vcmp.eq.f32.partialorder %v1775, %v1774
  %vm1792 = vcmp.eq.f32.partialorder %v1776, %v1774
  %vm1793 = vcmp.eq.f32.partialorder %v1777, %v1774
  %vm1794 = vcmp.eq.f32.partialorder %v1778, %v1774
  %vm1795 = vcmp.eq.f32.partialorder %v1779, %v1774
  %vm1796 = vcmp.eq.f32.partialorder %v1780, %v1774
  %vm1797 = vcmp.eq.f32.partialorder %v1781, %v1774
  %vm1798 = vcmp.eq.f32.partialorder %v1782, %v1774
  %vm1799 = vcmp.eq.f32.partialorder %v1783, %v1774
  %vm1800 = vcmp.eq.f32.partialorder %v1784, %v1774
  %vm1801 = vcmp.eq.f32.partialorder %v1785, %v1774
  %vm1802 = vcmp.eq.f32.partialorder %v1786, %v1774
  %vm1803 = vcmp.eq.f32.partialorder %v1787, %v1774
  %vm1804 = vcmp.eq.f32.partialorder %v1788, %v1774
  %vm1805 = vcmp.eq.f32.partialorder %v1789, %v1774
  %vm1806 = vcmp.eq.f32.partialorder %v1790, %v1774
  %v1807 = vsel %vm1791, 1, 0
  %v1808 = vsel %vm1792, 1, 0
  %v1809 = vsel %vm1793, 1, 0
  %v1810 = vsel %vm1794, 1, 0
  %v1811 = vsel %vm1795, 1, 0
  %v1812 = vsel %vm1796, 1, 0
  %v1813 = vsel %vm1797, 1, 0
  %v1814 = vsel %vm1798, 1, 0
  %v1815 = vsel %vm1799, 1, 0
  %v1816 = vsel %vm1800, 1, 0
  %v1817 = vsel %vm1801, 1, 0
  %v1818 = vsel %vm1802, 1, 0
  %v1819 = vsel %vm1803, 1, 0
  %v1820 = vsel %vm1804, 1, 0
  %v1821 = vsel %vm1805, 1, 0
  %v1822 = vsel %vm1806, 1, 0
  %v1823 = vcvt.s32.f32 %v1807
  %v1824 = vcvt.s32.f32 %v1808
  %v1825 = vcvt.s32.f32 %v1809
  %v1826 = vcvt.s32.f32 %v1810
  %v1827 = vcvt.s32.f32 %v1811
  %v1828 = vcvt.s32.f32 %v1812
  %v1829 = vcvt.s32.f32 %v1813
  %v1830 = vcvt.s32.f32 %v1814
  %v1831 = vcvt.s32.f32 %v1815
  %v1832 = vcvt.s32.f32 %v1816
  %v1833 = vcvt.s32.f32 %v1817
  %v1834 = vcvt.s32.f32 %v1818
  %v1835 = vcvt.s32.f32 %v1819
  %v1836 = vcvt.s32.f32 %v1820
  %v1837 = vcvt.s32.f32 %v1821
  %v1838 = vcvt.s32.f32 %v1822
  %1839 = vmatpush.msra.mxu0 %v1542
  %1840 = vmatpush.msra.mxu0 %v1541
  %1841 = vmatpush.msra.mxu0 %v1540
  %1842 = vmatpush.msra.mxu0 %v1539
  %1843 = vmatpush.msra.mxu0 %v1538
  %1844 = vmatpush.msra.mxu0 %v1537
  %1845 = vmatpush.msra.mxu0 %v1536
  %1846 = vmatpush.msra.mxu0 %v1535
  %1847 = vmatpush.msra.mxu0 %v1534
  %1848 = vmatpush.msra.mxu0 %v1533
  %1849 = vmatpush.msra.mxu0 %v1532
  %1850 = vmatpush.msra.mxu0 %v1531
  %1851 = vmatpush.msra.mxu0 %v1530
  %1852 = vmatpush.msra.mxu0 %v1529
  %1853 = vmatpush.msra.mxu0 %v1528
  %1854 = vmatpush.msra.mxu0 %v1527
  %1855 = vmatmul.f32.gmra.mxu0 %v1823
  %v1856 = vpop.f32.mrf.mxu0
  %v1857 = vadd.f32 0.0, %v1856
  %1858 = vmatmul.f32.gmra.mxu0 %v1824
  %v1859 = vpop.f32.mrf.mxu0
  %v1860 = vadd.f32 0.0, %v1859
  %1861 = vmatmul.f32.gmra.mxu0 %v1825
  %v1862 = vpop.f32.mrf.mxu0
  %v1863 = vadd.f32 0.0, %v1862
  %1864 = vmatmul.f32.gmra.mxu0 %v1826
  %v1865 = vpop.f32.mrf.mxu0
  %v1866 = vadd.f32 0.0, %v1865
  %1867 = vmatmul.f32.gmra.mxu0 %v1827
  %v1868 = vpop.f32.mrf.mxu0
  %v1869 = vadd.f32 0.0, %v1868
  %1870 = vmatmul.f32.gmra.mxu0 %v1828
  %v1871 = vpop.f32.mrf.mxu0
  %v1872 = vadd.f32 0.0, %v1871
  %1873 = vmatmul.f32.gmra.mxu0 %v1829
  %v1874 = vpop.f32.mrf.mxu0
  %v1875 = vadd.f32 0.0, %v1874
  %1876 = vmatmul.f32.gmra.mxu0 %v1830
  %v1877 = vpop.f32.mrf.mxu0
  %v1878 = vadd.f32 0.0, %v1877
  %1879 = vmatmul.f32.gmra.mxu0 %v1831
  %v1880 = vpop.f32.mrf.mxu0
  %v1881 = vadd.f32 0.0, %v1880
  %1882 = vmatmul.f32.gmra.mxu0 %v1832
  %v1883 = vpop.f32.mrf.mxu0
  %v1884 = vadd.f32 0.0, %v1883
  %1885 = vmatmul.f32.gmra.mxu0 %v1833
  %v1886 = vpop.f32.mrf.mxu0
  %v1887 = vadd.f32 0.0, %v1886
  %1888 = vmatmul.f32.gmra.mxu0 %v1834
  %v1889 = vpop.f32.mrf.mxu0
  %v1890 = vadd.f32 0.0, %v1889
  %1891 = vmatmul.f32.gmra.mxu0 %v1835
  %v1892 = vpop.f32.mrf.mxu0
  %v1893 = vadd.f32 0.0, %v1892
  %1894 = vmatmul.f32.gmra.mxu0 %v1836
  %v1895 = vpop.f32.mrf.mxu0
  %v1896 = vadd.f32 0.0, %v1895
  %1897 = vmatmul.f32.gmra.mxu0 %v1837
  %v1898 = vpop.f32.mrf.mxu0
  %v1899 = vadd.f32 0.0, %v1898
  %1900 = vmatmul.f32.gmra.mxu0 %v1838
  %v1901 = vpop.f32.mrf.mxu0
  %v1902 = vadd.f32 0.0, %v1901
  %1903 = vdwg.mxu0
  %1904 = vxpose.xlu0.b32.start [1/16] %v1857, 128
  %1905 = vxpose.xlu0.b32.cont [2/16] %v1860, 128
  %1906 = vxpose.xlu0.b32.cont [3/16] %v1863, 128
  %1907 = vxpose.xlu0.b32.cont [4/16] %v1866, 128
  %1908 = vxpose.xlu0.b32.cont [5/16] %v1869, 128
  %1909 = vxpose.xlu0.b32.cont [6/16] %v1872, 128
  %1910 = vxpose.xlu0.b32.cont [7/16] %v1875, 128
  %1911 = vxpose.xlu0.b32.cont [8/16] %v1878, 128
  %1912 = vxpose.xlu0.b32.cont [9/16] %v1881, 128
  %1913 = vxpose.xlu0.b32.cont [10/16] %v1884, 128
  %1914 = vxpose.xlu0.b32.cont [11/16] %v1887, 128
  %1915 = vxpose.xlu0.b32.cont [12/16] %v1890, 128
  %1916 = vxpose.xlu0.b32.cont [13/16] %v1893, 128
  %1917 = vxpose.xlu0.b32.cont [14/16] %v1896, 128
  %1918 = vxpose.xlu0.b32.cont [15/16] %v1899, 128
  %1919 = vxpose.xlu0.b32.end [16/16] %v1902, 128
  %v1920 = vpop.trf.xlu0
  %v1921 = vpop.trf.xlu0
  %v1922 = vpop.trf.xlu0
  %v1923 = vpop.trf.xlu0
  %v1924 = vpop.trf.xlu0
  %v1925 = vpop.trf.xlu0
  %v1926 = vpop.trf.xlu0
  %v1927 = vpop.trf.xlu0
  %v1928 = vpop.trf.xlu0
  %v1929 = vpop.trf.xlu0
  %v1930 = vpop.trf.xlu0
  %v1931 = vpop.trf.xlu0
  %v1932 = vpop.trf.xlu0
  %v1933 = vpop.trf.xlu0
  %v1934 = vpop.trf.xlu0
  %v1935 = vpop.trf.xlu0
  %1937 = vset.pattern.permute.xlu0 7
  %1938 = vperm.xlu0 %1937, %v1857
  %v1939 = vpop.permute.xlu0 %1938
  %1942 = vset.pattern.permute.xlu0 7
  %1943 = vperm.xlu0 %1942, %v1860
  %v1944 = vpop.permute.xlu0 %1943
  %1947 = vset.pattern.permute.xlu0 7
  %1948 = vperm.xlu0 %1947, %v1863
  %v1949 = vpop.permute.xlu0 %1948
  %1952 = vset.pattern.permute.xlu0 7
  %1953 = vperm.xlu0 %1952, %v1866
  %v1954 = vpop.permute.xlu0 %1953
  %1957 = vset.pattern.permute.xlu0 7
  %1958 = vperm.xlu0 %1957, %v1869
  %v1959 = vpop.permute.xlu0 %1958
  %1962 = vset.pattern.permute.xlu0 7
  %1963 = vperm.xlu0 %1962, %v1872
  %v1964 = vpop.permute.xlu0 %1963
  %1967 = vset.pattern.permute.xlu0 7
  %1968 = vperm.xlu0 %1967, %v1875
  %v1969 = vpop.permute.xlu0 %1968
  %1972 = vset.pattern.permute.xlu0 7
  %1973 = vperm.xlu0 %1972, %v1878
  %v1974 = vpop.permute.xlu0 %1973
  %1977 = vset.pattern.permute.xlu0 7
  %1978 = vperm.xlu0 %1977, %v1881
  %v1979 = vpop.permute.xlu0 %1978
  %1982 = vset.pattern.permute.xlu0 7
  %1983 = vperm.xlu0 %1982, %v1884
  %v1984 = vpop.permute.xlu0 %1983
  %1987 = vset.pattern.permute.xlu0 7
  %1988 = vperm.xlu0 %1987, %v1887
  %v1989 = vpop.permute.xlu0 %1988
  %1992 = vset.pattern.permute.xlu0 7
  %1993 = vperm.xlu0 %1992, %v1890
  %v1994 = vpop.permute.xlu0 %1993
  %1997 = vset.pattern.permute.xlu0 7
  %1998 = vperm.xlu0 %1997, %v1893
  %v1999 = vpop.permute.xlu0 %1998
  %2002 = vset.pattern.permute.xlu0 7
  %2003 = vperm.xlu0 %2002, %v1896
  %v2004 = vpop.permute.xlu0 %2003
  %2007 = vset.pattern.permute.xlu0 7
  %2008 = vperm.xlu0 %2007, %v1899
  %v2009 = vpop.permute.xlu0 %2008
  %2012 = vset.pattern.permute.xlu0 7
  %2013 = vperm.xlu0 %2012, %v1902
  %v2014 = vpop.permute.xlu0 %2013
  %v2016 = vadd.f32 %v1857, %v1939
  %v2017 = vadd.f32 %v1860, %v1944
  %v2018 = vadd.f32 %v1863, %v1949
  %v2019 = vadd.f32 %v1866, %v1954
  %v2020 = vadd.f32 %v1869, %v1959
  %v2021 = vadd.f32 %v1872, %v1964
  %v2022 = vadd.f32 %v1875, %v1969
  %v2023 = vadd.f32 %v1878, %v1974
  %v2024 = vadd.f32 %v1881, %v1979
  %v2025 = vadd.f32 %v1884, %v1984
  %v2026 = vadd.f32 %v1887, %v1989
  %v2027 = vadd.f32 %v1890, %v1994
  %v2028 = vadd.f32 %v1893, %v1999
  %v2029 = vadd.f32 %v1896, %v2004
  %v2030 = vadd.f32 %v1899, %v2009
  %v2031 = vadd.f32 %v1902, %v2014
  %v2032 = vperm.slane %v1920, 7
  %v2033 = vadd.f32 %v1920, %v2032
  %2035 = vset.pattern.permute.xlu0 2
  %2036 = vperm.xlu0 %2035, %v2016
  %v2037 = vpop.permute.xlu0 %2036
  %2040 = vset.pattern.permute.xlu0 2
  %2041 = vperm.xlu0 %2040, %v2017
  %v2042 = vpop.permute.xlu0 %2041
  %2045 = vset.pattern.permute.xlu0 2
  %2046 = vperm.xlu0 %2045, %v2018
  %v2047 = vpop.permute.xlu0 %2046
  %2050 = vset.pattern.permute.xlu0 2
  %2051 = vperm.xlu0 %2050, %v2019
  %v2052 = vpop.permute.xlu0 %2051
  %2055 = vset.pattern.permute.xlu0 2
  %2056 = vperm.xlu0 %2055, %v2020
  %v2057 = vpop.permute.xlu0 %2056
  %2060 = vset.pattern.permute.xlu0 2
  %2061 = vperm.xlu0 %2060, %v2021
  %v2062 = vpop.permute.xlu0 %2061
  %2065 = vset.pattern.permute.xlu0 2
  %2066 = vperm.xlu0 %2065, %v2022
  %v2067 = vpop.permute.xlu0 %2066
  %2070 = vset.pattern.permute.xlu0 2
  %2071 = vperm.xlu0 %2070, %v2023
  %v2072 = vpop.permute.xlu0 %2071
  %2075 = vset.pattern.permute.xlu0 2
  %2076 = vperm.xlu0 %2075, %v2024
  %v2077 = vpop.permute.xlu0 %2076
  %2080 = vset.pattern.permute.xlu0 2
  %2081 = vperm.xlu0 %2080, %v2025
  %v2082 = vpop.permute.xlu0 %2081
  %2085 = vset.pattern.permute.xlu0 2
  %2086 = vperm.xlu0 %2085, %v2026
  %v2087 = vpop.permute.xlu0 %2086
  %2090 = vset.pattern.permute.xlu0 2
  %2091 = vperm.xlu0 %2090, %v2027
  %v2092 = vpop.permute.xlu0 %2091
  %2095 = vset.pattern.permute.xlu0 2
  %2096 = vperm.xlu0 %2095, %v2028
  %v2097 = vpop.permute.xlu0 %2096
  %2100 = vset.pattern.permute.xlu0 2
  %2101 = vperm.xlu0 %2100, %v2029
  %v2102 = vpop.permute.xlu0 %2101
  %2105 = vset.pattern.permute.xlu0 2
  %2106 = vperm.xlu0 %2105, %v2030
  %v2107 = vpop.permute.xlu0 %2106
  %2110 = vset.pattern.permute.xlu0 2
  %2111 = vperm.xlu0 %2110, %v2031
  %v2112 = vpop.permute.xlu0 %2111
  %v2114 = vperm.slane %v2033, 2
  %v2115 = vmin.f32 %v2037, %v2114
  %v2116 = vmin.f32 %v2042, %v2114
  %v2117 = vmin.f32 %v2047, %v2114
  %v2118 = vmin.f32 %v2052, %v2114
  %v2119 = vmin.f32 %v2057, %v2114
  %v2120 = vmin.f32 %v2062, %v2114
  %v2121 = vmin.f32 %v2067, %v2114
  %v2122 = vmin.f32 %v2072, %v2114
  %v2123 = vmin.f32 %v2077, %v2114
  %v2124 = vmin.f32 %v2082, %v2114
  %v2125 = vmin.f32 %v2087, %v2114
  %v2126 = vmin.f32 %v2092, %v2114
  %v2127 = vmin.f32 %v2097, %v2114
  %v2128 = vmin.f32 %v2102, %v2114
  %v2129 = vmin.f32 %v2107, %v2114
  %v2130 = vmin.f32 %v2112, %v2114
  %2131 = vset.pattern.permute.xlu0 0
  %2132 = vperm.xlu0 %2131, %v2016
  %v2133 = vpop.permute.xlu0 %2132
  %2135 = vset.pattern.permute.xlu0 0
  %2136 = vperm.xlu0 %2135, %v2017
  %v2137 = vpop.permute.xlu0 %2136
  %2139 = vset.pattern.permute.xlu0 0
  %2140 = vperm.xlu0 %2139, %v2018
  %v2141 = vpop.permute.xlu0 %2140
  %2143 = vset.pattern.permute.xlu0 0
  %2144 = vperm.xlu0 %2143, %v2019
  %v2145 = vpop.permute.xlu0 %2144
  %2147 = vset.pattern.permute.xlu0 0
  %2148 = vperm.xlu0 %2147, %v2020
  %v2149 = vpop.permute.xlu0 %2148
  %2151 = vset.pattern.permute.xlu0 0
  %2152 = vperm.xlu0 %2151, %v2021
  %v2153 = vpop.permute.xlu0 %2152
  %2155 = vset.pattern.permute.xlu0 0
  %2156 = vperm.xlu0 %2155, %v2022
  %v2157 = vpop.permute.xlu0 %2156
  %2159 = vset.pattern.permute.xlu0 0
  %2160 = vperm.xlu0 %2159, %v2023
  %v2161 = vpop.permute.xlu0 %2160
  %2163 = vset.pattern.permute.xlu0 0
  %2164 = vperm.xlu0 %2163, %v2024
  %v2165 = vpop.permute.xlu0 %2164
  %2167 = vset.pattern.permute.xlu0 0
  %2168 = vperm.xlu0 %2167, %v2025
  %v2169 = vpop.permute.xlu0 %2168
  %2171 = vset.pattern.permute.xlu0 0
  %2172 = vperm.xlu0 %2171, %v2026
  %v2173 = vpop.permute.xlu0 %2172
  %2175 = vset.pattern.permute.xlu0 0
  %2176 = vperm.xlu0 %2175, %v2027
  %v2177 = vpop.permute.xlu0 %2176
  %2179 = vset.pattern.permute.xlu0 0
  %2180 = vperm.xlu0 %2179, %v2028
  %v2181 = vpop.permute.xlu0 %2180
  %2183 = vset.pattern.permute.xlu0 0
  %2184 = vperm.xlu0 %2183, %v2029
  %v2185 = vpop.permute.xlu0 %2184
  %2187 = vset.pattern.permute.xlu0 0
  %2188 = vperm.xlu0 %2187, %v2030
  %v2189 = vpop.permute.xlu0 %2188
  %2191 = vset.pattern.permute.xlu0 0
  %2192 = vperm.xlu0 %2191, %v2031
  %v2193 = vpop.permute.xlu0 %2192
  %v2195 = vperm.slane %v2033, 0
  %v2196 = vmax.f32 %v2133, %v2195
  %v2197 = vmax.f32 %v2137, %v2195
  %v2198 = vmax.f32 %v2141, %v2195
  %v2199 = vmax.f32 %v2145, %v2195
  %v2200 = vmax.f32 %v2149, %v2195
  %v2201 = vmax.f32 %v2153, %v2195
  %v2202 = vmax.f32 %v2157, %v2195
  %v2203 = vmax.f32 %v2161, %v2195
  %v2204 = vmax.f32 %v2165, %v2195
  %v2205 = vmax.f32 %v2169, %v2195
  %v2206 = vmax.f32 %v2173, %v2195
  %v2207 = vmax.f32 %v2177, %v2195
  %v2208 = vmax.f32 %v2181, %v2195
  %v2209 = vmax.f32 %v2185, %v2195
  %v2210 = vmax.f32 %v2189, %v2195
  %v2211 = vmax.f32 %v2193, %v2195
  %v2212 = vsub.f32 %v2115, %v2196
  %v2213 = vsub.f32 %v2116, %v2197
  %v2214 = vsub.f32 %v2117, %v2198
  %v2215 = vsub.f32 %v2118, %v2199
  %v2216 = vsub.f32 %v2119, %v2200
  %v2217 = vsub.f32 %v2120, %v2201
  %v2218 = vsub.f32 %v2121, %v2202
  %v2219 = vsub.f32 %v2122, %v2203
  %v2220 = vsub.f32 %v2123, %v2204
  %v2221 = vsub.f32 %v2124, %v2205
  %v2222 = vsub.f32 %v2125, %v2206
  %v2223 = vsub.f32 %v2126, %v2207
  %v2224 = vsub.f32 %v2127, %v2208
  %v2225 = vsub.f32 %v2128, %v2209
  %v2226 = vsub.f32 %v2129, %v2210
  %v2227 = vsub.f32 %v2130, %v2211
  %v2228 = vmax.f32 %v2212, 0.0
  %v2229 = vmax.f32 %v2213, 0.0
  %v2230 = vmax.f32 %v2214, 0.0
  %v2231 = vmax.f32 %v2215, 0.0
  %v2232 = vmax.f32 %v2216, 0.0
  %v2233 = vmax.f32 %v2217, 0.0
  %v2234 = vmax.f32 %v2218, 0.0
  %v2235 = vmax.f32 %v2219, 0.0
  %v2236 = vmax.f32 %v2220, 0.0
  %v2237 = vmax.f32 %v2221, 0.0
  %v2238 = vmax.f32 %v2222, 0.0
  %v2239 = vmax.f32 %v2223, 0.0
  %v2240 = vmax.f32 %v2224, 0.0
  %v2241 = vmax.f32 %v2225, 0.0
  %v2242 = vmax.f32 %v2226, 0.0
  %v2243 = vmax.f32 %v2227, 0.0
  %2244 = vset.pattern.permute.xlu0 3
  %2245 = vperm.xlu0 %2244, %v2016
  %v2246 = vpop.permute.xlu0 %2245
  %2248 = vset.pattern.permute.xlu0 3
  %2249 = vperm.xlu0 %2248, %v2017
  %v2250 = vpop.permute.xlu0 %2249
  %2252 = vset.pattern.permute.xlu0 3
  %2253 = vperm.xlu0 %2252, %v2018
  %v2254 = vpop.permute.xlu0 %2253
  %2256 = vset.pattern.permute.xlu0 3
  %2257 = vperm.xlu0 %2256, %v2019
  %v2258 = vpop.permute.xlu0 %2257
  %2260 = vset.pattern.permute.xlu0 3
  %2261 = vperm.xlu0 %2260, %v2020
  %v2262 = vpop.permute.xlu0 %2261
  %2264 = vset.pattern.permute.xlu0 3
  %2265 = vperm.xlu0 %2264, %v2021
  %v2266 = vpop.permute.xlu0 %2265
  %2268 = vset.pattern.permute.xlu0 3
  %2269 = vperm.xlu0 %2268, %v2022
  %v2270 = vpop.permute.xlu0 %2269
  %2272 = vset.pattern.permute.xlu0 3
  %2273 = vperm.xlu0 %2272, %v2023
  %v2274 = vpop.permute.xlu0 %2273
  %2276 = vset.pattern.permute.xlu0 3
  %2277 = vperm.xlu0 %2276, %v2024
  %v2278 = vpop.permute.xlu0 %2277
  %2280 = vset.pattern.permute.xlu0 3
  %2281 = vperm.xlu0 %2280, %v2025
  %v2282 = vpop.permute.xlu0 %2281
  %2284 = vset.pattern.permute.xlu0 3
  %2285 = vperm.xlu0 %2284, %v2026
  %v2286 = vpop.permute.xlu0 %2285
  %2288 = vset.pattern.permute.xlu0 3
  %2289 = vperm.xlu0 %2288, %v2027
  %v2290 = vpop.permute.xlu0 %2289
  %2292 = vset.pattern.permute.xlu0 3
  %2293 = vperm.xlu0 %2292, %v2028
  %v2294 = vpop.permute.xlu0 %2293
  %2296 = vset.pattern.permute.xlu0 3
  %2297 = vperm.xlu0 %2296, %v2029
  %v2298 = vpop.permute.xlu0 %2297
  %2300 = vset.pattern.permute.xlu0 3
  %2301 = vperm.xlu0 %2300, %v2030
  %v2302 = vpop.permute.xlu0 %2301
  %2304 = vset.pattern.permute.xlu0 3
  %2305 = vperm.xlu0 %2304, %v2031
  %v2306 = vpop.permute.xlu0 %2305
  %v2308 = vperm.slane %v2033, 3
  %v2309 = vmin.f32 %v2246, %v2308
  %v2310 = vmin.f32 %v2250, %v2308
  %v2311 = vmin.f32 %v2254, %v2308
  %v2312 = vmin.f32 %v2258, %v2308
  %v2313 = vmin.f32 %v2262, %v2308
  %v2314 = vmin.f32 %v2266, %v2308
  %v2315 = vmin.f32 %v2270, %v2308
  %v2316 = vmin.f32 %v2274, %v2308
  %v2317 = vmin.f32 %v2278, %v2308
  %v2318 = vmin.f32 %v2282, %v2308
  %v2319 = vmin.f32 %v2286, %v2308
  %v2320 = vmin.f32 %v2290, %v2308
  %v2321 = vmin.f32 %v2294, %v2308
  %v2322 = vmin.f32 %v2298, %v2308
  %v2323 = vmin.f32 %v2302, %v2308
  %v2324 = vmin.f32 %v2306, %v2308
  %2325 = vset.pattern.permute.xlu0 1
  %2326 = vperm.xlu0 %2325, %v2016
  %v2327 = vpop.permute.xlu0 %2326
  %2329 = vset.pattern.permute.xlu0 1
  %2330 = vperm.xlu0 %2329, %v2017
  %v2331 = vpop.permute.xlu0 %2330
  %2333 = vset.pattern.permute.xlu0 1
  %2334 = vperm.xlu0 %2333, %v2018
  %v2335 = vpop.permute.xlu0 %2334
  %2337 = vset.pattern.permute.xlu0 1
  %2338 = vperm.xlu0 %2337, %v2019
  %v2339 = vpop.permute.xlu0 %2338
  %2341 = vset.pattern.permute.xlu0 1
  %2342 = vperm.xlu0 %2341, %v2020
  %v2343 = vpop.permute.xlu0 %2342
  %2345 = vset.pattern.permute.xlu0 1
  %2346 = vperm.xlu0 %2345, %v2021
  %v2347 = vpop.permute.xlu0 %2346
  %2349 = vset.pattern.permute.xlu0 1
  %2350 = vperm.xlu0 %2349, %v2022
  %v2351 = vpop.permute.xlu0 %2350
  %2353 = vset.pattern.permute.xlu0 1
  %2354 = vperm.xlu0 %2353, %v2023
  %v2355 = vpop.permute.xlu0 %2354
  %2357 = vset.pattern.permute.xlu0 1
  %2358 = vperm.xlu0 %2357, %v2024
  %v2359 = vpop.permute.xlu0 %2358
  %2361 = vset.pattern.permute.xlu0 1
  %2362 = vperm.xlu0 %2361, %v2025
  %v2363 = vpop.permute.xlu0 %2362
  %2365 = vset.pattern.permute.xlu0 1
  %2366 = vperm.xlu0 %2365, %v2026
  %v2367 = vpop.permute.xlu0 %2366
  %2369 = vset.pattern.permute.xlu0 1
  %2370 = vperm.xlu0 %2369, %v2027
  %v2371 = vpop.permute.xlu0 %2370
  %2373 = vset.pattern.permute.xlu0 1
  %2374 = vperm.xlu0 %2373, %v2028
  %v2375 = vpop.permute.xlu0 %2374
  %2377 = vset.pattern.permute.xlu0 1
  %2378 = vperm.xlu0 %2377, %v2029
  %v2379 = vpop.permute.xlu0 %2378
  %2381 = vset.pattern.permute.xlu0 1
  %2382 = vperm.xlu0 %2381, %v2030
  %v2383 = vpop.permute.xlu0 %2382
  %2385 = vset.pattern.permute.xlu0 1
  %2386 = vperm.xlu0 %2385, %v2031
  %v2387 = vpop.permute.xlu0 %2386
  %v2389 = vperm.slane %v2033, 1
  %v2390 = vmax.f32 %v2327, %v2389
  %v2391 = vmax.f32 %v2331, %v2389
  %v2392 = vmax.f32 %v2335, %v2389
  %v2393 = vmax.f32 %v2339, %v2389
  %v2394 = vmax.f32 %v2343, %v2389
  %v2395 = vmax.f32 %v2347, %v2389
  %v2396 = vmax.f32 %v2351, %v2389
  %v2397 = vmax.f32 %v2355, %v2389
  %v2398 = vmax.f32 %v2359, %v2389
  %v2399 = vmax.f32 %v2363, %v2389
  %v2400 = vmax.f32 %v2367, %v2389
  %v2401 = vmax.f32 %v2371, %v2389
  %v2402 = vmax.f32 %v2375, %v2389
  %v2403 = vmax.f32 %v2379, %v2389
  %v2404 = vmax.f32 %v2383, %v2389
  %v2405 = vmax.f32 %v2387, %v2389
  %v2406 = vsub.f32 %v2309, %v2390
  %v2407 = vsub.f32 %v2310, %v2391
  %v2408 = vsub.f32 %v2311, %v2392
  %v2409 = vsub.f32 %v2312, %v2393
  %v2410 = vsub.f32 %v2313, %v2394
  %v2411 = vsub.f32 %v2314, %v2395
  %v2412 = vsub.f32 %v2315, %v2396
  %v2413 = vsub.f32 %v2316, %v2397
  %v2414 = vsub.f32 %v2317, %v2398
  %v2415 = vsub.f32 %v2318, %v2399
  %v2416 = vsub.f32 %v2319, %v2400
  %v2417 = vsub.f32 %v2320, %v2401
  %v2418 = vsub.f32 %v2321, %v2402
  %v2419 = vsub.f32 %v2322, %v2403
  %v2420 = vsub.f32 %v2323, %v2404
  %v2421 = vsub.f32 %v2324, %v2405
  %v2422 = vmax.f32 %v2406, 0.0
  %v2423 = vmax.f32 %v2407, 0.0
  %v2424 = vmax.f32 %v2408, 0.0
  %v2425 = vmax.f32 %v2409, 0.0
  %v2426 = vmax.f32 %v2410, 0.0
  %v2427 = vmax.f32 %v2411, 0.0
  %v2428 = vmax.f32 %v2412, 0.0
  %v2429 = vmax.f32 %v2413, 0.0
  %v2430 = vmax.f32 %v2414, 0.0
  %v2431 = vmax.f32 %v2415, 0.0
  %v2432 = vmax.f32 %v2416, 0.0
  %v2433 = vmax.f32 %v2417, 0.0
  %v2434 = vmax.f32 %v2418, 0.0
  %v2435 = vmax.f32 %v2419, 0.0
  %v2436 = vmax.f32 %v2420, 0.0
  %v2437 = vmax.f32 %v2421, 0.0
  %v2438 = vmul.f32 %v2228, %v2422
  %v2439 = vmul.f32 %v2229, %v2423
  %v2440 = vmul.f32 %v2230, %v2424
  %v2441 = vmul.f32 %v2231, %v2425
  %v2442 = vmul.f32 %v2232, %v2426
  %v2443 = vmul.f32 %v2233, %v2427
  %v2444 = vmul.f32 %v2234, %v2428
  %v2445 = vmul.f32 %v2235, %v2429
  %v2446 = vmul.f32 %v2236, %v2430
  %v2447 = vmul.f32 %v2237, %v2431
  %v2448 = vmul.f32 %v2238, %v2432
  %v2449 = vmul.f32 %v2239, %v2433
  %v2450 = vmul.f32 %v2240, %v2434
  %v2451 = vmul.f32 %v2241, %v2435
  %v2452 = vmul.f32 %v2242, %v2436
  %v2453 = vmul.f32 %v2243, %v2437
  %2454 = vrot.lane.b32.xlu0 %v2016, 2
  %v2455 = vpop.permute.xlu0 %2454
  %2456 = vrot.lane.b32.xlu0 %v2017, 2
  %v2457 = vpop.permute.xlu0 %2456
  %2458 = vrot.lane.b32.xlu0 %v2018, 2
  %v2459 = vpop.permute.xlu0 %2458
  %2460 = vrot.lane.b32.xlu0 %v2019, 2
  %v2461 = vpop.permute.xlu0 %2460
  %2462 = vrot.lane.b32.xlu0 %v2020, 2
  %v2463 = vpop.permute.xlu0 %2462
  %2464 = vrot.lane.b32.xlu0 %v2021, 2
  %v2465 = vpop.permute.xlu0 %2464
  %2466 = vrot.lane.b32.xlu0 %v2022, 2
  %v2467 = vpop.permute.xlu0 %2466
  %2468 = vrot.lane.b32.xlu0 %v2023, 2
  %v2469 = vpop.permute.xlu0 %2468
  %2470 = vrot.lane.b32.xlu0 %v2024, 2
  %v2471 = vpop.permute.xlu0 %2470
  %2472 = vrot.lane.b32.xlu0 %v2025, 2
  %v2473 = vpop.permute.xlu0 %2472
  %2474 = vrot.lane.b32.xlu0 %v2026, 2
  %v2475 = vpop.permute.xlu0 %2474
  %2476 = vrot.lane.b32.xlu0 %v2027, 2
  %v2477 = vpop.permute.xlu0 %2476
  %2478 = vrot.lane.b32.xlu0 %v2028, 2
  %v2479 = vpop.permute.xlu0 %2478
  %2480 = vrot.lane.b32.xlu0 %v2029, 2
  %v2481 = vpop.permute.xlu0 %2480
  %2482 = vrot.lane.b32.xlu0 %v2030, 2
  %v2483 = vpop.permute.xlu0 %2482
  %2484 = vrot.lane.b32.xlu0 %v2031, 2
  %v2485 = vpop.permute.xlu0 %2484
  %v2502 = vsub.f32 %v2016, %v2455
  %v2503 = vsub.f32 %v2017, %v2457
  %v2504 = vsub.f32 %v2018, %v2459
  %v2505 = vsub.f32 %v2019, %v2461
  %v2506 = vsub.f32 %v2020, %v2463
  %v2507 = vsub.f32 %v2021, %v2465
  %v2508 = vsub.f32 %v2022, %v2467
  %v2509 = vsub.f32 %v2023, %v2469
  %v2510 = vsub.f32 %v2024, %v2471
  %v2511 = vsub.f32 %v2025, %v2473
  %v2512 = vsub.f32 %v2026, %v2475
  %v2513 = vsub.f32 %v2027, %v2477
  %v2514 = vsub.f32 %v2028, %v2479
  %v2515 = vsub.f32 %v2029, %v2481
  %v2516 = vsub.f32 %v2030, %v2483
  %v2517 = vsub.f32 %v2031, %v2485
  %v2518 = vmax.f32 %v2502, 0.0
  %v2519 = vmax.f32 %v2503, 0.0
  %v2520 = vmax.f32 %v2504, 0.0
  %v2521 = vmax.f32 %v2505, 0.0
  %v2522 = vmax.f32 %v2506, 0.0
  %v2523 = vmax.f32 %v2507, 0.0
  %v2524 = vmax.f32 %v2508, 0.0
  %v2525 = vmax.f32 %v2509, 0.0
  %v2526 = vmax.f32 %v2510, 0.0
  %v2527 = vmax.f32 %v2511, 0.0
  %v2528 = vmax.f32 %v2512, 0.0
  %v2529 = vmax.f32 %v2513, 0.0
  %v2530 = vmax.f32 %v2514, 0.0
  %v2531 = vmax.f32 %v2515, 0.0
  %v2532 = vmax.f32 %v2516, 0.0
  %v2533 = vmax.f32 %v2517, 0.0
  %2550 = vrot.lane.b32.xlu0 %v2518, 127
  %v2551 = vpop.permute.xlu0 %2550
  %2552 = vrot.lane.b32.xlu0 %v2519, 127
  %v2553 = vpop.permute.xlu0 %2552
  %2554 = vrot.lane.b32.xlu0 %v2520, 127
  %v2555 = vpop.permute.xlu0 %2554
  %2556 = vrot.lane.b32.xlu0 %v2521, 127
  %v2557 = vpop.permute.xlu0 %2556
  %2558 = vrot.lane.b32.xlu0 %v2522, 127
  %v2559 = vpop.permute.xlu0 %2558
  %2560 = vrot.lane.b32.xlu0 %v2523, 127
  %v2561 = vpop.permute.xlu0 %2560
  %2562 = vrot.lane.b32.xlu0 %v2524, 127
  %v2563 = vpop.permute.xlu0 %2562
  %2564 = vrot.lane.b32.xlu0 %v2525, 127
  %v2565 = vpop.permute.xlu0 %2564
  %2566 = vrot.lane.b32.xlu0 %v2526, 127
  %v2567 = vpop.permute.xlu0 %2566
  %2568 = vrot.lane.b32.xlu0 %v2527, 127
  %v2569 = vpop.permute.xlu0 %2568
  %2570 = vrot.lane.b32.xlu0 %v2528, 127
  %v2571 = vpop.permute.xlu0 %2570
  %2572 = vrot.lane.b32.xlu0 %v2529, 127
  %v2573 = vpop.permute.xlu0 %2572
  %2574 = vrot.lane.b32.xlu0 %v2530, 127
  %v2575 = vpop.permute.xlu0 %2574
  %2576 = vrot.lane.b32.xlu0 %v2531, 127
  %v2577 = vpop.permute.xlu0 %2576
  %2578 = vrot.lane.b32.xlu0 %v2532, 127
  %v2579 = vpop.permute.xlu0 %2578
  %2580 = vrot.lane.b32.xlu0 %v2533, 127
  %v2581 = vpop.permute.xlu0 %2580
  %v2598 = vmul.f32 %v2518, %v2551
  %v2599 = vmul.f32 %v2519, %v2553
  %v2600 = vmul.f32 %v2520, %v2555
  %v2601 = vmul.f32 %v2521, %v2557
  %v2602 = vmul.f32 %v2522, %v2559
  %v2603 = vmul.f32 %v2523, %v2561
  %v2604 = vmul.f32 %v2524, %v2563
  %v2605 = vmul.f32 %v2525, %v2565
  %v2606 = vmul.f32 %v2526, %v2567
  %v2607 = vmul.f32 %v2527, %v2569
  %v2608 = vmul.f32 %v2528, %v2571
  %v2609 = vmul.f32 %v2529, %v2573
  %v2610 = vmul.f32 %v2530, %v2575
  %v2611 = vmul.f32 %v2531, %v2577
  %v2612 = vmul.f32 %v2532, %v2579
  %v2613 = vmul.f32 %v2533, %v2581
  %v2615 = vrot.slane %v2033, 6
  %v2617 = vsub.f32 %v2033, %v2615
  %v2618 = vmax.f32 %v2617, 0.0
  %v2620 = vrot.slane %v2618, 1
  %v2622 = vmul.f32 %v2618, %v2620
  %2624 = vset.pattern.permute.xlu0 2
  %2625 = vperm.xlu0 %2624, %v2598
  %v2626 = vpop.permute.xlu0 %2625
  %2629 = vset.pattern.permute.xlu0 2
  %2630 = vperm.xlu0 %2629, %v2599
  %v2631 = vpop.permute.xlu0 %2630
  %2634 = vset.pattern.permute.xlu0 2
  %2635 = vperm.xlu0 %2634, %v2600
  %v2636 = vpop.permute.xlu0 %2635
  %2639 = vset.pattern.permute.xlu0 2
  %2640 = vperm.xlu0 %2639, %v2601
  %v2641 = vpop.permute.xlu0 %2640
  %2644 = vset.pattern.permute.xlu0 2
  %2645 = vperm.xlu0 %2644, %v2602
  %v2646 = vpop.permute.xlu0 %2645
  %2649 = vset.pattern.permute.xlu0 2
  %2650 = vperm.xlu0 %2649, %v2603
  %v2651 = vpop.permute.xlu0 %2650
  %2654 = vset.pattern.permute.xlu0 2
  %2655 = vperm.xlu0 %2654, %v2604
  %v2656 = vpop.permute.xlu0 %2655
  %2659 = vset.pattern.permute.xlu0 2
  %2660 = vperm.xlu0 %2659, %v2605
  %v2661 = vpop.permute.xlu0 %2660
  %2664 = vset.pattern.permute.xlu0 2
  %2665 = vperm.xlu0 %2664, %v2606
  %v2666 = vpop.permute.xlu0 %2665
  %2669 = vset.pattern.permute.xlu0 2
  %2670 = vperm.xlu0 %2669, %v2607
  %v2671 = vpop.permute.xlu0 %2670
  %2674 = vset.pattern.permute.xlu0 2
  %2675 = vperm.xlu0 %2674, %v2608
  %v2676 = vpop.permute.xlu0 %2675
  %2679 = vset.pattern.permute.xlu0 2
  %2680 = vperm.xlu0 %2679, %v2609
  %v2681 = vpop.permute.xlu0 %2680
  %2684 = vset.pattern.permute.xlu0 2
  %2685 = vperm.xlu0 %2684, %v2610
  %v2686 = vpop.permute.xlu0 %2685
  %2689 = vset.pattern.permute.xlu0 2
  %2690 = vperm.xlu0 %2689, %v2611
  %v2691 = vpop.permute.xlu0 %2690
  %2694 = vset.pattern.permute.xlu0 2
  %2695 = vperm.xlu0 %2694, %v2612
  %v2696 = vpop.permute.xlu0 %2695
  %2699 = vset.pattern.permute.xlu0 2
  %2700 = vperm.xlu0 %2699, %v2613
  %v2701 = vpop.permute.xlu0 %2700
  %v2703 = vperm.slane %v2622, 2
  %v2704 = vadd.f32 %v2626, %v2703
  %v2705 = vadd.f32 %v2631, %v2703
  %v2706 = vadd.f32 %v2636, %v2703
  %v2707 = vadd.f32 %v2641, %v2703
  %v2708 = vadd.f32 %v2646, %v2703
  %v2709 = vadd.f32 %v2651, %v2703
  %v2710 = vadd.f32 %v2656, %v2703
  %v2711 = vadd.f32 %v2661, %v2703
  %v2712 = vadd.f32 %v2666, %v2703
  %v2713 = vadd.f32 %v2671, %v2703
  %v2714 = vadd.f32 %v2676, %v2703
  %v2715 = vadd.f32 %v2681, %v2703
  %v2716 = vadd.f32 %v2686, %v2703
  %v2717 = vadd.f32 %v2691, %v2703
  %v2718 = vadd.f32 %v2696, %v2703
  %v2719 = vadd.f32 %v2701, %v2703
  %v2720 = vsub.f32 %v2704, %v2438
  %v2721 = vsub.f32 %v2705, %v2439
  %v2722 = vsub.f32 %v2706, %v2440
  %v2723 = vsub.f32 %v2707, %v2441
  %v2724 = vsub.f32 %v2708, %v2442
  %v2725 = vsub.f32 %v2709, %v2443
  %v2726 = vsub.f32 %v2710, %v2444
  %v2727 = vsub.f32 %v2711, %v2445
  %v2728 = vsub.f32 %v2712, %v2446
  %v2729 = vsub.f32 %v2713, %v2447
  %v2730 = vsub.f32 %v2714, %v2448
  %v2731 = vsub.f32 %v2715, %v2449
  %v2732 = vsub.f32 %v2716, %v2450
  %v2733 = vsub.f32 %v2717, %v2451
  %v2734 = vsub.f32 %v2718, %v2452
  %v2735 = vsub.f32 %v2719, %v2453
  %v2736 = vmul.f32 %v2720, 0.6
  %v2737 = vmul.f32 %v2721, 0.6
  %v2738 = vmul.f32 %v2722, 0.6
  %v2739 = vmul.f32 %v2723, 0.6
  %v2740 = vmul.f32 %v2724, 0.6
  %v2741 = vmul.f32 %v2725, 0.6
  %v2742 = vmul.f32 %v2726, 0.6
  %v2743 = vmul.f32 %v2727, 0.6
  %v2744 = vmul.f32 %v2728, 0.6
  %v2745 = vmul.f32 %v2729, 0.6
  %v2746 = vmul.f32 %v2730, 0.6
  %v2747 = vmul.f32 %v2731, 0.6
  %v2748 = vmul.f32 %v2732, 0.6
  %v2749 = vmul.f32 %v2733, 0.6
  %v2750 = vmul.f32 %v2734, 0.6
  %v2751 = vmul.f32 %v2735, 0.6
  %vm2752 = vcmp.gt.f32.partialorder %v2438, %v2736
  %vm2753 = vcmp.gt.f32.partialorder %v2439, %v2737
  %vm2754 = vcmp.gt.f32.partialorder %v2440, %v2738
  %vm2755 = vcmp.gt.f32.partialorder %v2441, %v2739
  %vm2756 = vcmp.gt.f32.partialorder %v2442, %v2740
  %vm2757 = vcmp.gt.f32.partialorder %v2443, %v2741
  %vm2758 = vcmp.gt.f32.partialorder %v2444, %v2742
  %vm2759 = vcmp.gt.f32.partialorder %v2445, %v2743
  %vm2760 = vcmp.gt.f32.partialorder %v2446, %v2744
  %vm2761 = vcmp.gt.f32.partialorder %v2447, %v2745
  %vm2762 = vcmp.gt.f32.partialorder %v2448, %v2746
  %vm2763 = vcmp.gt.f32.partialorder %v2449, %v2747
  %vm2764 = vcmp.gt.f32.partialorder %v2450, %v2748
  %vm2765 = vcmp.gt.f32.partialorder %v2451, %v2749
  %vm2766 = vcmp.gt.f32.partialorder %v2452, %v2750
  %vm2767 = vcmp.gt.f32.partialorder %v2453, %v2751
  %vm2768 = vcmp.gt.s32.totalorder %v1544, %v420
  %vm2769 = vcmp.gt.s32.totalorder %v1544, %v421
  %vm2770 = vcmp.gt.s32.totalorder %v1544, %v422
  %vm2771 = vcmp.gt.s32.totalorder %v1544, %v423
  %vm2772 = vcmp.gt.s32.totalorder %v1544, %v1271
  %vm2773 = vcmp.gt.s32.totalorder %v1544, %v1272
  %vm2774 = vcmp.gt.s32.totalorder %v1544, %v1273
  %vm2775 = vcmp.gt.s32.totalorder %v1544, %v1274
  %vm2776 = vcmp.gt.s32.totalorder %v1544, %v1275
  %vm2777 = vcmp.gt.s32.totalorder %v1544, %v1276
  %vm2778 = vcmp.gt.s32.totalorder %v1544, %v1277
  %vm2779 = vcmp.gt.s32.totalorder %v1544, %v1278
  %vm2780 = vcmp.gt.s32.totalorder %v1544, %v1279
  %vm2781 = vcmp.gt.s32.totalorder %v1544, %v1280
  %vm2782 = vcmp.gt.s32.totalorder %v1544, %v1281
  %vm2783 = vcmp.gt.s32.totalorder %v1544, %v1282
  %vm2784 = vmand %vm2752, %vm2768
  %vm2785 = vmand %vm2753, %vm2769
  %vm2786 = vmand %vm2754, %vm2770
  %vm2787 = vmand %vm2755, %vm2771
  %vm2788 = vmand %vm2756, %vm2772
  %vm2789 = vmand %vm2757, %vm2773
  %vm2790 = vmand %vm2758, %vm2774
  %vm2791 = vmand %vm2759, %vm2775
  %vm2792 = vmand %vm2760, %vm2776
  %vm2793 = vmand %vm2761, %vm2777
  %vm2794 = vmand %vm2762, %vm2778
  %vm2795 = vmand %vm2763, %vm2779
  %vm2796 = vmand %vm2764, %vm2780
  %vm2797 = vmand %vm2765, %vm2781
  %vm2798 = vmand %vm2766, %vm2782
  %vm2799 = vmand %vm2767, %vm2783
  %v2800 = vsel %vm2784, 1, 0
  %v2801 = vsel %vm2785, 1, 0
  %v2802 = vsel %vm2786, 1, 0
  %v2803 = vsel %vm2787, 1, 0
  %v2804 = vsel %vm2788, 1, 0
  %v2805 = vsel %vm2789, 1, 0
  %v2806 = vsel %vm2790, 1, 0
  %v2807 = vsel %vm2791, 1, 0
  %v2808 = vsel %vm2792, 1, 0
  %v2809 = vsel %vm2793, 1, 0
  %v2810 = vsel %vm2794, 1, 0
  %v2811 = vsel %vm2795, 1, 0
  %v2812 = vsel %vm2796, 1, 0
  %v2813 = vsel %vm2797, 1, 0
  %v2814 = vsel %vm2798, 1, 0
  %v2815 = vsel %vm2799, 1, 0
  %v2816 = vcvt.s32.f32 %v2800
  %v2817 = vcvt.s32.f32 %v2801
  %v2818 = vcvt.s32.f32 %v2802
  %v2819 = vcvt.s32.f32 %v2803
  %v2820 = vcvt.s32.f32 %v2804
  %v2821 = vcvt.s32.f32 %v2805
  %v2822 = vcvt.s32.f32 %v2806
  %v2823 = vcvt.s32.f32 %v2807
  %v2824 = vcvt.s32.f32 %v2808
  %v2825 = vcvt.s32.f32 %v2809
  %v2826 = vcvt.s32.f32 %v2810
  %v2827 = vcvt.s32.f32 %v2811
  %v2828 = vcvt.s32.f32 %v2812
  %v2829 = vcvt.s32.f32 %v2813
  %v2830 = vcvt.s32.f32 %v2814
  %v2831 = vcvt.s32.f32 %v2815
  %2832 = vst [vmem:[#allocation2] sm:$0xff] %v2816
  %2833 = vst [vmem:[#allocation2 + $0x8] sm:$0xff] %v2817
  %2834 = vst [vmem:[#allocation2 + $0x10] sm:$0xff] %v2818
  %2835 = vst [vmem:[#allocation2 + $0x18] sm:$0xff] %v2819
  %2836 = vst [vmem:[#allocation2 + $0x20] sm:$0xff] %v2820
  %2837 = vst [vmem:[#allocation2 + $0x28] sm:$0xff] %v2821
  %2838 = vst [vmem:[#allocation2 + $0x30] sm:$0xff] %v2822
  %2839 = vst [vmem:[#allocation2 + $0x38] sm:$0xff] %v2823
  %2840 = vst [vmem:[#allocation2 + $0x40] sm:$0xff] %v2824
  %2841 = vst [vmem:[#allocation2 + $0x48] sm:$0xff] %v2825
  %2842 = vst [vmem:[#allocation2 + $0x50] sm:$0xff] %v2826
  %2843 = vst [vmem:[#allocation2 + $0x58] sm:$0xff] %v2827
  %2844 = vst [vmem:[#allocation2 + $0x60] sm:$0xff] %v2828
  %2845 = vst [vmem:[#allocation2 + $0x68] sm:$0xff] %v2829
  %2846 = vst [vmem:[#allocation2 + $0x70] sm:$0xff] %v2830
  %2847 = vst [vmem:[#allocation2 + $0x78] sm:$0xff] %v2831
  %vm2848 = vcmp.gt.f32.partialorder %v1920, 0.0
  %v2849 = vsel %vm2848, 1, 0
  %v2850 = vcvt.s32.f32 %v2849
  loop: start=0, step=1, limit=128
  $region30: #{scripted_predictor_forward.1} parent=0 // loop_pre_header
    _
  $region31: #{scripted_predictor_forward.1} parent=0 // loop_header
    %s2852 = sphi 0, %s2856
    %p2853 = scmp.ge.s32.totalorder %s2852, 128
    %v2857 = vphi %v2850, %v2875
  $region32: #{scripted_predictor_forward.1} parent=0 // loop_header_branch
    %2855 = sbr.rel (%p2853) target = $region36
  $region33: #{scripted_predictor_forward.1} parent=0 // loop_body
    %s2858 = scalar_lea.vmem [#allocation2], %s2852
    %v2859 = vld [vmem:[%s2858] sm:$0x1]
    %v2860 = vstv %s2852
    %vm2861 = vcmp.eq.s32.totalorder %v1544, %v2860
    %v2862 = vsel %vm2861, %v2857, 0.0
    %vm2863 = vcmask 1044484
    %v2864 = vsel %vm2863, %v2862, 0.0
    %2865 = vadd.xlane.f32.xlu0 %v2864
    %v2866 = vpop.xlane.xlu0 %2865
    %v2868 = vrot.slane %v2866, 4
    %v2870 = vmul.f32 %v2859, %v2868
    %v2871 = vsub.f32 1.0, %v2870
    %v2873 = vrot.slane %v2871, 4
    %v2875 = vmul.f32 %v2857, %v2873
  $region34: #{scripted_predictor_forward.1} parent=0 // loop_footer
    %s2856 = sadd.s32 1, %s2852
  $region35: #{scripted_predictor_forward.1} parent=0 // loop_footer_branch
    %2851 = sbr.rel target = $region31
  $region36: #{scripted_predictor_forward.1} parent=0 // loop_exit
    _
  %vm2876 = vcmp.eq.s32.totalorder %v420, %v1544
  %vm2877 = vcmp.eq.s32.totalorder %v421, %v1544
  %vm2878 = vcmp.eq.s32.totalorder %v422, %v1544
  %vm2879 = vcmp.eq.s32.totalorder %v423, %v1544
  %vm2880 = vcmp.eq.s32.totalorder %v1271, %v1544
  %vm2881 = vcmp.eq.s32.totalorder %v1272, %v1544
  %vm2882 = vcmp.eq.s32.totalorder %v1273, %v1544
  %vm2883 = vcmp.eq.s32.totalorder %v1274, %v1544
  %vm2884 = vcmp.eq.s32.totalorder %v1275, %v1544
  %vm2885 = vcmp.eq.s32.totalorder %v1276, %v1544
  %vm2886 = vcmp.eq.s32.totalorder %v1277, %v1544
  %vm2887 = vcmp.eq.s32.totalorder %v1278, %v1544
  %vm2888 = vcmp.eq.s32.totalorder %v1279, %v1544
  %vm2889 = vcmp.eq.s32.totalorder %v1280, %v1544
  %vm2890 = vcmp.eq.s32.totalorder %v1281, %v1544
  %vm2891 = vcmp.eq.s32.totalorder %v1282, %v1544
  %v2892 = vperm.slane %v2857, 4
  %v2893 = vsel %vm2876, %v2892, 0.0
  %v2894 = vsel %vm2877, %v2892, 0.0
  %v2895 = vsel %vm2878, %v2892, 0.0
  %v2896 = vsel %vm2879, %v2892, 0.0
  %v2897 = vsel %vm2880, %v2892, 0.0
  %v2898 = vsel %vm2881, %v2892, 0.0
  %v2899 = vsel %vm2882, %v2892, 0.0
  %v2900 = vsel %vm2883, %v2892, 0.0
  %v2901 = vsel %vm2884, %v2892, 0.0
  %v2902 = vsel %vm2885, %v2892, 0.0
  %v2903 = vsel %vm2886, %v2892, 0.0
  %v2904 = vsel %vm2887, %v2892, 0.0
  %v2905 = vsel %vm2888, %v2892, 0.0
  %v2906 = vsel %vm2889, %v2892, 0.0
  %v2907 = vsel %vm2890, %v2892, 0.0
  %v2908 = vsel %vm2891, %v2892, 0.0
  %2909 = vadd.xlane.f32.xlu0 %v2893
  %v2910 = vpop.xlane.xlu0 %2909
  %2911 = vadd.xlane.f32.xlu0 %v2894
  %v2912 = vpop.xlane.xlu0 %2911
  %2913 = vadd.xlane.f32.xlu0 %v2895
  %v2914 = vpop.xlane.xlu0 %2913
  %2915 = vadd.xlane.f32.xlu0 %v2896
  %v2916 = vpop.xlane.xlu0 %2915
  %2917 = vadd.xlane.f32.xlu0 %v2897
  %v2918 = vpop.xlane.xlu0 %2917
  %2919 = vadd.xlane.f32.xlu0 %v2898
  %v2920 = vpop.xlane.xlu0 %2919
  %2921 = vadd.xlane.f32.xlu0 %v2899
  %v2922 = vpop.xlane.xlu0 %2921
  %2923 = vadd.xlane.f32.xlu0 %v2900
  %v2924 = vpop.xlane.xlu0 %2923
  %2925 = vadd.xlane.f32.xlu0 %v2901
  %v2926 = vpop.xlane.xlu0 %2925
  %2927 = vadd.xlane.f32.xlu0 %v2902
  %v2928 = vpop.xlane.xlu0 %2927
  %2929 = vadd.xlane.f32.xlu0 %v2903
  %v2930 = vpop.xlane.xlu0 %2929
  %2931 = vadd.xlane.f32.xlu0 %v2904
  %v2932 = vpop.xlane.xlu0 %2931
  %2933 = vadd.xlane.f32.xlu0 %v2905
  %v2934 = vpop.xlane.xlu0 %2933
  %2935 = vadd.xlane.f32.xlu0 %v2906
  %v2936 = vpop.xlane.xlu0 %2935
  %2937 = vadd.xlane.f32.xlu0 %v2907
  %v2938 = vpop.xlane.xlu0 %2937
  %2939 = vadd.xlane.f32.xlu0 %v2908
  %v2940 = vpop.xlane.xlu0 %2939
  %v2941 = vmul.f32 %v1857, %v2910
  %v2942 = vmul.f32 %v1860, %v2912
  %v2943 = vmul.f32 %v1863, %v2914
  %v2944 = vmul.f32 %v1866, %v2916
  %v2945 = vmul.f32 %v1869, %v2918
  %v2946 = vmul.f32 %v1872, %v2920
  %v2947 = vmul.f32 %v1875, %v2922
  %v2948 = vmul.f32 %v1878, %v2924
  %v2949 = vmul.f32 %v1881, %v2926
  %v2950 = vmul.f32 %v1884, %v2928
  %v2951 = vmul.f32 %v1887, %v2930
  %v2952 = vmul.f32 %v1890, %v2932
  %v2953 = vmul.f32 %v1893, %v2934
  %v2954 = vmul.f32 %v1896, %v2936
  %v2955 = vmul.f32 %v1899, %v2938
  %v2956 = vmul.f32 %v1902, %v2940
  %v2957 = vmul.f32 %v1920, %v2857
  %2958 = vset.pattern.permute.xlu0 6
  %2959 = vperm.xlu0 %2958, %v1857
  %v2960 = vpop.permute.xlu0 %2959
  %2962 = vset.pattern.permute.xlu0 6
  %2963 = vperm.xlu0 %2962, %v1860
  %v2964 = vpop.permute.xlu0 %2963
  %2966 = vset.pattern.permute.xlu0 6
  %2967 = vperm.xlu0 %2966, %v1863
  %v2968 = vpop.permute.xlu0 %2967
  %2970 = vset.pattern.permute.xlu0 6
  %2971 = vperm.xlu0 %2970, %v1866
  %v2972 = vpop.permute.xlu0 %2971
  %2974 = vset.pattern.permute.xlu0 6
  %2975 = vperm.xlu0 %2974, %v1869
  %v2976 = vpop.permute.xlu0 %2975
  %2978 = vset.pattern.permute.xlu0 6
  %2979 = vperm.xlu0 %2978, %v1872
  %v2980 = vpop.permute.xlu0 %2979
  %2982 = vset.pattern.permute.xlu0 6
  %2983 = vperm.xlu0 %2982, %v1875
  %v2984 = vpop.permute.xlu0 %2983
  %2986 = vset.pattern.permute.xlu0 6
  %2987 = vperm.xlu0 %2986, %v1878
  %v2988 = vpop.permute.xlu0 %2987
  %2990 = vset.pattern.permute.xlu0 6
  %2991 = vperm.xlu0 %2990, %v1881
  %v2992 = vpop.permute.xlu0 %2991
  %2994 = vset.pattern.permute.xlu0 6
  %2995 = vperm.xlu0 %2994, %v1884
  %v2996 = vpop.permute.xlu0 %2995
  %2998 = vset.pattern.permute.xlu0 6
  %2999 = vperm.xlu0 %2998, %v1887
  %v3000 = vpop.permute.xlu0 %2999
  %3002 = vset.pattern.permute.xlu0 6
  %3003 = vperm.xlu0 %3002, %v1890
  %v3004 = vpop.permute.xlu0 %3003
  %3006 = vset.pattern.permute.xlu0 6
  %3007 = vperm.xlu0 %3006, %v1893
  %v3008 = vpop.permute.xlu0 %3007
  %3010 = vset.pattern.permute.xlu0 6
  %3011 = vperm.xlu0 %3010, %v1896
  %v3012 = vpop.permute.xlu0 %3011
  %3014 = vset.pattern.permute.xlu0 6
  %3015 = vperm.xlu0 %3014, %v1899
  %v3016 = vpop.permute.xlu0 %3015
  %3018 = vset.pattern.permute.xlu0 6
  %3019 = vperm.xlu0 %3018, %v1902
  %v3020 = vpop.permute.xlu0 %3019
  %v3022 = vperm.slane %v1920, 6
  %v3023 = vsub.f32 %v2960, %v3022
  %v3024 = vsub.f32 %v2964, %v3022
  %v3025 = vsub.f32 %v2968, %v3022
  %v3026 = vsub.f32 %v2972, %v3022
  %v3027 = vsub.f32 %v2976, %v3022
  %v3028 = vsub.f32 %v2980, %v3022
  %v3029 = vsub.f32 %v2984, %v3022
  %v3030 = vsub.f32 %v2988, %v3022
  %v3031 = vsub.f32 %v2992, %v3022
  %v3032 = vsub.f32 %v2996, %v3022
  %v3033 = vsub.f32 %v3000, %v3022
  %v3034 = vsub.f32 %v3004, %v3022
  %v3035 = vsub.f32 %v3008, %v3022
  %v3036 = vsub.f32 %v3012, %v3022
  %v3037 = vsub.f32 %v3016, %v3022
  %v3038 = vsub.f32 %v3020, %v3022
  %v3039 = vand.u32 2147483647, %v3023
  %v3040 = vand.u32 2147483647, %v3024
  %v3041 = vand.u32 2147483647, %v3025
  %v3042 = vand.u32 2147483647, %v3026
  %v3043 = vand.u32 2147483647, %v3027
  %v3044 = vand.u32 2147483647, %v3028
  %v3045 = vand.u32 2147483647, %v3029
  %v3046 = vand.u32 2147483647, %v3030
  %v3047 = vand.u32 2147483647, %v3031
  %v3048 = vand.u32 2147483647, %v3032
  %v3049 = vand.u32 2147483647, %v3033
  %v3050 = vand.u32 2147483647, %v3034
  %v3051 = vand.u32 2147483647, %v3035
  %v3052 = vand.u32 2147483647, %v3036
  %v3053 = vand.u32 2147483647, %v3037
  %v3054 = vand.u32 2147483647, %v3038
  %vm3055 = vcmp.lt.f32.partialorder %v3039, 0.5
  %vm3056 = vcmp.lt.f32.partialorder %v3040, 0.5
  %vm3057 = vcmp.lt.f32.partialorder %v3041, 0.5
  %vm3058 = vcmp.lt.f32.partialorder %v3042, 0.5
  %vm3059 = vcmp.lt.f32.partialorder %v3043, 0.5
  %vm3060 = vcmp.lt.f32.partialorder %v3044, 0.5
  %vm3061 = vcmp.lt.f32.partialorder %v3045, 0.5
  %vm3062 = vcmp.lt.f32.partialorder %v3046, 0.5
  %vm3063 = vcmp.lt.f32.partialorder %v3047, 0.5
  %vm3064 = vcmp.lt.f32.partialorder %v3048, 0.5
  %vm3065 = vcmp.lt.f32.partialorder %v3049, 0.5
  %vm3066 = vcmp.lt.f32.partialorder %v3050, 0.5
  %vm3067 = vcmp.lt.f32.partialorder %v3051, 0.5
  %vm3068 = vcmp.lt.f32.partialorder %v3052, 0.5
  %vm3069 = vcmp.lt.f32.partialorder %v3053, 0.5
  %vm3070 = vcmp.lt.f32.partialorder %v3054, 0.5
  %3072 = vset.pattern.permute.xlu0 4
  %3073 = vperm.xlu0 %3072, %v2941
  %v3074 = vpop.permute.xlu0 %3073
  %3077 = vset.pattern.permute.xlu0 4
  %3078 = vperm.xlu0 %3077, %v2942
  %v3079 = vpop.permute.xlu0 %3078
  %3082 = vset.pattern.permute.xlu0 4
  %3083 = vperm.xlu0 %3082, %v2943
  %v3084 = vpop.permute.xlu0 %3083
  %3087 = vset.pattern.permute.xlu0 4
  %3088 = vperm.xlu0 %3087, %v2944
  %v3089 = vpop.permute.xlu0 %3088
  %3092 = vset.pattern.permute.xlu0 4
  %3093 = vperm.xlu0 %3092, %v2945
  %v3094 = vpop.permute.xlu0 %3093
  %3097 = vset.pattern.permute.xlu0 4
  %3098 = vperm.xlu0 %3097, %v2946
  %v3099 = vpop.permute.xlu0 %3098
  %3102 = vset.pattern.permute.xlu0 4
  %3103 = vperm.xlu0 %3102, %v2947
  %v3104 = vpop.permute.xlu0 %3103
  %3107 = vset.pattern.permute.xlu0 4
  %3108 = vperm.xlu0 %3107, %v2948
  %v3109 = vpop.permute.xlu0 %3108
  %3112 = vset.pattern.permute.xlu0 4
  %3113 = vperm.xlu0 %3112, %v2949
  %v3114 = vpop.permute.xlu0 %3113
  %3117 = vset.pattern.permute.xlu0 4
  %3118 = vperm.xlu0 %3117, %v2950
  %v3119 = vpop.permute.xlu0 %3118
  %3122 = vset.pattern.permute.xlu0 4
  %3123 = vperm.xlu0 %3122, %v2951
  %v3124 = vpop.permute.xlu0 %3123
  %3127 = vset.pattern.permute.xlu0 4
  %3128 = vperm.xlu0 %3127, %v2952
  %v3129 = vpop.permute.xlu0 %3128
  %3132 = vset.pattern.permute.xlu0 4
  %3133 = vperm.xlu0 %3132, %v2953
  %v3134 = vpop.permute.xlu0 %3133
  %3137 = vset.pattern.permute.xlu0 4
  %3138 = vperm.xlu0 %3137, %v2954
  %v3139 = vpop.permute.xlu0 %3138
  %3142 = vset.pattern.permute.xlu0 4
  %3143 = vperm.xlu0 %3142, %v2955
  %v3144 = vpop.permute.xlu0 %3143
  %3147 = vset.pattern.permute.xlu0 4
  %3148 = vperm.xlu0 %3147, %v2956
  %v3149 = vpop.permute.xlu0 %3148
  %v3151 = vperm.slane %v2957, 4
  %vm3152 = vcmp.gt.f32.partialorder %v3074, %v3151
  %vm3153 = vcmp.gt.f32.partialorder %v3079, %v3151
  %vm3154 = vcmp.gt.f32.partialorder %v3084, %v3151
  %vm3155 = vcmp.gt.f32.partialorder %v3089, %v3151
  %vm3156 = vcmp.gt.f32.partialorder %v3094, %v3151
  %vm3157 = vcmp.gt.f32.partialorder %v3099, %v3151
  %vm3158 = vcmp.gt.f32.partialorder %v3104, %v3151
  %vm3159 = vcmp.gt.f32.partialorder %v3109, %v3151
  %vm3160 = vcmp.gt.f32.partialorder %v3114, %v3151
  %vm3161 = vcmp.gt.f32.partialorder %v3119, %v3151
  %vm3162 = vcmp.gt.f32.partialorder %v3124, %v3151
  %vm3163 = vcmp.gt.f32.partialorder %v3129, %v3151
  %vm3164 = vcmp.gt.f32.partialorder %v3134, %v3151
  %vm3165 = vcmp.gt.f32.partialorder %v3139, %v3151
  %vm3166 = vcmp.gt.f32.partialorder %v3144, %v3151
  %vm3167 = vcmp.gt.f32.partialorder %v3149, %v3151
  %vm3168 = vcmp.eq.f32.partialorder %v3074, %v3151
  %vm3169 = vcmp.eq.f32.partialorder %v3079, %v3151
  %vm3170 = vcmp.eq.f32.partialorder %v3084, %v3151
  %vm3171 = vcmp.eq.f32.partialorder %v3089, %v3151
  %vm3172 = vcmp.eq.f32.partialorder %v3094, %v3151
  %vm3173 = vcmp.eq.f32.partialorder %v3099, %v3151
  %vm3174 = vcmp.eq.f32.partialorder %v3104, %v3151
  %vm3175 = vcmp.eq.f32.partialorder %v3109, %v3151
  %vm3176 = vcmp.eq.f32.partialorder %v3114, %v3151
  %vm3177 = vcmp.eq.f32.partialorder %v3119, %v3151
  %vm3178 = vcmp.eq.f32.partialorder %v3124, %v3151
  %vm3179 = vcmp.eq.f32.partialorder %v3129, %v3151
  %vm3180 = vcmp.eq.f32.partialorder %v3134, %v3151
  %vm3181 = vcmp.eq.f32.partialorder %v3139, %v3151
  %vm3182 = vcmp.eq.f32.partialorder %v3144, %v3151
  %vm3183 = vcmp.eq.f32.partialorder %v3149, %v3151
  %vm3184 = vmand %vm3168, %vm1674
  %vm3185 = vmand %vm3169, %vm1675
  %vm3186 = vmand %vm3170, %vm1676
  %vm3187 = vmand %vm3171, %vm1677
  %vm3188 = vmand %vm3172, %vm1678
  %vm3189 = vmand %vm3173, %vm1679
  %vm3190 = vmand %vm3174, %vm1680
  %vm3191 = vmand %vm3175, %vm1681
  %vm3192 = vmand %vm3176, %vm1682
  %vm3193 = vmand %vm3177, %vm1683
  %vm3194 = vmand %vm3178, %vm1684
  %vm3195 = vmand %vm3179, %vm1685
  %vm3196 = vmand %vm3180, %vm1686
  %vm3197 = vmand %vm3181, %vm1687
  %vm3198 = vmand %vm3182, %vm1688
  %vm3199 = vmand %vm3183, %vm1689
  %vm3200 = vmor %vm3152, %vm3184
  %vm3201 = vmor %vm3153, %vm3185
  %vm3202 = vmor %vm3154, %vm3186
  %vm3203 = vmor %vm3155, %vm3187
  %vm3204 = vmor %vm3156, %vm3188
  %vm3205 = vmor %vm3157, %vm3189
  %vm3206 = vmor %vm3158, %vm3190
  %vm3207 = vmor %vm3159, %vm3191
  %vm3208 = vmor %vm3160, %vm3192
  %vm3209 = vmor %vm3161, %vm3193
  %vm3210 = vmor %vm3162, %vm3194
  %vm3211 = vmor %vm3163, %vm3195
  %vm3212 = vmor %vm3164, %vm3196
  %vm3213 = vmor %vm3165, %vm3197
  %vm3214 = vmor %vm3166, %vm3198
  %vm3215 = vmor %vm3167, %vm3199
  %vm3216 = vmand %vm3055, %vm3200
  %vm3217 = vmand %vm3056, %vm3201
  %vm3218 = vmand %vm3057, %vm3202
  %vm3219 = vmand %vm3058, %vm3203
  %vm3220 = vmand %vm3059, %vm3204
  %vm3221 = vmand %vm3060, %vm3205
  %vm3222 = vmand %vm3061, %vm3206
  %vm3223 = vmand %vm3062, %vm3207
  %vm3224 = vmand %vm3063, %vm3208
  %vm3225 = vmand %vm3064, %vm3209
  %vm3226 = vmand %vm3065, %vm3210
  %vm3227 = vmand %vm3066, %vm3211
  %vm3228 = vmand %vm3067, %vm3212
  %vm3229 = vmand %vm3068, %vm3213
  %vm3230 = vmand %vm3069, %vm3214
  %vm3231 = vmand %vm3070, %vm3215
  %v3232 = vsel %vm3216, 1, 0
  %v3233 = vsel %vm3217, 1, 0
  %v3234 = vsel %vm3218, 1, 0
  %v3235 = vsel %vm3219, 1, 0
  %v3236 = vsel %vm3220, 1, 0
  %v3237 = vsel %vm3221, 1, 0
  %v3238 = vsel %vm3222, 1, 0
  %v3239 = vsel %vm3223, 1, 0
  %v3240 = vsel %vm3224, 1, 0
  %v3241 = vsel %vm3225, 1, 0
  %v3242 = vsel %vm3226, 1, 0
  %v3243 = vsel %vm3227, 1, 0
  %v3244 = vsel %vm3228, 1, 0
  %v3245 = vsel %vm3229, 1, 0
  %v3246 = vsel %vm3230, 1, 0
  %v3247 = vsel %vm3231, 1, 0
  %v3248 = vcvt.s32.f32 %v3232
  %v3249 = vcvt.s32.f32 %v3233
  %v3250 = vcvt.s32.f32 %v3234
  %v3251 = vcvt.s32.f32 %v3235
  %v3252 = vcvt.s32.f32 %v3236
  %v3253 = vcvt.s32.f32 %v3237
  %v3254 = vcvt.s32.f32 %v3238
  %v3255 = vcvt.s32.f32 %v3239
  %v3256 = vcvt.s32.f32 %v3240
  %v3257 = vcvt.s32.f32 %v3241
  %v3258 = vcvt.s32.f32 %v3242
  %v3259 = vcvt.s32.f32 %v3243
  %v3260 = vcvt.s32.f32 %v3244
  %v3261 = vcvt.s32.f32 %v3245
  %v3262 = vcvt.s32.f32 %v3246
  %v3263 = vcvt.s32.f32 %v3247
  %v3264 = vadd.f32 %v3248, %v3249
  %v3265 = vadd.f32 %v3264, %v3250
  %v3266 = vadd.f32 %v3265, %v3251
  %v3267 = vadd.f32 %v3266, %v3252
  %v3268 = vadd.f32 %v3267, %v3253
  %v3269 = vadd.f32 %v3268, %v3254
  %v3270 = vadd.f32 %v3269, %v3255
  %v3271 = vadd.f32 %v3270, %v3256
  %v3272 = vadd.f32 %v3271, %v3257
  %v3273 = vadd.f32 %v3272, %v3258
  %v3274 = vadd.f32 %v3273, %v3259
  %v3275 = vadd.f32 %v3274, %v3260
  %v3276 = vadd.f32 %v3275, %v3261
  %v3277 = vadd.f32 %v3276, %v3262
  %v3278 = vadd.f32 %v3277, %v3263
  %v3279 = vrot.slane %v3278, 4
  %v3280 = vadd.f32 %v3278, %v3279
  %v3281 = vrot.slane %v3280, 2
  %v3282 = vadd.f32 %v3280, %v3281
  %v3283 = vrot.slane %v3282, 1
  %v3284 = vadd.f32 %v3282, %v3283
  %v3285 = vadd.f32 %v1920, 0.5
  %v3286 = vfloor.f32 %v3285
  %v3287 = vmul.f32 %v3286, 128.0
  %v3288 = vadd.f32 %v3287, %v3284
  %v3289 = vadd.s32 %v420, 128
  %v3290 = vadd.s32 %v420, 136
  %v3291 = vadd.s32 %v420, 144
  %v3292 = vadd.s32 %v420, 152
  %v3293 = vadd.s32 %v420, 160
  %v3294 = vadd.s32 %v420, 168
  %v3295 = vadd.s32 %v420, 176
  %v3296 = vadd.s32 %v420, 184
  %v3297 = vadd.s32 %v420, 192
  %v3298 = vadd.s32 %v420, 200
  %v3299 = vadd.s32 %v420, 208
  %v3300 = vadd.s32 %v420, 216
  %v3301 = vadd.s32 %v420, 224
  %v3302 = vadd.s32 %v420, 232
  %v3303 = vadd.s32 %v420, 240
  %v3304 = vadd.s32 %v420, 248
  %v3305 = vcvt.s32.f32 %v3289
  %v3306 = vcvt.s32.f32 %v3290
  %v3307 = vcvt.s32.f32 %v3291
  %v3308 = vcvt.s32.f32 %v3292
  %v3309 = vcvt.s32.f32 %v3293
  %v3310 = vcvt.s32.f32 %v3294
  %v3311 = vcvt.s32.f32 %v3295
  %v3312 = vcvt.s32.f32 %v3296
  %v3313 = vcvt.s32.f32 %v3297
  %v3314 = vcvt.s32.f32 %v3298
  %v3315 = vcvt.s32.f32 %v3299
  %v3316 = vcvt.s32.f32 %v3300
  %v3317 = vcvt.s32.f32 %v3301
  %v3318 = vcvt.s32.f32 %v3302
  %v3319 = vcvt.s32.f32 %v3303
  %v3320 = vcvt.s32.f32 %v3304
  %v3321 = vperm.slane %v3288, 6
  %v3322 = vsub.f32 %v1775, %v3321
  %v3323 = vsub.f32 %v1776, %v3321
  %v3324 = vsub.f32 %v1777, %v3321
  %v3325 = vsub.f32 %v1778, %v3321
  %v3326 = vsub.f32 %v1779, %v3321
  %v3327 = vsub.f32 %v1780, %v3321
  %v3328 = vsub.f32 %v1781, %v3321
  %v3329 = vsub.f32 %v1782, %v3321
  %v3330 = vsub.f32 %v1783, %v3321
  %v3331 = vsub.f32 %v1784, %v3321
  %v3332 = vsub.f32 %v1785, %v3321
  %v3333 = vsub.f32 %v1786, %v3321
  %v3334 = vsub.f32 %v1787, %v3321
  %v3335 = vsub.f32 %v1788, %v3321
  %v3336 = vsub.f32 %v1789, %v3321
  %v3337 = vsub.f32 %v1790, %v3321
  %v3338 = vsub.f32 %v3305, %v3321
  %v3339 = vsub.f32 %v3306, %v3321
  %v3340 = vsub.f32 %v3307, %v3321
  %v3341 = vsub.f32 %v3308, %v3321
  %v3342 = vsub.f32 %v3309, %v3321
  %v3343 = vsub.f32 %v3310, %v3321
  %v3344 = vsub.f32 %v3311, %v3321
  %v3345 = vsub.f32 %v3312, %v3321
  %v3346 = vsub.f32 %v3313, %v3321
  %v3347 = vsub.f32 %v3314, %v3321
  %v3348 = vsub.f32 %v3315, %v3321
  %v3349 = vsub.f32 %v3316, %v3321
  %v3350 = vsub.f32 %v3317, %v3321
  %v3351 = vsub.f32 %v3318, %v3321
  %v3352 = vsub.f32 %v3319, %v3321
  %v3353 = vsub.f32 %v3320, %v3321
  %v3354 = vand.u32 2147483647, %v3322
  %v3355 = vand.u32 2147483647, %v3323
  %v3356 = vand.u32 2147483647, %v3324
  %v3357 = vand.u32 2147483647, %v3325
  %v3358 = vand.u32 2147483647, %v3326
  %v3359 = vand.u32 2147483647, %v3327
  %v3360 = vand.u32 2147483647, %v3328
  %v3361 = vand.u32 2147483647, %v3329
  %v3362 = vand.u32 2147483647, %v3330
  %v3363 = vand.u32 2147483647, %v3331
  %v3364 = vand.u32 2147483647, %v3332
  %v3365 = vand.u32 2147483647, %v3333
  %v3366 = vand.u32 2147483647, %v3334
  %v3367 = vand.u32 2147483647, %v3335
  %v3368 = vand.u32 2147483647, %v3336
  %v3369 = vand.u32 2147483647, %v3337
  %v3370 = vand.u32 2147483647, %v3338
  %v3371 = vand.u32 2147483647, %v3339
  %v3372 = vand.u32 2147483647, %v3340
  %v3373 = vand.u32 2147483647, %v3341
  %v3374 = vand.u32 2147483647, %v3342
  %v3375 = vand.u32 2147483647, %v3343
  %v3376 = vand.u32 2147483647, %v3344
  %v3377 = vand.u32 2147483647, %v3345
  %v3378 = vand.u32 2147483647, %v3346
  %v3379 = vand.u32 2147483647, %v3347
  %v3380 = vand.u32 2147483647, %v3348
  %v3381 = vand.u32 2147483647, %v3349
  %v3382 = vand.u32 2147483647, %v3350
  %v3383 = vand.u32 2147483647, %v3351
  %v3384 = vand.u32 2147483647, %v3352
  %v3385 = vand.u32 2147483647, %v3353
  %vm3386 = vcmp.lt.f32.partialorder %v3354, 0.5
  %vm3387 = vcmp.lt.f32.partialorder %v3355, 0.5
  %vm3388 = vcmp.lt.f32.partialorder %v3356, 0.5
  %vm3389 = vcmp.lt.f32.partialorder %v3357, 0.5
  %vm3390 = vcmp.lt.f32.partialorder %v3358, 0.5
  %vm3391 = vcmp.lt.f32.partialorder %v3359, 0.5
  %vm3392 = vcmp.lt.f32.partialorder %v3360, 0.5
  %vm3393 = vcmp.lt.f32.partialorder %v3361, 0.5
  %vm3394 = vcmp.lt.f32.partialorder %v3362, 0.5
  %vm3395 = vcmp.lt.f32.partialorder %v3363, 0.5
  %vm3396 = vcmp.lt.f32.partialorder %v3364, 0.5
  %vm3397 = vcmp.lt.f32.partialorder %v3365, 0.5
  %vm3398 = vcmp.lt.f32.partialorder %v3366, 0.5
  %vm3399 = vcmp.lt.f32.partialorder %v3367, 0.5
  %vm3400 = vcmp.lt.f32.partialorder %v3368, 0.5
  %vm3401 = vcmp.lt.f32.partialorder %v3369, 0.5
  %vm3402 = vcmp.lt.f32.partialorder %v3370, 0.5
  %vm3403 = vcmp.lt.f32.partialorder %v3371, 0.5
  %vm3404 = vcmp.lt.f32.partialorder %v3372, 0.5
  %vm3405 = vcmp.lt.f32.partialorder %v3373, 0.5
  %vm3406 = vcmp.lt.f32.partialorder %v3374, 0.5
  %vm3407 = vcmp.lt.f32.partialorder %v3375, 0.5
  %vm3408 = vcmp.lt.f32.partialorder %v3376, 0.5
  %vm3409 = vcmp.lt.f32.partialorder %v3377, 0.5
  %vm3410 = vcmp.lt.f32.partialorder %v3378, 0.5
  %vm3411 = vcmp.lt.f32.partialorder %v3379, 0.5
  %vm3412 = vcmp.lt.f32.partialorder %v3380, 0.5
  %vm3413 = vcmp.lt.f32.partialorder %v3381, 0.5
  %vm3414 = vcmp.lt.f32.partialorder %v3382, 0.5
  %vm3415 = vcmp.lt.f32.partialorder %v3383, 0.5
  %vm3416 = vcmp.lt.f32.partialorder %v3384, 0.5
  %vm3417 = vcmp.lt.f32.partialorder %v3385, 0.5
  %v3418 = vsel %vm3386, 1, 0
  %v3419 = vsel %vm3387, 1, 0
  %v3420 = vsel %vm3388, 1, 0
  %v3421 = vsel %vm3389, 1, 0
  %v3422 = vsel %vm3390, 1, 0
  %v3423 = vsel %vm3391, 1, 0
  %v3424 = vsel %vm3392, 1, 0
  %v3425 = vsel %vm3393, 1, 0
  %v3426 = vsel %vm3394, 1, 0
  %v3427 = vsel %vm3395, 1, 0
  %v3428 = vsel %vm3396, 1, 0
  %v3429 = vsel %vm3397, 1, 0
  %v3430 = vsel %vm3398, 1, 0
  %v3431 = vsel %vm3399, 1, 0
  %v3432 = vsel %vm3400, 1, 0
  %v3433 = vsel %vm3401, 1, 0
  %v3434 = vsel %vm3402, 1, 0
  %v3435 = vsel %vm3403, 1, 0
  %v3436 = vsel %vm3404, 1, 0
  %v3437 = vsel %vm3405, 1, 0
  %v3438 = vsel %vm3406, 1, 0
  %v3439 = vsel %vm3407, 1, 0
  %v3440 = vsel %vm3408, 1, 0
  %v3441 = vsel %vm3409, 1, 0
  %v3442 = vsel %vm3410, 1, 0
  %v3443 = vsel %vm3411, 1, 0
  %v3444 = vsel %vm3412, 1, 0
  %v3445 = vsel %vm3413, 1, 0
  %v3446 = vsel %vm3414, 1, 0
  %v3447 = vsel %vm3415, 1, 0
  %v3448 = vsel %vm3416, 1, 0
  %v3449 = vsel %vm3417, 1, 0
  %v3450 = vcvt.s32.f32 %v3418
  %v3451 = vcvt.s32.f32 %v3419
  %v3452 = vcvt.s32.f32 %v3420
  %v3453 = vcvt.s32.f32 %v3421
  %v3454 = vcvt.s32.f32 %v3422
  %v3455 = vcvt.s32.f32 %v3423
  %v3456 = vcvt.s32.f32 %v3424
  %v3457 = vcvt.s32.f32 %v3425
  %v3458 = vcvt.s32.f32 %v3426
  %v3459 = vcvt.s32.f32 %v3427
  %v3460 = vcvt.s32.f32 %v3428
  %v3461 = vcvt.s32.f32 %v3429
  %v3462 = vcvt.s32.f32 %v3430
  %v3463 = vcvt.s32.f32 %v3431
  %v3464 = vcvt.s32.f32 %v3432
  %v3465 = vcvt.s32.f32 %v3433
  %v3466 = vcvt.s32.f32 %v3434
  %v3467 = vcvt.s32.f32 %v3435
  %v3468 = vcvt.s32.f32 %v3436
  %v3469 = vcvt.s32.f32 %v3437
  %v3470 = vcvt.s32.f32 %v3438
  %v3471 = vcvt.s32.f32 %v3439
  %v3472 = vcvt.s32.f32 %v3440
  %v3473 = vcvt.s32.f32 %v3441
  %v3474 = vcvt.s32.f32 %v3442
  %v3475 = vcvt.s32.f32 %v3443
  %v3476 = vcvt.s32.f32 %v3444
  %v3477 = vcvt.s32.f32 %v3445
  %v3478 = vcvt.s32.f32 %v3446
  %v3479 = vcvt.s32.f32 %v3447
  %v3480 = vcvt.s32.f32 %v3448
  %v3481 = vcvt.s32.f32 %v3449
  %vm3482 = vcmp.gt.f32.partialorder %v2941, 0.0
  %vm3483 = vcmp.gt.f32.partialorder %v2942, 0.0
  %vm3484 = vcmp.gt.f32.partialorder %v2943, 0.0
  %vm3485 = vcmp.gt.f32.partialorder %v2944, 0.0
  %vm3486 = vcmp.gt.f32.partialorder %v2945, 0.0
  %vm3487 = vcmp.gt.f32.partialorder %v2946, 0.0
  %vm3488 = vcmp.gt.f32.partialorder %v2947, 0.0
  %vm3489 = vcmp.gt.f32.partialorder %v2948, 0.0
  %vm3490 = vcmp.gt.f32.partialorder %v2949, 0.0
  %vm3491 = vcmp.gt.f32.partialorder %v2950, 0.0
  %vm3492 = vcmp.gt.f32.partialorder %v2951, 0.0
  %vm3493 = vcmp.gt.f32.partialorder %v2952, 0.0
  %vm3494 = vcmp.gt.f32.partialorder %v2953, 0.0
  %vm3495 = vcmp.gt.f32.partialorder %v2954, 0.0
  %vm3496 = vcmp.gt.f32.partialorder %v2955, 0.0
  %vm3497 = vcmp.gt.f32.partialorder %v2956, 0.0
  %v3498 = vadd.f32 %v1857, 1.0
  %v3499 = vadd.f32 %v1860, 1.0
  %v3500 = vadd.f32 %v1863, 1.0
  %v3501 = vadd.f32 %v1866, 1.0
  %v3502 = vadd.f32 %v1869, 1.0
  %v3503 = vadd.f32 %v1872, 1.0
  %v3504 = vadd.f32 %v1875, 1.0
  %v3505 = vadd.f32 %v1878, 1.0
  %v3506 = vadd.f32 %v1881, 1.0
  %v3507 = vadd.f32 %v1884, 1.0
  %v3508 = vadd.f32 %v1887, 1.0
  %v3509 = vadd.f32 %v1890, 1.0
  %v3510 = vadd.f32 %v1893, 1.0
  %v3511 = vadd.f32 %v1896, 1.0
  %v3512 = vadd.f32 %v1899, 1.0
  %v3513 = vadd.f32 %v1902, 1.0
  %3530 = vrot.lane.b32.xlu0 %v3498, 127
  %v3531 = vpop.permute.xlu0 %3530
  %3532 = vrot.lane.b32.xlu0 %v3499, 127
  %v3533 = vpop.permute.xlu0 %3532
  %3534 = vrot.lane.b32.xlu0 %v3500, 127
  %v3535 = vpop.permute.xlu0 %3534
  %3536 = vrot.lane.b32.xlu0 %v3501, 127
  %v3537 = vpop.permute.xlu0 %3536
  %3538 = vrot.lane.b32.xlu0 %v3502, 127
  %v3539 = vpop.permute.xlu0 %3538
  %3540 = vrot.lane.b32.xlu0 %v3503, 127
  %v3541 = vpop.permute.xlu0 %3540
  %3542 = vrot.lane.b32.xlu0 %v3504, 127
  %v3543 = vpop.permute.xlu0 %3542
  %3544 = vrot.lane.b32.xlu0 %v3505, 127
  %v3545 = vpop.permute.xlu0 %3544
  %3546 = vrot.lane.b32.xlu0 %v3506, 127
  %v3547 = vpop.permute.xlu0 %3546
  %3548 = vrot.lane.b32.xlu0 %v3507, 127
  %v3549 = vpop.permute.xlu0 %3548
  %3550 = vrot.lane.b32.xlu0 %v3508, 127
  %v3551 = vpop.permute.xlu0 %3550
  %3552 = vrot.lane.b32.xlu0 %v3509, 127
  %v3553 = vpop.permute.xlu0 %3552
  %3554 = vrot.lane.b32.xlu0 %v3510, 127
  %v3555 = vpop.permute.xlu0 %3554
  %3556 = vrot.lane.b32.xlu0 %v3511, 127
  %v3557 = vpop.permute.xlu0 %3556
  %3558 = vrot.lane.b32.xlu0 %v3512, 127
  %v3559 = vpop.permute.xlu0 %3558
  %3560 = vrot.lane.b32.xlu0 %v3513, 127
  %v3561 = vpop.permute.xlu0 %3560
  %v3578 = vsel %vm3482, %v3531, 0.0
  %v3579 = vsel %vm3483, %v3533, 0.0
  %v3580 = vsel %vm3484, %v3535, 0.0
  %v3581 = vsel %vm3485, %v3537, 0.0
  %v3582 = vsel %vm3486, %v3539, 0.0
  %v3583 = vsel %vm3487, %v3541, 0.0
  %v3584 = vsel %vm3488, %v3543, 0.0
  %v3585 = vsel %vm3489, %v3545, 0.0
  %v3586 = vsel %vm3490, %v3547, 0.0
  %v3587 = vsel %vm3491, %v3549, 0.0
  %v3588 = vsel %vm3492, %v3551, 0.0
  %v3589 = vsel %vm3493, %v3553, 0.0
  %v3590 = vsel %vm3494, %v3555, 0.0
  %v3591 = vsel %vm3495, %v3557, 0.0
  %v3592 = vsel %vm3496, %v3559, 0.0
  %v3593 = vsel %vm3497, %v3561, 0.0
  %3610 = vrot.lane.b32.xlu0 %v3578, 1
  %v3611 = vpop.permute.xlu0 %3610
  %3612 = vrot.lane.b32.xlu0 %v3579, 1
  %v3613 = vpop.permute.xlu0 %3612
  %3614 = vrot.lane.b32.xlu0 %v3580, 1
  %v3615 = vpop.permute.xlu0 %3614
  %3616 = vrot.lane.b32.xlu0 %v3581, 1
  %v3617 = vpop.permute.xlu0 %3616
  %3618 = vrot.lane.b32.xlu0 %v3582, 1
  %v3619 = vpop.permute.xlu0 %3618
  %3620 = vrot.lane.b32.xlu0 %v3583, 1
  %v3621 = vpop.permute.xlu0 %3620
  %3622 = vrot.lane.b32.xlu0 %v3584, 1
  %v3623 = vpop.permute.xlu0 %3622
  %3624 = vrot.lane.b32.xlu0 %v3585, 1
  %v3625 = vpop.permute.xlu0 %3624
  %3626 = vrot.lane.b32.xlu0 %v3586, 1
  %v3627 = vpop.permute.xlu0 %3626
  %3628 = vrot.lane.b32.xlu0 %v3587, 1
  %v3629 = vpop.permute.xlu0 %3628
  %3630 = vrot.lane.b32.xlu0 %v3588, 1
  %v3631 = vpop.permute.xlu0 %3630
  %3632 = vrot.lane.b32.xlu0 %v3589, 1
  %v3633 = vpop.permute.xlu0 %3632
  %3634 = vrot.lane.b32.xlu0 %v3590, 1
  %v3635 = vpop.permute.xlu0 %3634
  %3636 = vrot.lane.b32.xlu0 %v3591, 1
  %v3637 = vpop.permute.xlu0 %3636
  %3638 = vrot.lane.b32.xlu0 %v3592, 1
  %v3639 = vpop.permute.xlu0 %3638
  %3640 = vrot.lane.b32.xlu0 %v3593, 1
  %v3641 = vpop.permute.xlu0 %3640
  %v3658 = vsel %vm1475, %v1857, %v2941
  %v3659 = vsel %vm1475, %v1860, %v2942
  %v3660 = vsel %vm1475, %v1863, %v2943
  %v3661 = vsel %vm1475, %v1866, %v2944
  %v3662 = vsel %vm1475, %v1869, %v2945
  %v3663 = vsel %vm1475, %v1872, %v2946
  %v3664 = vsel %vm1475, %v1875, %v2947
  %v3665 = vsel %vm1475, %v1878, %v2948
  %v3666 = vsel %vm1475, %v1881, %v2949
  %v3667 = vsel %vm1475, %v1884, %v2950
  %v3668 = vsel %vm1475, %v1887, %v2951
  %v3669 = vsel %vm1475, %v1890, %v2952
  %v3670 = vsel %vm1475, %v1893, %v2953
  %v3671 = vsel %vm1475, %v1896, %v2954
  %v3672 = vsel %vm1475, %v1899, %v2955
  %v3673 = vsel %vm1475, %v1902, %v2956
  %v3674 = vsel %vm1492, %v3658, %v3611
  %v3675 = vsel %vm1492, %v3659, %v3613
  %v3676 = vsel %vm1492, %v3660, %v3615
  %v3677 = vsel %vm1492, %v3661, %v3617
  %v3678 = vsel %vm1492, %v3662, %v3619
  %v3679 = vsel %vm1492, %v3663, %v3621
  %v3680 = vsel %vm1492, %v3664, %v3623
  %v3681 = vsel %vm1492, %v3665, %v3625
  %v3682 = vsel %vm1492, %v3666, %v3627
  %v3683 = vsel %vm1492, %v3667, %v3629
  %v3684 = vsel %vm1492, %v3668, %v3631
  %v3685 = vsel %vm1492, %v3669, %v3633
  %v3686 = vsel %vm1492, %v3670, %v3635
  %v3687 = vsel %vm1492, %v3671, %v3637
  %v3688 = vsel %vm1492, %v3672, %v3639
  %v3689 = vsel %vm1492, %v3673, %v3641
  %v3690 = vsel %vm1509, %v3674, 0.0
  %v3691 = vsel %vm1509, %v3675, 0.0
  %v3692 = vsel %vm1509, %v3676, 0.0
  %v3693 = vsel %vm1509, %v3677, 0.0
  %v3694 = vsel %vm1509, %v3678, 0.0
  %v3695 = vsel %vm1509, %v3679, 0.0
  %v3696 = vsel %vm1509, %v3680, 0.0
  %v3697 = vsel %vm1509, %v3681, 0.0
  %v3698 = vsel %vm1509, %v3682, 0.0
  %v3699 = vsel %vm1509, %v3683, 0.0
  %v3700 = vsel %vm1509, %v3684, 0.0
  %v3701 = vsel %vm1509, %v3685, 0.0
  %v3702 = vsel %vm1509, %v3686, 0.0
  %v3703 = vsel %vm1509, %v3687, 0.0
  %v3704 = vsel %vm1509, %v3688, 0.0
  %v3705 = vsel %vm1509, %v3689, 0.0
  %3706 = vmatpush.msra.mxu0 %v3705
  %3707 = vmatpush.msra.mxu0 %v3704
  %3708 = vmatpush.msra.mxu0 %v3703
  %3709 = vmatpush.msra.mxu0 %v3702
  %3710 = vmatpush.msra.mxu0 %v3701
  %3711 = vmatpush.msra.mxu0 %v3700
  %3712 = vmatpush.msra.mxu0 %v3699
  %3713 = vmatpush.msra.mxu0 %v3698
  %3714 = vmatpush.msra.mxu0 %v3697
  %3715 = vmatpush.msra.mxu0 %v3696
  %3716 = vmatpush.msra.mxu0 %v3695
  %3717 = vmatpush.msra.mxu0 %v3694
  %3718 = vmatpush.msra.mxu0 %v3693
  %3719 = vmatpush.msra.mxu0 %v3692
  %3720 = vmatpush.msra.mxu0 %v3691
  %3721 = vmatpush.msra.mxu0 %v3690
  %3722 = vmatmul.f32.gmra.mxu0 %v3450
  %v3723 = vpop.f32.mrf.mxu0
  %v3724 = vadd.f32 0.0, %v3723
  %3725 = vmatmul.f32.gmra.mxu0 %v3451
  %v3726 = vpop.f32.mrf.mxu0
  %v3727 = vadd.f32 0.0, %v3726
  %3728 = vmatmul.f32.gmra.mxu0 %v3452
  %v3729 = vpop.f32.mrf.mxu0
  %v3730 = vadd.f32 0.0, %v3729
  %3731 = vmatmul.f32.gmra.mxu0 %v3453
  %v3732 = vpop.f32.mrf.mxu0
  %v3733 = vadd.f32 0.0, %v3732
  %3734 = vmatmul.f32.gmra.mxu0 %v3454
  %v3735 = vpop.f32.mrf.mxu0
  %v3736 = vadd.f32 0.0, %v3735
  %3737 = vmatmul.f32.gmra.mxu0 %v3455
  %v3738 = vpop.f32.mrf.mxu0
  %v3739 = vadd.f32 0.0, %v3738
  %3740 = vmatmul.f32.gmra.mxu0 %v3456
  %v3741 = vpop.f32.mrf.mxu0
  %v3742 = vadd.f32 0.0, %v3741
  %3743 = vmatmul.f32.gmra.mxu0 %v3457
  %v3744 = vpop.f32.mrf.mxu0
  %v3745 = vadd.f32 0.0, %v3744
  %3746 = vmatmul.f32.gmra.mxu0 %v3458
  %v3747 = vpop.f32.mrf.mxu0
  %v3748 = vadd.f32 0.0, %v3747
  %3749 = vmatmul.f32.gmra.mxu0 %v3459
  %v3750 = vpop.f32.mrf.mxu0
  %v3751 = vadd.f32 0.0, %v3750
  %3752 = vmatmul.f32.gmra.mxu0 %v3460
  %v3753 = vpop.f32.mrf.mxu0
  %v3754 = vadd.f32 0.0, %v3753
  %3755 = vmatmul.f32.gmra.mxu0 %v3461
  %v3756 = vpop.f32.mrf.mxu0
  %v3757 = vadd.f32 0.0, %v3756
  %3758 = vmatmul.f32.gmra.mxu0 %v3462
  %v3759 = vpop.f32.mrf.mxu0
  %v3760 = vadd.f32 0.0, %v3759
  %3761 = vmatmul.f32.gmra.mxu0 %v3463
  %v3762 = vpop.f32.mrf.mxu0
  %v3763 = vadd.f32 0.0, %v3762
  %3764 = vmatmul.f32.gmra.mxu0 %v3464
  %v3765 = vpop.f32.mrf.mxu0
  %v3766 = vadd.f32 0.0, %v3765
  %3767 = vmatmul.f32.gmra.mxu0 %v3465
  %v3768 = vpop.f32.mrf.mxu0
  %v3769 = vadd.f32 0.0, %v3768
  %3770 = vmatmul.f32.gmra.mxu0 %v3466
  %v3771 = vpop.f32.mrf.mxu0
  %v3772 = vadd.f32 0.0, %v3771
  %3773 = vmatmul.f32.gmra.mxu0 %v3467
  %v3774 = vpop.f32.mrf.mxu0
  %v3775 = vadd.f32 0.0, %v3774
  %3776 = vmatmul.f32.gmra.mxu0 %v3468
  %v3777 = vpop.f32.mrf.mxu0
  %v3778 = vadd.f32 0.0, %v3777
  %3779 = vmatmul.f32.gmra.mxu0 %v3469
  %v3780 = vpop.f32.mrf.mxu0
  %v3781 = vadd.f32 0.0, %v3780
  %3782 = vmatmul.f32.gmra.mxu0 %v3470
  %v3783 = vpop.f32.mrf.mxu0
  %v3784 = vadd.f32 0.0, %v3783
  %3785 = vmatmul.f32.gmra.mxu0 %v3471
  %v3786 = vpop.f32.mrf.mxu0
  %v3787 = vadd.f32 0.0, %v3786
  %3788 = vmatmul.f32.gmra.mxu0 %v3472
  %v3789 = vpop.f32.mrf.mxu0
  %v3790 = vadd.f32 0.0, %v3789
  %3791 = vmatmul.f32.gmra.mxu0 %v3473
  %v3792 = vpop.f32.mrf.mxu0
  %v3793 = vadd.f32 0.0, %v3792
  %3794 = vmatmul.f32.gmra.mxu0 %v3474
  %v3795 = vpop.f32.mrf.mxu0
  %v3796 = vadd.f32 0.0, %v3795
  %3797 = vmatmul.f32.gmra.mxu0 %v3475
  %v3798 = vpop.f32.mrf.mxu0
  %v3799 = vadd.f32 0.0, %v3798
  %3800 = vmatmul.f32.gmra.mxu0 %v3476
  %v3801 = vpop.f32.mrf.mxu0
  %v3802 = vadd.f32 0.0, %v3801
  %3803 = vmatmul.f32.gmra.mxu0 %v3477
  %v3804 = vpop.f32.mrf.mxu0
  %v3805 = vadd.f32 0.0, %v3804
  %3806 = vmatmul.f32.gmra.mxu0 %v3478
  %v3807 = vpop.f32.mrf.mxu0
  %v3808 = vadd.f32 0.0, %v3807
  %3809 = vmatmul.f32.gmra.mxu0 %v3479
  %v3810 = vpop.f32.mrf.mxu0
  %v3811 = vadd.f32 0.0, %v3810
  %3812 = vmatmul.f32.gmra.mxu0 %v3480
  %v3813 = vpop.f32.mrf.mxu0
  %v3814 = vadd.f32 0.0, %v3813
  %3815 = vmatmul.f32.gmra.mxu0 %v3481
  %v3816 = vpop.f32.mrf.mxu0
  %v3817 = vadd.f32 0.0, %v3816
  %3818 = vdwg.mxu0
  %vm3819 = vcmask 64512
  %3820 = vst.msk [vmem:[%s7] sm:$0xff] %vm3819, %v3724
  %3821 = vst.msk [vmem:[%s7 + $0x8] sm:$0xff] %vm3819, %v3727
  %3822 = vst.msk [vmem:[%s7 + $0x10] sm:$0xff] %vm3819, %v3730
  %3823 = vst.msk [vmem:[%s7 + $0x18] sm:$0xff] %vm3819, %v3733
  %3824 = vst.msk [vmem:[%s7 + $0x20] sm:$0xff] %vm3819, %v3736
  %3825 = vst.msk [vmem:[%s7 + $0x28] sm:$0xff] %vm3819, %v3739
  %3826 = vst.msk [vmem:[%s7 + $0x30] sm:$0xff] %vm3819, %v3742
  %3827 = vst.msk [vmem:[%s7 + $0x38] sm:$0xff] %vm3819, %v3745
  %3828 = vst.msk [vmem:[%s7 + $0x40] sm:$0xff] %vm3819, %v3748
  %3829 = vst.msk [vmem:[%s7 + $0x48] sm:$0xff] %vm3819, %v3751
  %3830 = vst.msk [vmem:[%s7 + $0x50] sm:$0xff] %vm3819, %v3754
  %3831 = vst.msk [vmem:[%s7 + $0x58] sm:$0xff] %vm3819, %v3757
  %3832 = vst.msk [vmem:[%s7 + $0x60] sm:$0xff] %vm3819, %v3760
  %3833 = vst.msk [vmem:[%s7 + $0x68] sm:$0xff] %vm3819, %v3763
  %3834 = vst.msk [vmem:[%s7 + $0x70] sm:$0xff] %vm3819, %v3766
  %3835 = vst.msk [vmem:[%s7 + $0x78] sm:$0xff] %vm3819, %v3769
  %3836 = vst.msk [vmem:[%s7 + $0x80] sm:$0xff] %vm3819, %v3772
  %3837 = vst.msk [vmem:[%s7 + $0x88] sm:$0xff] %vm3819, %v3775
  %3838 = vst.msk [vmem:[%s7 + $0x90] sm:$0xff] %vm3819, %v3778
  %3839 = vst.msk [vmem:[%s7 + $0x98] sm:$0xff] %vm3819, %v3781
  %3840 = vst.msk [vmem:[%s7 + $0xa0] sm:$0xff] %vm3819, %v3784
  %3841 = vst.msk [vmem:[%s7 + $0xa8] sm:$0xff] %vm3819, %v3787
  %3842 = vst.msk [vmem:[%s7 + $0xb0] sm:$0xff] %vm3819, %v3790
  %3843 = vst.msk [vmem:[%s7 + $0xb8] sm:$0xff] %vm3819, %v3793
  %3844 = vst.msk [vmem:[%s7 + $0xc0] sm:$0xff] %vm3819, %v3796
  %3845 = vst.msk [vmem:[%s7 + $0xc8] sm:$0xff] %vm3819, %v3799
  %3846 = vst.msk [vmem:[%s7 + $0xd0] sm:$0xff] %vm3819, %v3802
  %3847 = vst.msk [vmem:[%s7 + $0xd8] sm:$0xff] %vm3819, %v3805
  %3848 = vst.msk [vmem:[%s7 + $0xe0] sm:$0xff] %vm3819, %v3808
  %3849 = vst.msk [vmem:[%s7 + $0xe8] sm:$0xff] %vm3819, %v3811
  %3850 = vst.msk [vmem:[%s7 + $0xf0] sm:$0xff] %vm3819, %v3814
  %3851 = vst.msk [vmem:[%s7 + $0xf8] sm:$0xff] %vm3819, %v3817
  %v3852 = vadd.f32 %v3724, 0.5
  %v3853 = vadd.f32 %v3727, 0.5
  %v3854 = vadd.f32 %v3730, 0.5
  %v3855 = vadd.f32 %v3733, 0.5
  %v3856 = vadd.f32 %v3736, 0.5
  %v3857 = vadd.f32 %v3739, 0.5
  %v3858 = vadd.f32 %v3742, 0.5
  %v3859 = vadd.f32 %v3745, 0.5
  %v3860 = vadd.f32 %v3748, 0.5
  %v3861 = vadd.f32 %v3751, 0.5
  %v3862 = vadd.f32 %v3754, 0.5
  %v3863 = vadd.f32 %v3757, 0.5
  %v3864 = vadd.f32 %v3760, 0.5
  %v3865 = vadd.f32 %v3763, 0.5
  %v3866 = vadd.f32 %v3766, 0.5
  %v3867 = vadd.f32 %v3769, 0.5
  %v3868 = vadd.f32 %v3772, 0.5
  %v3869 = vadd.f32 %v3775, 0.5
  %v3870 = vadd.f32 %v3778, 0.5
  %v3871 = vadd.f32 %v3781, 0.5
  %v3872 = vadd.f32 %v3784, 0.5
  %v3873 = vadd.f32 %v3787, 0.5
  %v3874 = vadd.f32 %v3790, 0.5
  %v3875 = vadd.f32 %v3793, 0.5
  %v3876 = vadd.f32 %v3796, 0.5
  %v3877 = vadd.f32 %v3799, 0.5
  %v3878 = vadd.f32 %v3802, 0.5
  %v3879 = vadd.f32 %v3805, 0.5
  %v3880 = vadd.f32 %v3808, 0.5
  %v3881 = vadd.f32 %v3811, 0.5
  %v3882 = vadd.f32 %v3814, 0.5
  %v3883 = vadd.f32 %v3817, 0.5
  %v3884 = vfloor.f32 %v3852
  %v3885 = vfloor.f32 %v3853
  %v3886 = vfloor.f32 %v3854
  %v3887 = vfloor.f32 %v3855
  %v3888 = vfloor.f32 %v3856
  %v3889 = vfloor.f32 %v3857
  %v3890 = vfloor.f32 %v3858
  %v3891 = vfloor.f32 %v3859
  %v3892 = vfloor.f32 %v3860
  %v3893 = vfloor.f32 %v3861
  %v3894 = vfloor.f32 %v3862
  %v3895 = vfloor.f32 %v3863
  %v3896 = vfloor.f32 %v3864
  %v3897 = vfloor.f32 %v3865
  %v3898 = vfloor.f32 %v3866
  %v3899 = vfloor.f32 %v3867
  %v3900 = vfloor.f32 %v3868
  %v3901 = vfloor.f32 %v3869
  %v3902 = vfloor.f32 %v3870
  %v3903 = vfloor.f32 %v3871
  %v3904 = vfloor.f32 %v3872
  %v3905 = vfloor.f32 %v3873
  %v3906 = vfloor.f32 %v3874
  %v3907 = vfloor.f32 %v3875
  %v3908 = vfloor.f32 %v3876
  %v3909 = vfloor.f32 %v3877
  %v3910 = vfloor.f32 %v3878
  %v3911 = vfloor.f32 %v3879
  %v3912 = vfloor.f32 %v3880
  %v3913 = vfloor.f32 %v3881
  %v3914 = vfloor.f32 %v3882
  %v3915 = vfloor.f32 %v3883
  %v3916 = vsub.f32 %v3884, 1.0
  %v3917 = vsub.f32 %v3885, 1.0
  %v3918 = vsub.f32 %v3886, 1.0
  %v3919 = vsub.f32 %v3887, 1.0
  %v3920 = vsub.f32 %v3888, 1.0
  %v3921 = vsub.f32 %v3889, 1.0
  %v3922 = vsub.f32 %v3890, 1.0
  %v3923 = vsub.f32 %v3891, 1.0
  %v3924 = vsub.f32 %v3892, 1.0
  %v3925 = vsub.f32 %v3893, 1.0
  %v3926 = vsub.f32 %v3894, 1.0
  %v3927 = vsub.f32 %v3895, 1.0
  %v3928 = vsub.f32 %v3896, 1.0
  %v3929 = vsub.f32 %v3897, 1.0
  %v3930 = vsub.f32 %v3898, 1.0
  %v3931 = vsub.f32 %v3899, 1.0
  %v3932 = vsub.f32 %v3900, 1.0
  %v3933 = vsub.f32 %v3901, 1.0
  %v3934 = vsub.f32 %v3902, 1.0
  %v3935 = vsub.f32 %v3903, 1.0
  %v3936 = vsub.f32 %v3904, 1.0
  %v3937 = vsub.f32 %v3905, 1.0
  %v3938 = vsub.f32 %v3906, 1.0
  %v3939 = vsub.f32 %v3907, 1.0
  %v3940 = vsub.f32 %v3908, 1.0
  %v3941 = vsub.f32 %v3909, 1.0
  %v3942 = vsub.f32 %v3910, 1.0
  %v3943 = vsub.f32 %v3911, 1.0
  %v3944 = vsub.f32 %v3912, 1.0
  %v3945 = vsub.f32 %v3913, 1.0
  %v3946 = vsub.f32 %v3914, 1.0
  %v3947 = vsub.f32 %v3915, 1.0
  %vm3948 = vcmask 48168
  %3949 = vst.msk [vmem:[%s7] sm:$0xff] %vm3948, %v3916
  %3950 = vst.msk [vmem:[%s7 + $0x8] sm:$0xff] %vm3948, %v3917
  %3951 = vst.msk [vmem:[%s7 + $0x10] sm:$0xff] %vm3948, %v3918
  %3952 = vst.msk [vmem:[%s7 + $0x18] sm:$0xff] %vm3948, %v3919
  %3953 = vst.msk [vmem:[%s7 + $0x20] sm:$0xff] %vm3948, %v3920
  %3954 = vst.msk [vmem:[%s7 + $0x28] sm:$0xff] %vm3948, %v3921
  %3955 = vst.msk [vmem:[%s7 + $0x30] sm:$0xff] %vm3948, %v3922
  %3956 = vst.msk [vmem:[%s7 + $0x38] sm:$0xff] %vm3948, %v3923
  %3957 = vst.msk [vmem:[%s7 + $0x40] sm:$0xff] %vm3948, %v3924
  %3958 = vst.msk [vmem:[%s7 + $0x48] sm:$0xff] %vm3948, %v3925
  %3959 = vst.msk [vmem:[%s7 + $0x50] sm:$0xff] %vm3948, %v3926
  %3960 = vst.msk [vmem:[%s7 + $0x58] sm:$0xff] %vm3948, %v3927
  %3961 = vst.msk [vmem:[%s7 + $0x60] sm:$0xff] %vm3948, %v3928
  %3962 = vst.msk [vmem:[%s7 + $0x68] sm:$0xff] %vm3948, %v3929
  %3963 = vst.msk [vmem:[%s7 + $0x70] sm:$0xff] %vm3948, %v3930
  %3964 = vst.msk [vmem:[%s7 + $0x78] sm:$0xff] %vm3948, %v3931
  %3965 = vst.msk [vmem:[%s7 + $0x80] sm:$0xff] %vm3948, %v3932
  %3966 = vst.msk [vmem:[%s7 + $0x88] sm:$0xff] %vm3948, %v3933
  %3967 = vst.msk [vmem:[%s7 + $0x90] sm:$0xff] %vm3948, %v3934
  %3968 = vst.msk [vmem:[%s7 + $0x98] sm:$0xff] %vm3948, %v3935
  %3969 = vst.msk [vmem:[%s7 + $0xa0] sm:$0xff] %vm3948, %v3936
  %3970 = vst.msk [vmem:[%s7 + $0xa8] sm:$0xff] %vm3948, %v3937
  %3971 = vst.msk [vmem:[%s7 + $0xb0] sm:$0xff] %vm3948, %v3938
  %3972 = vst.msk [vmem:[%s7 + $0xb8] sm:$0xff] %vm3948, %v3939
  %3973 = vst.msk [vmem:[%s7 + $0xc0] sm:$0xff] %vm3948, %v3940
  %3974 = vst.msk [vmem:[%s7 + $0xc8] sm:$0xff] %vm3948, %v3941
  %3975 = vst.msk [vmem:[%s7 + $0xd0] sm:$0xff] %vm3948, %v3942
  %3976 = vst.msk [vmem:[%s7 + $0xd8] sm:$0xff] %vm3948, %v3943
  %3977 = vst.msk [vmem:[%s7 + $0xe0] sm:$0xff] %vm3948, %v3944
  %3978 = vst.msk [vmem:[%s7 + $0xe8] sm:$0xff] %vm3948, %v3945
  %3979 = vst.msk [vmem:[%s7 + $0xf0] sm:$0xff] %vm3948, %v3946
  %3980 = vst.msk [vmem:[%s7 + $0xf8] sm:$0xff] %vm3948, %v3947
  // Predicated region
  $region37: #{scripted_predictor_forward.1} parent=0 // pred_check
    _
  $region38: #{scripted_predictor_forward.1} parent=0 // pred_check_branch
    %3982 = sbr.rel (0) target = $region40
  $region39: #{scripted_predictor_forward.1} parent=0 // pred_region
    _
  $region40: #{scripted_predictor_forward.1} parent=0 // pred_fallthru
    _
  // Predicated region
  $region41: #{scripted_predictor_forward.1} parent=0 // pred_check
    _
  $region42: #{scripted_predictor_forward.1} parent=0 // pred_check_branch
    %3984 = sbr.rel (0) target = $region44
  $region43: #{scripted_predictor_forward.1} parent=0 // pred_region
    _
  $region44: #{scripted_predictor_forward.1} parent=0 // pred_fallthru
    _

</llo_original>
